<compile_context>
chip_gen: v7x
topology: tpu7x:2x2x1
jax: 0.10.0
libtpu: 0.0.40
codegen_flags: <defaults>
</compile_context>

<pallas_src>
import functools

import jax
import jax.numpy as jnp
from jax import lax
from jax.experimental import pallas as pl
from jax.experimental.pallas import tpu as pltpu

n_embed = 64
n_head = 4
chunk_size = 32
LN_EPS = 1e-5


def _block_kernel(x_ref, wqkv_ref, wproj_ref, w1_ref, w2_ref, p_ref, o_ref,
                  *, num_heads, head_size):
    Bb, T, C = x_ref.shape
    H, Dh = num_heads, head_size

    # Flatten batch*time rows for all dense (row, C) matmuls.
    x = x_ref[...].reshape(Bb * T, C)                      # (Bb*T, C)

    # Packed small parameters: rows 0..6 of an (8, 4C) tile.
    P = p_ref[...]                                         # (8, 4C)
    ln1g, ln1b = P[0:1, :C], P[1:2, :C]
    ln2g, ln2b = P[2:3, :C], P[3:4, :C]
    bproj, b2 = P[4:5, :C], P[5:6, :C]
    b1 = P[6:7, :]                                         # (1, 4C)

    def layer_norm(z, g, b):
        mu = jnp.mean(z, axis=-1, keepdims=True)
        zc = z - mu
        var = jnp.mean(zc * zc, axis=-1, keepdims=True)
        return zc * lax.rsqrt(var + LN_EPS) * g + b

    # ----------------- self-attention branch -----------------
    h = layer_norm(x, ln1g, ln1b)                          # (Bb*T, C)

    # Fused QKV: one (Bb*T, C) x (C, 3C) MXU pass.  The 1/sqrt(C) score scale
    # is already folded into the Q columns of wqkv (host-side).
    qkv = jnp.dot(h, wqkv_ref[...],
                  preferred_element_type=jnp.float32)      # (Bb*T, 3C)
    qkv = qkv.reshape(Bb, T, 3 * C)

    # Additive causal bias, computed once per grid step.
    rowi = lax.broadcasted_iota(jnp.int32, (T, T), 0)
    coli = lax.broadcasted_iota(jnp.int32, (T, T), 1)
    bias = jnp.where(coli <= rowi, 0.0, -1e30).astype(jnp.float32)   # (T, T)

    head_outs = []
    for hh in range(H):                                    # static, H = 4
        q = qkv[:, :, hh * Dh:(hh + 1) * Dh]               # (Bb, T, Dh)
        k = qkv[:, :, C + hh * Dh:C + (hh + 1) * Dh]
        v = qkv[:, :, 2 * C + hh * Dh:2 * C + (hh + 1) * Dh]
        s = jnp.einsum('bqd,bkd->bqk', q, k,
                       preferred_element_type=jnp.float32) + bias    # (Bb, T, T)
        m = jnp.max(s, axis=-1, keepdims=True)
        e = jnp.exp(s - m)
        denom = jnp.sum(e, axis=-1, keepdims=True)         # (Bb, T, 1)
        o = jnp.einsum('bqk,bkd->bqd', e, v,
                       preferred_element_type=jnp.float32)  # (Bb, T, Dh)
        head_outs.append(o / denom)                        # normalize small side
    cat = jnp.concatenate(head_outs, axis=-1).reshape(Bb * T, C)      # (Bb*T, C)

    sa = jnp.dot(cat, wproj_ref[...],
                 preferred_element_type=jnp.float32) + bproj
    x1 = x + sa                                            # residual 1

    # ----------------- feed-forward branch -----------------
    h2 = layer_norm(x1, ln2g, ln2b)
    f1 = jnp.dot(h2, w1_ref[...], preferred_element_type=jnp.float32) + b1
    f1 = jnp.maximum(f1, 0.0)                              # ReLU
    f2 = jnp.dot(f1, w2_ref[...], preferred_element_type=jnp.float32) + b2

    out = (x1 + f2).reshape(Bb, T, C)                      # residual 2
    o_ref[...] = out.astype(o_ref.dtype)                   # lane-dense (Bb,T,C) store


def _pick_block_b(B, T):
    """Largest divisor of B giving ~128 rows per step while keeping >=2 grid
    steps when possible (keeps both TensorCores busy on v7x)."""
    target = max(1, 128 // T)
    best = 1
    for d in range(1, min(B, target) + 1):
        if B % d == 0 and (B // d >= 2 or B == 1):
            best = d
    return best


def transformer_block(x, ln1_g, ln1_b, wq, wk, wv, w_proj, b_proj,
                      ln2_g, ln2_b, w1, b1, w2, b2, *, block_b=None):
    """x: (B,T,C); wq/wk/wv: (H,C,Dh); w_proj: (C,C); w1: (C,4C); w2: (4C,C)."""
    B, T, C = x.shape
    H, _, Dh = wq.shape
    assert H * Dh == C == n_embed and T <= chunk_size

    bb = _pick_block_b(B, T) if block_b is None else block_b
    assert B % bb == 0

    # Fuse per-head QKV weights host-side: (H,C,Dh) -> (C, H*Dh); concat -> (C, 3C).
    # Score scale (n_embed**-0.5, per PyTorch spec) folded into the Q columns.
    def _flat(w):
        return jnp.transpose(w, (1, 0, 2)).reshape(C, H * Dh)
    scale = jnp.float32(C) ** jnp.float32(-0.5)
    wqkv = jnp.concatenate([_flat(wq) * scale, _flat(wk), _flat(wv)], axis=-1)

    # Pack all small vector parameters into one (8, 4C) tile.
    P = jnp.zeros((8, 4 * C), jnp.float32)
    P = P.at[0, :C].set(ln1_g).at[1, :C].set(ln1_b)
    P = P.at[2, :C].set(ln2_g).at[3, :C].set(ln2_b)
    P = P.at[4, :C].set(b_proj).at[5, :C].set(b2)
    P = P.at[6, :].set(b1)

    full = lambda shape: pl.BlockSpec(shape, lambda b: (0,) * len(shape))
    kernel = functools.partial(_block_kernel, num_heads=H, head_size=Dh)

    return pl.pallas_call(
        kernel,
        out_shape=jax.ShapeDtypeStruct((B, T, C), x.dtype),
        grid_spec=pltpu.PrefetchScalarGridSpec(
            num_scalar_prefetch=0,
            grid=(B // bb,),
            in_specs=[
                pl.BlockSpec((bb, T, C), lambda b: (b, 0, 0)),  # x
                full((C, 3 * C)),                               # fused QKV weight
                full((C, C)),                                   # proj weight
                full((C, 4 * C)),                               # ffn W1
                full((4 * C, C)),                               # ffn W2
                full((8, 4 * C)),                               # packed small params
            ],
            out_specs=pl.BlockSpec((bb, T, C), lambda b: (b, 0, 0)),
        ),
        compiler_params=pltpu.CompilerParams(
            dimension_semantics=("parallel",)),   # batch blocks across TCs (v7x)
    )(x, wqkv, w_proj, w1, w2, P)


if __name__ == "__main__":
    B, T, C = 8, 8, n_embed          # T <= chunk_size; grid = 2 steps (block_b = 4)
    H, Dh = n_head, n_embed // n_head

    key = jax.random.PRNGKey(0)
    ks = jax.random.split(key, 14)
    x      = jax.random.normal(ks[0], (B, T, C), dtype=jnp.float32)
    wq     = jax.random.normal(ks[1], (H, C, Dh), dtype=jnp.float32) * 0.02
    wk     = jax.random.normal(ks[2], (H, C, Dh), dtype=jnp.float32) * 0.02
    wv     = jax.random.normal(ks[3], (H, C, Dh), dtype=jnp.float32) * 0.02
    w_proj = jax.random.normal(ks[4], (C, C), dtype=jnp.float32) * 0.02
    b_proj = jax.random.normal(ks[5], (C,), dtype=jnp.float32) * 0.02
    ln1_g  = 1.0 + 0.1 * jax.random.normal(ks[6], (C,), dtype=jnp.float32)
    ln1_b  = 0.02 * jax.random.normal(ks[7], (C,), dtype=jnp.float32)
    ln2_g  = 1.0 + 0.1 * jax.random.normal(ks[8], (C,), dtype=jnp.float32)
    ln2_b  = 0.02 * jax.random.normal(ks[9], (C,), dtype=jnp.float32)
    w1     = jax.random.normal(ks[10], (C, 4 * C), dtype=jnp.float32) * 0.02
    b1     = 0.02 * jax.random.normal(ks[11], (4 * C,), dtype=jnp.float32)
    w2     = jax.random.normal(ks[12], (4 * C, C), dtype=jnp.float32) * 0.02
    b2     = 0.02 * jax.random.normal(ks[13], (C,), dtype=jnp.float32)

    out = transformer_block(x, ln1_g, ln1_b, wq, wk, wv, w_proj, b_proj,
                            ln2_g, ln2_b, w1, b1, w2, b2)
    out = jax.block_until_ready(out)

    # ---------------- pure-JAX reference (mirrors the PyTorch Block) ----------------
    def ref_block(x):
        def ln(z, g, b):
            mu = z.mean(-1, keepdims=True)
            var = ((z - mu) ** 2).mean(-1, keepdims=True)
            return (z - mu) / jnp.sqrt(var + LN_EPS) * g + b
        h = ln(x, ln1_g, ln1_b)
        mask = jnp.tril(jnp.ones((T, T), dtype=bool))
        outs = []
        for hh in range(H):
            q = h @ wq[hh]
            k = h @ wk[hh]
            v = h @ wv[hh]
            wei = (q @ jnp.swapaxes(k, -1, -2)) * (C ** -0.5)
            wei = jnp.where(mask, wei, -jnp.inf)
            wei = jax.nn.softmax(wei, axis=-1)
            outs.append(wei @ v)
        x1 = x + (jnp.concatenate(outs, axis=-1) @ w_proj + b_proj)
        h2 = ln(x1, ln2_g, ln2_b)
        ff = jnp.maximum(h2 @ w1 + b1, 0.0) @ w2 + b2
        return x1 + ff

    r = ref_block(x)
    assert out.shape == (B, T, C)
    assert jnp.allclose(out, r, atol=1e-4, rtol=1e-4), float(jnp.max(jnp.abs(out - r)))

    print("KERNEL_OK")
</pallas_src>

<mosaic_0001>
module attributes {stable_mosaic.version = 11 : i64} {
  func.func @_block_kernel(%arg0: i32, %arg1: memref<4x8x64xf32, #tpu.memory_space<vmem>>, %arg2: memref<64x192xf32, #tpu.memory_space<vmem>>, %arg3: memref<64x64xf32, #tpu.memory_space<vmem>>, %arg4: memref<64x256xf32, #tpu.memory_space<vmem>>, %arg5: memref<256x64xf32, #tpu.memory_space<vmem>>, %arg6: memref<8x256xf32, #tpu.memory_space<vmem>>, %arg7: memref<4x8x64xf32, #tpu.memory_space<vmem>>) attributes {dimension_semantics = [#tpu.dimension_semantics<parallel>], iteration_bounds = array<i64: 2>, scalar_prefetch = 0 : i64, scratch_operands = 0 : i64, tpu.core_type = #tpu.core_type<tc>, window_params = [{transform_indices = @transform_0, window_bounds = array<i64: 4, 8, 64>}, {pipeline_mode = #tpu.pipeline_mode<synchronous>, transform_indices = @transform_1, window_bounds = array<i64: 64, 192>}, {pipeline_mode = #tpu.pipeline_mode<synchronous>, transform_indices = @transform_2, window_bounds = array<i64: 64, 64>}, {pipeline_mode = #tpu.pipeline_mode<synchronous>, transform_indices = @transform_3, window_bounds = array<i64: 64, 256>}, {pipeline_mode = #tpu.pipeline_mode<synchronous>, transform_indices = @transform_4, window_bounds = array<i64: 256, 64>}, {pipeline_mode = #tpu.pipeline_mode<synchronous>, transform_indices = @transform_5, window_bounds = array<i64: 8, 256>}, {transform_indices = @transform_6, window_bounds = array<i64: 4, 8, 64>}]} {
    %c0 = arith.constant 0 : index
    %c0_0 = arith.constant 0 : index
    %c0_1 = arith.constant 0 : index
    %0 = vector.load %arg1[%c0, %c0_0, %c0_1] : memref<4x8x64xf32, #tpu.memory_space<vmem>>, vector<4x8x64xf32>
    %1 = vector.shape_cast %0 : vector<4x8x64xf32> to vector<32x64xf32>
    %c0_2 = arith.constant 0 : index
    %c0_3 = arith.constant 0 : index
    %2 = vector.load %arg6[%c0_2, %c0_3] : memref<8x256xf32, #tpu.memory_space<vmem>>, vector<8x256xf32>
    %3 = vector.extract_strided_slice %2 {offsets = [0, 0], sizes = [1, 64], strides = [1, 1]} : vector<8x256xf32> to vector<1x64xf32>
    %4 = vector.extract_strided_slice %2 {offsets = [1, 0], sizes = [1, 64], strides = [1, 1]} : vector<8x256xf32> to vector<1x64xf32>
    %5 = vector.extract_strided_slice %2 {offsets = [2, 0], sizes = [1, 64], strides = [1, 1]} : vector<8x256xf32> to vector<1x64xf32>
    %6 = vector.extract_strided_slice %2 {offsets = [3, 0], sizes = [1, 64], strides = [1, 1]} : vector<8x256xf32> to vector<1x64xf32>
    %7 = vector.extract_strided_slice %2 {offsets = [4, 0], sizes = [1, 64], strides = [1, 1]} : vector<8x256xf32> to vector<1x64xf32>
    %8 = vector.extract_strided_slice %2 {offsets = [5, 0], sizes = [1, 64], strides = [1, 1]} : vector<8x256xf32> to vector<1x64xf32>
    %9 = vector.extract_strided_slice %2 {offsets = [6, 0], sizes = [1, 256], strides = [1, 1]} : vector<8x256xf32> to vector<1x256xf32>
    %cst = arith.constant dense<0.000000e+00> : vector<32xf32>
    %10 = vector.multi_reduction <add>, %1, %cst [1] : vector<32x64xf32> to vector<32xf32>
    %11 = vector.shape_cast %10 : vector<32xf32> to vector<32x1xf32>
    %cst_4 = arith.constant 6.400000e+01 : f32
    %12 = vector.broadcast %cst_4 : f32 to vector<32x1xf32>
    %13 = arith.divf %11, %12 : vector<32x1xf32>
    %14 = vector.broadcast %13 : vector<32x1xf32> to vector<32x64xf32>
    %15 = arith.subf %1, %14 : vector<32x64xf32>
    %16 = arith.mulf %15, %15 : vector<32x64xf32>
    %cst_5 = arith.constant dense<0.000000e+00> : vector<32xf32>
    %17 = vector.multi_reduction <add>, %16, %cst_5 [1] : vector<32x64xf32> to vector<32xf32>
    %18 = vector.shape_cast %17 : vector<32xf32> to vector<32x1xf32>
    %cst_6 = arith.constant 6.400000e+01 : f32
    %19 = vector.broadcast %cst_6 : f32 to vector<32x1xf32>
    %20 = arith.divf %18, %19 : vector<32x1xf32>
    %cst_7 = arith.constant 9.99999974E-6 : f32
    %21 = vector.broadcast %cst_7 : f32 to vector<32x1xf32>
    %22 = arith.addf %20, %21 : vector<32x1xf32>
    %23 = math.rsqrt %22 : vector<32x1xf32>
    %24 = vector.broadcast %23 : vector<32x1xf32> to vector<32x64xf32>
    %25 = arith.mulf %15, %24 : vector<32x64xf32>
    %26 = vector.broadcast %3 : vector<1x64xf32> to vector<32x64xf32>
    %27 = arith.mulf %25, %26 : vector<32x64xf32>
    %28 = vector.broadcast %4 : vector<1x64xf32> to vector<32x64xf32>
    %29 = arith.addf %27, %28 : vector<32x64xf32>
    %c0_8 = arith.constant 0 : index
    %c0_9 = arith.constant 0 : index
    %30 = vector.load %arg2[%c0_8, %c0_9] : memref<64x192xf32, #tpu.memory_space<vmem>>, vector<64x192xf32>
    %cst_10 = arith.constant dense<0.000000e+00> : vector<32x192xf32>
    %31 = tpu.matmul %29, %30, %cst_10 {dimension_numbers = #tpu.dot_dimension_numbers<[1], [0], [0], [1], [0, 0, 1, 1], [], []>} : vector<32x64xf32>, vector<64x192xf32>, vector<32x192xf32> -> vector<32x192xf32>
    %32 = vector.shape_cast %31 : vector<32x192xf32> to vector<4x8x192xf32>
    %33 = tpu.iota {dimensions = array<i32: 0>} : vector<8x8xi32>
    %34 = tpu.iota {dimensions = array<i32: 1>} : vector<8x8xi32>
    %35 = arith.cmpi sle, %34, %33 : vector<8x8xi32>
    %cst_11 = arith.constant 0.000000e+00 : f32
    %cst_12 = arith.constant -1.000000e+30 : f32
    %36 = vector.broadcast %cst_11 : f32 to vector<8x8xf32>
    %37 = vector.broadcast %cst_12 : f32 to vector<8x8xf32>
    %38 = arith.select %35, %36, %37 : vector<8x8xi1>, vector<8x8xf32>
    %39 = vector.extract_strided_slice %32 {offsets = [0, 0, 0], sizes = [4, 8, 16], strides = [1, 1, 1]} : vector<4x8x192xf32> to vector<4x8x16xf32>
    %40 = vector.extract_strided_slice %32 {offsets = [0, 0, 64], sizes = [4, 8, 16], strides = [1, 1, 1]} : vector<4x8x192xf32> to vector<4x8x16xf32>
    %41 = vector.extract_strided_slice %32 {offsets = [0, 0, 128], sizes = [4, 8, 16], strides = [1, 1, 1]} : vector<4x8x192xf32> to vector<4x8x16xf32>
    "tpu.trace_start"() <{level = 10 : i32, message = "bqd,bkd->bqk"}> : () -> ()
    %cst_13 = arith.constant dense<0.000000e+00> : vector<4x8x8xf32>
    %42 = tpu.matmul %39, %40, %cst_13 {dimension_numbers = #tpu.dot_dimension_numbers<[2], [2], [1], [1], [0, 0, 0, 1, 1, 1], [0], [0]>} : vector<4x8x16xf32>, vector<4x8x16xf32>, vector<4x8x8xf32> -> vector<4x8x8xf32>
    "tpu.trace_stop"() : () -> ()
    %43 = vector.shape_cast %38 : vector<8x8xf32> to vector<1x8x8xf32>
    %44 = vector.broadcast %43 : vector<1x8x8xf32> to vector<4x8x8xf32>
    %45 = arith.addf %42, %44 : vector<4x8x8xf32>
    %cst_14 = arith.constant dense<0xFF800000> : vector<4x8xf32>
    %46 = vector.multi_reduction <maximumf>, %45, %cst_14 [2] : vector<4x8x8xf32> to vector<4x8xf32>
    %47 = vector.shape_cast %46 : vector<4x8xf32> to vector<4x8x1xf32>
    %48 = vector.broadcast %47 : vector<4x8x1xf32> to vector<4x8x8xf32>
    %49 = arith.subf %45, %48 : vector<4x8x8xf32>
    %50 = math.exp %49 : vector<4x8x8xf32>
    %cst_15 = arith.constant dense<0.000000e+00> : vector<4x8xf32>
    %51 = vector.multi_reduction <add>, %50, %cst_15 [2] : vector<4x8x8xf32> to vector<4x8xf32>
    %52 = vector.shape_cast %51 : vector<4x8xf32> to vector<4x8x1xf32>
    "tpu.trace_start"() <{level = 10 : i32, message = "bqk,bkd->bqd"}> : () -> ()
    %cst_16 = arith.constant dense<0.000000e+00> : vector<4x8x16xf32>
    %53 = tpu.matmul %50, %41, %cst_16 {dimension_numbers = #tpu.dot_dimension_numbers<[2], [1], [1], [2], [0, 0, 0, 1, 1, 2], [0], [0]>} : vector<4x8x8xf32>, vector<4x8x16xf32>, vector<4x8x16xf32> -> vector<4x8x16xf32>
    "tpu.trace_stop"() : () -> ()
    %54 = vector.broadcast %52 : vector<4x8x1xf32> to vector<4x8x16xf32>
    %55 = arith.divf %53, %54 : vector<4x8x16xf32>
    %56 = vector.extract_strided_slice %32 {offsets = [0, 0, 16], sizes = [4, 8, 16], strides = [1, 1, 1]} : vector<4x8x192xf32> to vector<4x8x16xf32>
    %57 = vector.extract_strided_slice %32 {offsets = [0, 0, 80], sizes = [4, 8, 16], strides = [1, 1, 1]} : vector<4x8x192xf32> to vector<4x8x16xf32>
    %58 = vector.extract_strided_slice %32 {offsets = [0, 0, 144], sizes = [4, 8, 16], strides = [1, 1, 1]} : vector<4x8x192xf32> to vector<4x8x16xf32>
    "tpu.trace_start"() <{level = 10 : i32, message = "bqd,bkd->bqk"}> : () -> ()
    %cst_17 = arith.constant dense<0.000000e+00> : vector<4x8x8xf32>
    %59 = tpu.matmul %56, %57, %cst_17 {dimension_numbers = #tpu.dot_dimension_numbers<[2], [2], [1], [1], [0, 0, 0, 1, 1, 1], [0], [0]>} : vector<4x8x16xf32>, vector<4x8x16xf32>, vector<4x8x8xf32> -> vector<4x8x8xf32>
    "tpu.trace_stop"() : () -> ()
    %60 = vector.shape_cast %38 : vector<8x8xf32> to vector<1x8x8xf32>
    %61 = vector.broadcast %60 : vector<1x8x8xf32> to vector<4x8x8xf32>
    %62 = arith.addf %59, %61 : vector<4x8x8xf32>
    %cst_18 = arith.constant dense<0xFF800000> : vector<4x8xf32>
    %63 = vector.multi_reduction <maximumf>, %62, %cst_18 [2] : vector<4x8x8xf32> to vector<4x8xf32>
    %64 = vector.shape_cast %63 : vector<4x8xf32> to vector<4x8x1xf32>
    %65 = vector.broadcast %64 : vector<4x8x1xf32> to vector<4x8x8xf32>
    %66 = arith.subf %62, %65 : vector<4x8x8xf32>
    %67 = math.exp %66 : vector<4x8x8xf32>
    %cst_19 = arith.constant dense<0.000000e+00> : vector<4x8xf32>
    %68 = vector.multi_reduction <add>, %67, %cst_19 [2] : vector<4x8x8xf32> to vector<4x8xf32>
    %69 = vector.shape_cast %68 : vector<4x8xf32> to vector<4x8x1xf32>
    "tpu.trace_start"() <{level = 10 : i32, message = "bqk,bkd->bqd"}> : () -> ()
    %cst_20 = arith.constant dense<0.000000e+00> : vector<4x8x16xf32>
    %70 = tpu.matmul %67, %58, %cst_20 {dimension_numbers = #tpu.dot_dimension_numbers<[2], [1], [1], [2], [0, 0, 0, 1, 1, 2], [0], [0]>} : vector<4x8x8xf32>, vector<4x8x16xf32>, vector<4x8x16xf32> -> vector<4x8x16xf32>
    "tpu.trace_stop"() : () -> ()
    %71 = vector.broadcast %69 : vector<4x8x1xf32> to vector<4x8x16xf32>
    %72 = arith.divf %70, %71 : vector<4x8x16xf32>
    %73 = vector.extract_strided_slice %32 {offsets = [0, 0, 32], sizes = [4, 8, 16], strides = [1, 1, 1]} : vector<4x8x192xf32> to vector<4x8x16xf32>
    %74 = vector.extract_strided_slice %32 {offsets = [0, 0, 96], sizes = [4, 8, 16], strides = [1, 1, 1]} : vector<4x8x192xf32> to vector<4x8x16xf32>
    %75 = vector.extract_strided_slice %32 {offsets = [0, 0, 160], sizes = [4, 8, 16], strides = [1, 1, 1]} : vector<4x8x192xf32> to vector<4x8x16xf32>
    "tpu.trace_start"() <{level = 10 : i32, message = "bqd,bkd->bqk"}> : () -> ()
    %cst_21 = arith.constant dense<0.000000e+00> : vector<4x8x8xf32>
    %76 = tpu.matmul %73, %74, %cst_21 {dimension_numbers = #tpu.dot_dimension_numbers<[2], [2], [1], [1], [0, 0, 0, 1, 1, 1], [0], [0]>} : vector<4x8x16xf32>, vector<4x8x16xf32>, vector<4x8x8xf32> -> vector<4x8x8xf32>
    "tpu.trace_stop"() : () -> ()
    %77 = vector.shape_cast %38 : vector<8x8xf32> to vector<1x8x8xf32>
    %78 = vector.broadcast %77 : vector<1x8x8xf32> to vector<4x8x8xf32>
    %79 = arith.addf %76, %78 : vector<4x8x8xf32>
    %cst_22 = arith.constant dense<0xFF800000> : vector<4x8xf32>
    %80 = vector.multi_reduction <maximumf>, %79, %cst_22 [2] : vector<4x8x8xf32> to vector<4x8xf32>
    %81 = vector.shape_cast %80 : vector<4x8xf32> to vector<4x8x1xf32>
    %82 = vector.broadcast %81 : vector<4x8x1xf32> to vector<4x8x8xf32>
    %83 = arith.subf %79, %82 : vector<4x8x8xf32>
    %84 = math.exp %83 : vector<4x8x8xf32>
    %cst_23 = arith.constant dense<0.000000e+00> : vector<4x8xf32>
    %85 = vector.multi_reduction <add>, %84, %cst_23 [2] : vector<4x8x8xf32> to vector<4x8xf32>
    %86 = vector.shape_cast %85 : vector<4x8xf32> to vector<4x8x1xf32>
    "tpu.trace_start"() <{level = 10 : i32, message = "bqk,bkd->bqd"}> : () -> ()
    %cst_24 = arith.constant dense<0.000000e+00> : vector<4x8x16xf32>
    %87 = tpu.matmul %84, %75, %cst_24 {dimension_numbers = #tpu.dot_dimension_numbers<[2], [1], [1], [2], [0, 0, 0, 1, 1, 2], [0], [0]>} : vector<4x8x8xf32>, vector<4x8x16xf32>, vector<4x8x16xf32> -> vector<4x8x16xf32>
    "tpu.trace_stop"() : () -> ()
    %88 = vector.broadcast %86 : vector<4x8x1xf32> to vector<4x8x16xf32>
    %89 = arith.divf %87, %88 : vector<4x8x16xf32>
    %90 = vector.extract_strided_slice %32 {offsets = [0, 0, 48], sizes = [4, 8, 16], strides = [1, 1, 1]} : vector<4x8x192xf32> to vector<4x8x16xf32>
    %91 = vector.extract_strided_slice %32 {offsets = [0, 0, 112], sizes = [4, 8, 16], strides = [1, 1, 1]} : vector<4x8x192xf32> to vector<4x8x16xf32>
    %92 = vector.extract_strided_slice %32 {offsets = [0, 0, 176], sizes = [4, 8, 16], strides = [1, 1, 1]} : vector<4x8x192xf32> to vector<4x8x16xf32>
    "tpu.trace_start"() <{level = 10 : i32, message = "bqd,bkd->bqk"}> : () -> ()
    %cst_25 = arith.constant dense<0.000000e+00> : vector<4x8x8xf32>
    %93 = tpu.matmul %90, %91, %cst_25 {dimension_numbers = #tpu.dot_dimension_numbers<[2], [2], [1], [1], [0, 0, 0, 1, 1, 1], [0], [0]>} : vector<4x8x16xf32>, vector<4x8x16xf32>, vector<4x8x8xf32> -> vector<4x8x8xf32>
    "tpu.trace_stop"() : () -> ()
    %94 = vector.shape_cast %38 : vector<8x8xf32> to vector<1x8x8xf32>
    %95 = vector.broadcast %94 : vector<1x8x8xf32> to vector<4x8x8xf32>
    %96 = arith.addf %93, %95 : vector<4x8x8xf32>
    %cst_26 = arith.constant dense<0xFF800000> : vector<4x8xf32>
    %97 = vector.multi_reduction <maximumf>, %96, %cst_26 [2] : vector<4x8x8xf32> to vector<4x8xf32>
    %98 = vector.shape_cast %97 : vector<4x8xf32> to vector<4x8x1xf32>
    %99 = vector.broadcast %98 : vector<4x8x1xf32> to vector<4x8x8xf32>
    %100 = arith.subf %96, %99 : vector<4x8x8xf32>
    %101 = math.exp %100 : vector<4x8x8xf32>
    %cst_27 = arith.constant dense<0.000000e+00> : vector<4x8xf32>
    %102 = vector.multi_reduction <add>, %101, %cst_27 [2] : vector<4x8x8xf32> to vector<4x8xf32>
    %103 = vector.shape_cast %102 : vector<4x8xf32> to vector<4x8x1xf32>
    "tpu.trace_start"() <{level = 10 : i32, message = "bqk,bkd->bqd"}> : () -> ()
    %cst_28 = arith.constant dense<0.000000e+00> : vector<4x8x16xf32>
    %104 = tpu.matmul %101, %92, %cst_28 {dimension_numbers = #tpu.dot_dimension_numbers<[2], [1], [1], [2], [0, 0, 0, 1, 1, 2], [0], [0]>} : vector<4x8x8xf32>, vector<4x8x16xf32>, vector<4x8x16xf32> -> vector<4x8x16xf32>
    "tpu.trace_stop"() : () -> ()
    %105 = vector.broadcast %103 : vector<4x8x1xf32> to vector<4x8x16xf32>
    %106 = arith.divf %104, %105 : vector<4x8x16xf32>
    %107 = tpu.concatenate %55, %72, %89, %106 in 2 : vector<4x8x16xf32>, vector<4x8x16xf32>, vector<4x8x16xf32>, vector<4x8x16xf32> -> vector<4x8x64xf32>
    %108 = vector.shape_cast %107 : vector<4x8x64xf32> to vector<32x64xf32>
    %c0_29 = arith.constant 0 : index
    %c0_30 = arith.constant 0 : index
    %109 = vector.load %arg3[%c0_29, %c0_30] : memref<64x64xf32, #tpu.memory_space<vmem>>, vector<64x64xf32>
    %cst_31 = arith.constant dense<0.000000e+00> : vector<32x64xf32>
    %110 = tpu.matmul %108, %109, %cst_31 {dimension_numbers = #tpu.dot_dimension_numbers<[1], [0], [0], [1], [0, 0, 1, 1], [], []>} : vector<32x64xf32>, vector<64x64xf32>, vector<32x64xf32> -> vector<32x64xf32>
    %111 = vector.broadcast %7 : vector<1x64xf32> to vector<32x64xf32>
    %112 = arith.addf %110, %111 : vector<32x64xf32>
    %113 = arith.addf %1, %112 : vector<32x64xf32>
    %cst_32 = arith.constant dense<0.000000e+00> : vector<32xf32>
    %114 = vector.multi_reduction <add>, %113, %cst_32 [1] : vector<32x64xf32> to vector<32xf32>
    %115 = vector.shape_cast %114 : vector<32xf32> to vector<32x1xf32>
    %cst_33 = arith.constant 6.400000e+01 : f32
    %116 = vector.broadcast %cst_33 : f32 to vector<32x1xf32>
    %117 = arith.divf %115, %116 : vector<32x1xf32>
    %118 = vector.broadcast %117 : vector<32x1xf32> to vector<32x64xf32>
    %119 = arith.subf %113, %118 : vector<32x64xf32>
    %120 = arith.mulf %119, %119 : vector<32x64xf32>
    %cst_34 = arith.constant dense<0.000000e+00> : vector<32xf32>
    %121 = vector.multi_reduction <add>, %120, %cst_34 [1] : vector<32x64xf32> to vector<32xf32>
    %122 = vector.shape_cast %121 : vector<32xf32> to vector<32x1xf32>
    %cst_35 = arith.constant 6.400000e+01 : f32
    %123 = vector.broadcast %cst_35 : f32 to vector<32x1xf32>
    %124 = arith.divf %122, %123 : vector<32x1xf32>
    %cst_36 = arith.constant 9.99999974E-6 : f32
    %125 = vector.broadcast %cst_36 : f32 to vector<32x1xf32>
    %126 = arith.addf %124, %125 : vector<32x1xf32>
    %127 = math.rsqrt %126 : vector<32x1xf32>
    %128 = vector.broadcast %127 : vector<32x1xf32> to vector<32x64xf32>
    %129 = arith.mulf %119, %128 : vector<32x64xf32>
    %130 = vector.broadcast %5 : vector<1x64xf32> to vector<32x64xf32>
    %131 = arith.mulf %129, %130 : vector<32x64xf32>
    %132 = vector.broadcast %6 : vector<1x64xf32> to vector<32x64xf32>
    %133 = arith.addf %131, %132 : vector<32x64xf32>
    %c0_37 = arith.constant 0 : index
    %c0_38 = arith.constant 0 : index
    %134 = vector.load %arg4[%c0_37, %c0_38] : memref<64x256xf32, #tpu.memory_space<vmem>>, vector<64x256xf32>
    %cst_39 = arith.constant dense<0.000000e+00> : vector<32x256xf32>
    %135 = tpu.matmul %133, %134, %cst_39 {dimension_numbers = #tpu.dot_dimension_numbers<[1], [0], [0], [1], [0, 0, 1, 1], [], []>} : vector<32x64xf32>, vector<64x256xf32>, vector<32x256xf32> -> vector<32x256xf32>
    %136 = vector.broadcast %9 : vector<1x256xf32> to vector<32x256xf32>
    %137 = arith.addf %135, %136 : vector<32x256xf32>
    %cst_40 = arith.constant 0.000000e+00 : f32
    %138 = vector.broadcast %cst_40 : f32 to vector<32x256xf32>
    %139 = arith.maximumf %137, %138 : vector<32x256xf32>
    %c0_41 = arith.constant 0 : index
    %c0_42 = arith.constant 0 : index
    %140 = vector.load %arg5[%c0_41, %c0_42] : memref<256x64xf32, #tpu.memory_space<vmem>>, vector<256x64xf32>
    %cst_43 = arith.constant dense<0.000000e+00> : vector<32x64xf32>
    %141 = tpu.matmul %139, %140, %cst_43 {dimension_numbers = #tpu.dot_dimension_numbers<[1], [0], [0], [1], [0, 0, 1, 1], [], []>} : vector<32x256xf32>, vector<256x64xf32>, vector<32x64xf32> -> vector<32x64xf32>
    %142 = vector.broadcast %8 : vector<1x64xf32> to vector<32x64xf32>
    %143 = arith.addf %141, %142 : vector<32x64xf32>
    %144 = arith.addf %113, %143 : vector<32x64xf32>
    %145 = vector.shape_cast %144 : vector<32x64xf32> to vector<4x8x64xf32>
    %c0_44 = arith.constant 0 : index
    %c0_45 = arith.constant 0 : index
    %c0_46 = arith.constant 0 : index
    %146 = vector.load %arg7[%c0_44, %c0_45, %c0_46] : memref<4x8x64xf32, #tpu.memory_space<vmem>>, vector<4x8x64xf32>
    tpu.vector_store %arg7[%c0_44, %c0_45, %c0_46], %145 {strides = array<i32>} : memref<4x8x64xf32, #tpu.memory_space<vmem>>, vector<4x8x64xf32>,
    return
  }
  func.func @transform_0(%arg0: i32) -> (i32, i32, i32) {
    %c0_i32 = arith.constant 0 : i32
    %c0_i32_0 = arith.constant 0 : i32
    %c0_i32_1 = arith.constant 0 : i32
    return %arg0, %c0_i32, %c0_i32_0 : i32, i32, i32
  }
  func.func @transform_1(%arg0: i32) -> (i32, i32) {
    %c0_i32 = arith.constant 0 : i32
    %c0_i32_0 = arith.constant 0 : i32
    %c0_i32_1 = arith.constant 0 : i32
    return %c0_i32, %c0_i32_0 : i32, i32
  }
  func.func @transform_2(%arg0: i32) -> (i32, i32) {
    %c0_i32 = arith.constant 0 : i32
    %c0_i32_0 = arith.constant 0 : i32
    %c0_i32_1 = arith.constant 0 : i32
    return %c0_i32, %c0_i32_0 : i32, i32
  }
  func.func @transform_3(%arg0: i32) -> (i32, i32) {
    %c0_i32 = arith.constant 0 : i32
    %c0_i32_0 = arith.constant 0 : i32
    %c0_i32_1 = arith.constant 0 : i32
    return %c0_i32, %c0_i32_0 : i32, i32
  }
  func.func @transform_4(%arg0: i32) -> (i32, i32) {
    %c0_i32 = arith.constant 0 : i32
    %c0_i32_0 = arith.constant 0 : i32
    %c0_i32_1 = arith.constant 0 : i32
    return %c0_i32, %c0_i32_0 : i32, i32
  }
  func.func @transform_5(%arg0: i32) -> (i32, i32) {
    %c0_i32 = arith.constant 0 : i32
    %c0_i32_0 = arith.constant 0 : i32
    %c0_i32_1 = arith.constant 0 : i32
    return %c0_i32, %c0_i32_0 : i32, i32
  }
  func.func @transform_6(%arg0: i32) -> (i32, i32, i32) {
    %c0_i32 = arith.constant 0 : i32
    %c0_i32_0 = arith.constant 0 : i32
    %c0_i32_1 = arith.constant 0 : i32
    return %arg0, %c0_i32, %c0_i32_0 : i32, i32, i32
  }
}

</mosaic_0001>

<llo_original>
// kernel: tpu_custom_call.1
$region0: #{tpu_custom_call.1}
  #allocation0 [shape = 'u32[]', space=smem, size = 0x4, offset = 0x4, fixed_abs, tag = 'smem constant byte address 0x4 - core index']
  #allocation1 [shape = 'u32[144,128]{1,0:T(1,128)}', space=vmem, size = 0x12000, scoped, tag = 'internal scratch']
  %s0 = inlined_call_operand.vmem [shape: f32[8,8,64], index: 0, kind: input, shape index: {}]
  %s1 = inlined_call_operand.vmem [shape: f32[64,192], index: 1, kind: input, shape index: {}]
  %s2 = inlined_call_operand.vmem [shape: f32[64,64], index: 2, kind: input, shape index: {}]
  %s3 = inlined_call_operand.vmem [shape: f32[64,256], index: 3, kind: input, shape index: {}]
  %s4 = inlined_call_operand.vmem [shape: f32[256,64], index: 4, kind: input, shape index: {}]
  %s5 = inlined_call_operand.hbm [shape: f32[8,256], index: 5, kind: input, shape index: {}]
  %s6 = inlined_call_operand.hbm [shape: f32[8,8,64], index: 6, kind: output, shape index: {}]
  %s7 = sld [smem:[#allocation0]]
  $region61: #{tpu_custom_call.1} parent=0
    _
  %s9 = ssub.s32 1, %s7
  %s10 = scalar_select 0, %s9, %s7
  $region1: #{tpu_custom_call.1} parent=0
    #allocation2 [shape = 'u8[8192]{0}', space=vmem, size = 0x2000, scoped, tag = 'input window, operand 5, single buffered']
    #allocation3 [shape = 's32[2]{0}', space=sflag, size = 0x8, scoped, tag = 'scoped memory for tpu_custom_call.1']
    #allocation4 [shape = 's32[2]{0}', space=sflag, size = 0x8, scoped, tag = 'scoped memory for tpu_custom_call.1']
    #allocation5 [shape = 'u8[32768]{0}', space=vmem, size = 0x8000, scoped, tag = 'output window, operand 0']
    %11 = vsyncpa [#allocation3], 0
    %12 = vsyncpa [#allocation4], 0
    %s13 = scalar_lea.sflag [#allocation4], 1
    %14 = vsyncpa %s13, 0
    loop: start=0, step=1, limit=4
    $region2: #{tpu_custom_call.1} parent=1 // loop_pre_header
      _
    $region3: #{tpu_custom_call.1} parent=1 // loop_header
      %s16 = sphi 0, %s20
      %p17 = scmp.ge.s32.totalorder %s16, 4
      %s26 = sphi 0, %s28
      %s29 = sphi 0, %s26
      %s30 = sphi 0, %s29
      %s46 = sphi 0, %s30
      %s50 = sphi 0, %s50
      %s52 = sphi 0, %s50
      %s53 = sphi 0, %s52
      %s67 = sphi 0, %s53
      %s71 = sphi 0, %s71
      %s73 = sphi 0, %s71
      %s74 = sphi 0, %s73
      %s88 = sphi 0, %s74
      %s92 = sphi 0, %s92
      %s94 = sphi 0, %s92
      %s95 = sphi 0, %s94
      %s109 = sphi 0, %s95
      %s113 = sphi 0, %s113
      %s115 = sphi 0, %s113
      %s116 = sphi 0, %s115
      %s130 = sphi 0, %s116
      %s134 = sphi 0, %s134
      %s136 = sphi 0, %s134
      %s137 = sphi 0, %s136
      %s151 = sphi 0, %s137
      %s157 = sphi 0, %s159
      %s160 = sphi 0, %s157
      %s161 = sphi 0, %s160
      %s177 = sphi 0, %s161
    $region4: #{tpu_custom_call.1} parent=1 // loop_header_branch
      %19 = sbr.rel (%p17) target = $region8
    $region5: #{tpu_custom_call.1} parent=1 // loop_body
      %s21 = ssub.s32 %s16, 1
      %s22 = ssub.s32 %s16, 2
      %s23 = sadd.s32 %s16, 1
      %s24 = ssub.s32 %s16, %s23
      %p25 = scmp.eq.s32.totalorder %s24, 0
      %s27 = sadd.s32 %s26, 1
      %s28 = scalar_select %p25, %s26, %s27
      %p31 = pneg %p25
      %p32 = scmp.eq.s32.totalorder %s16, 1
      %p33 = por %p31, %p32
      %p34 = scmp.ne.s32.totalorder %s26, %s29
      %p35 = scmp.eq.s32.totalorder %s16, 0
      %p36 = por %p34, %p35
      %p37 = scmp.ne.s32.totalorder %s26, %s29
      %p38 = scmp.eq.s32.totalorder %s21, 1
      %p39 = por %p37, %p38
      %p40 = scmp.ne.s32.totalorder %s29, %s30
      %p41 = scmp.eq.s32.totalorder %s21, 0
      %p42 = por %p40, %p41
      %p43 = scmp.ne.s32.totalorder %s29, %s30
      %p44 = scmp.eq.s32.totalorder %s22, 1
      %p45 = por %p43, %p44
      %p47 = scmp.ne.s32.totalorder %s30, %s46
      %p48 = scmp.eq.s32.totalorder %s22, 0
      %p49 = por %p47, %p48
      %s51 = sadd.s32 %s50, 1
      %p54 = scmp.eq.s32.totalorder %s16, 1
      %p55 = scmp.ne.s32.totalorder %s50, %s52
      %p56 = scmp.eq.s32.totalorder %s16, 0
      %p57 = por %p55, %p56
      %p58 = scmp.ne.s32.totalorder %s50, %s52
      %p59 = scmp.eq.s32.totalorder %s21, 1
      %p60 = por %p58, %p59
      %p61 = scmp.ne.s32.totalorder %s52, %s53
      %p62 = scmp.eq.s32.totalorder %s21, 0
      %p63 = por %p61, %p62
      %p64 = scmp.ne.s32.totalorder %s52, %s53
      %p65 = scmp.eq.s32.totalorder %s22, 1
      %p66 = por %p64, %p65
      %p68 = scmp.ne.s32.totalorder %s53, %s67
      %p69 = scmp.eq.s32.totalorder %s22, 0
      %p70 = por %p68, %p69
      %s72 = sadd.s32 %s71, 1
      %p75 = scmp.eq.s32.totalorder %s16, 1
      %p76 = scmp.ne.s32.totalorder %s71, %s73
      %p77 = scmp.eq.s32.totalorder %s16, 0
      %p78 = por %p76, %p77
      %p79 = scmp.ne.s32.totalorder %s71, %s73
      %p80 = scmp.eq.s32.totalorder %s21, 1
      %p81 = por %p79, %p80
      %p82 = scmp.ne.s32.totalorder %s73, %s74
      %p83 = scmp.eq.s32.totalorder %s21, 0
      %p84 = por %p82, %p83
      %p85 = scmp.ne.s32.totalorder %s73, %s74
      %p86 = scmp.eq.s32.totalorder %s22, 1
      %p87 = por %p85, %p86
      %p89 = scmp.ne.s32.totalorder %s74, %s88
      %p90 = scmp.eq.s32.totalorder %s22, 0
      %p91 = por %p89, %p90
      %s93 = sadd.s32 %s92, 1
      %p96 = scmp.eq.s32.totalorder %s16, 1
      %p97 = scmp.ne.s32.totalorder %s92, %s94
      %p98 = scmp.eq.s32.totalorder %s16, 0
      %p99 = por %p97, %p98
      %p100 = scmp.ne.s32.totalorder %s92, %s94
      %p101 = scmp.eq.s32.totalorder %s21, 1
      %p102 = por %p100, %p101
      %p103 = scmp.ne.s32.totalorder %s94, %s95
      %p104 = scmp.eq.s32.totalorder %s21, 0
      %p105 = por %p103, %p104
      %p106 = scmp.ne.s32.totalorder %s94, %s95
      %p107 = scmp.eq.s32.totalorder %s22, 1
      %p108 = por %p106, %p107
      %p110 = scmp.ne.s32.totalorder %s95, %s109
      %p111 = scmp.eq.s32.totalorder %s22, 0
      %p112 = por %p110, %p111
      %s114 = sadd.s32 %s113, 1
      %p117 = scmp.eq.s32.totalorder %s16, 1
      %p118 = scmp.ne.s32.totalorder %s113, %s115
      %p119 = scmp.eq.s32.totalorder %s16, 0
      %p120 = por %p118, %p119
      %p121 = scmp.ne.s32.totalorder %s113, %s115
      %p122 = scmp.eq.s32.totalorder %s21, 1
      %p123 = por %p121, %p122
      %p124 = scmp.ne.s32.totalorder %s115, %s116
      %p125 = scmp.eq.s32.totalorder %s21, 0
      %p126 = por %p124, %p125
      %p127 = scmp.ne.s32.totalorder %s115, %s116
      %p128 = scmp.eq.s32.totalorder %s22, 1
      %p129 = por %p127, %p128
      %p131 = scmp.ne.s32.totalorder %s116, %s130
      %p132 = scmp.eq.s32.totalorder %s22, 0
      %p133 = por %p131, %p132
      %s135 = sadd.s32 %s134, 1
      %p138 = scmp.eq.s32.totalorder %s16, 1
      %p139 = scmp.ne.s32.totalorder %s134, %s136
      %p140 = scmp.eq.s32.totalorder %s16, 0
      %p141 = por %p139, %p140
      %p142 = scmp.ne.s32.totalorder %s134, %s136
      %p143 = scmp.eq.s32.totalorder %s21, 1
      %p144 = por %p142, %p143
      %p145 = scmp.ne.s32.totalorder %s136, %s137
      %p146 = scmp.eq.s32.totalorder %s21, 0
      %p147 = por %p145, %p146
      %p148 = scmp.ne.s32.totalorder %s136, %s137
      %p149 = scmp.eq.s32.totalorder %s22, 1
      %p150 = por %p148, %p149
      %p152 = scmp.ne.s32.totalorder %s137, %s151
      %p153 = scmp.eq.s32.totalorder %s22, 0
      %p154 = por %p152, %p153
      %s155 = ssub.s32 %s16, %s23
      %p156 = scmp.eq.s32.totalorder %s155, 0
      %s158 = sadd.s32 %s157, 1
      %s159 = scalar_select %p156, %s157, %s158
      %p162 = pneg %p156
      %p163 = scmp.eq.s32.totalorder %s16, 1
      %p164 = por %p162, %p163
      %p165 = scmp.ne.s32.totalorder %s157, %s160
      %p166 = scmp.eq.s32.totalorder %s16, 0
      %p167 = por %p165, %p166
      %p168 = scmp.ne.s32.totalorder %s157, %s160
      %p169 = scmp.eq.s32.totalorder %s21, 1
      %p170 = por %p168, %p169
      %p171 = scmp.ne.s32.totalorder %s160, %s161
      %p172 = scmp.eq.s32.totalorder %s21, 0
      %p173 = por %p171, %p172
      %p174 = scmp.ne.s32.totalorder %s160, %s161
      %p175 = scmp.eq.s32.totalorder %s22, 1
      %p176 = por %p174, %p175
      %p178 = scmp.ne.s32.totalorder %s161, %s177
      %p179 = scmp.eq.s32.totalorder %s22, 0
      %p180 = por %p178, %p179
      %p181 = scmp.le.s32.totalorder 1, %s16
      %p182 = scmp.lt.s32.totalorder %s16, 3
      %p183 = pnand %p181, %p182
      %p184 = pneg %p183
      // Predicated region
      $region9: #{tpu_custom_call.1} parent=5 // pred_check
        _
      $region10: #{tpu_custom_call.1} parent=5 // pred_check_branch
        %186 = sbr.rel (%p183) target = $region12
      $region11: #{tpu_custom_call.1} parent=5 // pred_region
        %s187 = ssub.s32 %s16, 1
        // Predicated region
        $region13: #{tpu_custom_call.1} parent=11 // pred_check
          %p188 = pneg %p63
        $region14: #{tpu_custom_call.1} parent=11 // pred_check_branch
          %190 = sbr.rel (%p188) target = $region16
        $region15: #{tpu_custom_call.1} parent=11 // pred_region
          _
        $region16: #{tpu_custom_call.1} parent=11 // pred_fallthru
          _
        // Predicated region
        $region17: #{tpu_custom_call.1} parent=11 // pred_check
          %p191 = pneg %p84
        $region18: #{tpu_custom_call.1} parent=11 // pred_check_branch
          %193 = sbr.rel (%p191) target = $region20
        $region19: #{tpu_custom_call.1} parent=11 // pred_region
          _
        $region20: #{tpu_custom_call.1} parent=11 // pred_fallthru
          _
        // Predicated region
        $region21: #{tpu_custom_call.1} parent=11 // pred_check
          %p194 = pneg %p105
        $region22: #{tpu_custom_call.1} parent=11 // pred_check_branch
          %196 = sbr.rel (%p194) target = $region24
        $region23: #{tpu_custom_call.1} parent=11 // pred_region
          _
        $region24: #{tpu_custom_call.1} parent=11 // pred_fallthru
          _
        // Predicated region
        $region25: #{tpu_custom_call.1} parent=11 // pred_check
          %p197 = pneg %p126
        $region26: #{tpu_custom_call.1} parent=11 // pred_check_branch
          %199 = sbr.rel (%p197) target = $region28
        $region27: #{tpu_custom_call.1} parent=11 // pred_region
          _
        $region28: #{tpu_custom_call.1} parent=11 // pred_fallthru
          _
        // Predicated region
        $region29: #{tpu_custom_call.1} parent=11 // pred_check
          %p200 = pneg %p147
        $region30: #{tpu_custom_call.1} parent=11 // pred_check_branch
          %202 = sbr.rel (%p200) target = $region32
        $region31: #{tpu_custom_call.1} parent=11 // pred_region
          %s204 = ssub.s32 256, 256
          %205 = vsyncadd [#allocation3], %s204
          %s207 = sshll.u32 [#allocation2], 4
          %s208 = int_to_ptr.vmem [resolvable:$true] %s207
          %210 = dma.hbm_to_vmem [thread:$0]  %s5, 256, %s208, [#allocation3]
        $region32: #{tpu_custom_call.1} parent=11 // pred_fallthru
          _
      $region12: #{tpu_custom_call.1} parent=5 // pred_fallthru
        _
      %p211 = scmp.lt.s32.totalorder %s16, 2
      // Predicated region
      $region33: #{tpu_custom_call.1} parent=5 // pred_check
        %p212 = pneg %p211
      $region34: #{tpu_custom_call.1} parent=5 // pred_check_branch
        %214 = sbr.rel (%p212) target = $region36
      $region35: #{tpu_custom_call.1} parent=5 // pred_region
        // Predicated region
        $region37: #{tpu_custom_call.1} parent=35 // pred_check
          %p215 = pneg %p36
        $region38: #{tpu_custom_call.1} parent=35 // pred_check_branch
          %217 = sbr.rel (%p215) target = $region40
        $region39: #{tpu_custom_call.1} parent=35 // pred_region
          %s218 = smul.u32 4, %s16
          %p219 = scmp.lt.s32.totalorder %s218, 7
          %s220 = scalar_select %p219, %s218, 7
          %s221 = smul.addr %s220, 8
          %s222 = scalar_lea.vmem %s0, %s221
          %s223 = smul.u32 4, %s16
        $region40: #{tpu_custom_call.1} parent=35 // pred_fallthru
          _
      $region36: #{tpu_custom_call.1} parent=5 // pred_fallthru
        _
      %p224 = scmp.le.s32.totalorder 1, %s16
      %p225 = scmp.lt.s32.totalorder %s16, 3
      %p226 = pnand %p224, %p225
      %p227 = pneg %p226
      // Predicated region
      $region41: #{tpu_custom_call.1} parent=5 // pred_check
        _
      $region42: #{tpu_custom_call.1} parent=5 // pred_check_branch
        %229 = sbr.rel (%p226) target = $region44
      $region43: #{tpu_custom_call.1} parent=5 // pred_region
        %s230 = ssub.s32 %s16, 1
        // Predicated region
        $region45: #{tpu_custom_call.1} parent=43 // pred_check
          %p231 = pneg %p147
        $region46: #{tpu_custom_call.1} parent=43 // pred_check_branch
          %233 = sbr.rel (%p231) target = $region48
        $region47: #{tpu_custom_call.1} parent=43 // pred_region
          %234 = dma.done [#allocation3], 256
        $region48: #{tpu_custom_call.1} parent=43 // pred_fallthru
          _
        %s235 = smul.u32 4, %s21
        %p236 = scmp.lt.s32.totalorder %s235, 7
        %s237 = scalar_select %p236, %s235, 7
        %s238 = smul.addr %s237, 8
        %s239 = scalar_lea.vmem %s0, %s238
        %p240 = pneg %p42
        %p241 = pneg %p39
        %p242 = pneg %p63
        %p243 = pneg %p60
        %p244 = pneg %p84
        %p245 = pneg %p81
        %p246 = pneg %p105
        %p247 = pneg %p102
        %p248 = pneg %p126
        %p249 = pneg %p123
        %p250 = pneg %p147
        %p251 = pneg %p144
        %p252 = pneg %p173
        %p253 = pneg %p170
        %s254 = sand.u32 %s160, 1
        %s255 = scalar_lea.sflag [#allocation4], %s254
        %s256 = sand.u32 %s160, 1
        %s257 = smul.addr %s256, 32
        %s258 = scalar_lea.vmem [#allocation5], %s257
        %s259 = smul.u32 4, %s21
        %p260 = scmp.lt.s32.totalorder %s259, 7
        %s261 = scalar_select %p260, %s259, 7
        %s262 = smul.addr %s261, 8
        %s263 = scalar_lea.vmem %s0, %s262
        %s264 = smul.u32 4, %s21
        %s265 = smul.u32 4, %s21
        %v266 = vld [vmem:[%s263] sm:$0xff]
        %v267 = vld [vmem:[%s263 + $0x8] sm:$0xff]
        %v268 = vld [vmem:[%s263 + $0x10] sm:$0xff]
        %v269 = vld [vmem:[%s263 + $0x18] sm:$0xff]
        %v270 = vld [vmem:[#allocation2] sm:$0xff]
        %v271 = vld [vmem:[#allocation2 + $0x8] sm:$0xff]
        %vm272 = vcmask 523264
        %v273 = vsel %vm272, %v266, 0.0
        %274 = vadd.xlane.f32.xlu0 %v273
        %v275 = vpop.xlane.xlu0 %274
        %v276 = vsel %vm272, %v267, 0.0
        %277 = vadd.xlane.f32.xlu0 %v276
        %v278 = vpop.xlane.xlu0 %277
        %v279 = vsel %vm272, %v268, 0.0
        %280 = vadd.xlane.f32.xlu0 %v279
        %v281 = vpop.xlane.xlu0 %280
        %v282 = vsel %vm272, %v269, 0.0
        %283 = vadd.xlane.f32.xlu0 %v282
        %v284 = vpop.xlane.xlu0 %283
        %v285 = vrcp.pop 64.0
        %v286 = vmul.f32 %v275, %v285
        %v287 = vmul.f32 %v278, %v285
        %v288 = vmul.f32 %v281, %v285
        %v289 = vmul.f32 %v284, %v285
        %v290 = vsub.f32 %v266, %v286
        %v291 = vsub.f32 %v267, %v287
        %v292 = vsub.f32 %v268, %v288
        %v293 = vsub.f32 %v269, %v289
        %v294 = vmul.f32 %v290, %v290
        %v295 = vmul.f32 %v291, %v291
        %v296 = vmul.f32 %v292, %v292
        %v297 = vmul.f32 %v293, %v293
        %v298 = vsel %vm272, %v294, 0.0
        %299 = vadd.xlane.f32.xlu0 %v298
        %v300 = vpop.xlane.xlu0 %299
        %v301 = vsel %vm272, %v295, 0.0
        %302 = vadd.xlane.f32.xlu0 %v301
        %v303 = vpop.xlane.xlu0 %302
        %v304 = vsel %vm272, %v296, 0.0
        %305 = vadd.xlane.f32.xlu0 %v304
        %v306 = vpop.xlane.xlu0 %305
        %v307 = vsel %vm272, %v297, 0.0
        %308 = vadd.xlane.f32.xlu0 %v307
        %v309 = vpop.xlane.xlu0 %308
        %v310 = vmul.f32 %v300, %v285
        %v311 = vmul.f32 %v303, %v285
        %v312 = vmul.f32 %v306, %v285
        %v313 = vmul.f32 %v309, %v285
        %v314 = vadd.f32 %v310, 1e-05
        %v315 = vadd.f32 %v311, 1e-05
        %v316 = vadd.f32 %v312, 1e-05
        %v317 = vadd.f32 %v313, 1e-05
        %v318 = vrsqrt.pop %v314
        %v319 = vrsqrt.pop %v315
        %v320 = vrsqrt.pop %v316
        %v321 = vrsqrt.pop %v317
        %v322 = vmul.f32 %v290, %v318
        %v323 = vmul.f32 %v291, %v319
        %v324 = vmul.f32 %v292, %v320
        %v325 = vmul.f32 %v293, %v321
        %v326 = vlaneseq
        %v327 = vshrl.u32 %v326, 7
        %v328 = vsub.s32 0, %v327
        %v329 = vrot.slane %v270, %v328
        %v330 = vmul.f32 %v322, %v329
        %v331 = vmul.f32 %v323, %v329
        %v332 = vmul.f32 %v324, %v329
        %v333 = vmul.f32 %v325, %v329
        %v334 = vlaneseq
        %v335 = vshrl.u32 %v334, 7
        %v336 = vsub.s32 1, %v335
        %v337 = vrot.slane %v270, %v336
        %v338 = vadd.f32 %v330, %v337
        %v339 = vadd.f32 %v331, %v337
        %v340 = vadd.f32 %v332, %v337
        %v341 = vadd.f32 %v333, %v337
        %v342 = vld [vmem:[%s1] sm:$0xff]
        %v343 = vld [vmem:[%s1 + $0x8] sm:$0xff]
        %v344 = vld [vmem:[%s1 + $0x10] sm:$0xff]
        %v345 = vld [vmem:[%s1 + $0x18] sm:$0xff]
        %v346 = vld [vmem:[%s1 + $0x20] sm:$0xff]
        %v347 = vld [vmem:[%s1 + $0x28] sm:$0xff]
        %v348 = vld [vmem:[%s1 + $0x30] sm:$0xff]
        %v349 = vld [vmem:[%s1 + $0x38] sm:$0xff]
        %v350 = vld [vmem:[%s1 + $0x40] sm:$0xff]
        %v351 = vld [vmem:[%s1 + $0x48] sm:$0xff]
        %v352 = vld [vmem:[%s1 + $0x50] sm:$0xff]
        %v353 = vld [vmem:[%s1 + $0x58] sm:$0xff]
        %v354 = vld [vmem:[%s1 + $0x60] sm:$0xff]
        %v355 = vld [vmem:[%s1 + $0x68] sm:$0xff]
        %v356 = vld [vmem:[%s1 + $0x70] sm:$0xff]
        %v357 = vld [vmem:[%s1 + $0x78] sm:$0xff]
        %v359 = vsel %vm272, %v338, 0
        %v362 = vsel %vm272, %v339, 0
        %v365 = vsel %vm272, %v340, 0
        %v368 = vsel %vm272, %v341, 0
        %370 = vmatprep.subr.mxu0 %v343
        %371 = vmatpush1.msra.mxu0 %v342
        %372 = vmatprep.subr.mxu0 %v345
        %373 = vmatpush1.msra.mxu0 %v344
        %374 = vmatprep.subr.mxu0 %v347
        %375 = vmatpush1.msra.mxu0 %v346
        %376 = vmatprep.subr.mxu0 %v349
        %377 = vmatpush1.msra.mxu0 %v348
        %378 = vmatprep.subr.mxu0 %v351
        %379 = vmatpush1.msra.mxu0 %v350
        %380 = vmatprep.subr.mxu0 %v353
        %381 = vmatpush1.msra.mxu0 %v352
        %382 = vmatprep.subr.mxu0 %v355
        %383 = vmatpush1.msra.mxu0 %v354
        %384 = vmatprep.subr.mxu0 %v357
        %385 = vmatpush1.msra.mxu0 %v356
        %386 = vmatprep.subr.mxu0 0.0
        %387 = vmatpush1.msra.mxu0 0.0
        %388 = vmatprep.subr.mxu0 0.0
        %389 = vmatpush1.msra.mxu0 0.0
        %390 = vmatprep.subr.mxu0 0.0
        %391 = vmatpush1.msra.mxu0 0.0
        %392 = vmatprep.subr.mxu0 0.0
        %393 = vmatpush1.msra.mxu0 0.0
        %394 = vmatprep.subr.mxu0 0.0
        %395 = vmatpush1.msra.mxu0 0.0
        %396 = vmatprep.subr.mxu0 0.0
        %397 = vmatpush1.msra.mxu0 0.0
        %398 = vmatprep.subr.mxu0 0.0
        %399 = vmatpush1.msra.mxu0 0.0
        %400 = vmatprep.subr.mxu0 0.0
        %401 = vmatpush1.msra.mxu0 0.0
        %402 = vmatprep.subr.mxu0 0.0
        %403 = vmatpush1.msra.mxu0 0.0
        %404 = vmatprep.subr.mxu0 0.0
        %405 = vmatpush1.msra.mxu0 0.0
        %406 = vmatprep.subr.mxu0 0.0
        %407 = vmatpush1.msra.mxu0 0.0
        %408 = vmatprep.subr.mxu0 0.0
        %409 = vmatpush1.msra.mxu0 0.0
        %410 = vmatprep.subr.mxu0 0.0
        %411 = vmatpush1.msra.mxu0 0.0
        %412 = vmatprep.subr.mxu0 0.0
        %413 = vmatpush1.msra.mxu0 0.0
        %414 = vmatprep.subr.mxu0 0.0
        %415 = vmatpush1.msra.mxu0 0.0
        %416 = vmatprep.subr.mxu0 0.0
        %417 = vmatpush1.msra.mxu0 0.0
        %418 = vmatprep.subr.mxu0 0.0
        %419 = vmatpush1.msra.mxu0 0.0
        %420 = vmatprep.subr.mxu0 0.0
        %421 = vmatpush1.msra.mxu0 0.0
        %422 = vmatprep.subr.mxu0 0.0
        %423 = vmatpush1.msra.mxu0 0.0
        %424 = vmatprep.subr.mxu0 0.0
        %425 = vmatpush1.msra.mxu0 0.0
        %426 = vmatprep.subr.mxu0 0.0
        %427 = vmatpush1.msra.mxu0 0.0
        %428 = vmatprep.subr.mxu0 0.0
        %429 = vmatpush1.msra.mxu0 0.0
        %430 = vmatprep.subr.mxu0 0.0
        %431 = vmatpush1.msra.mxu0 0.0
        %432 = vmatprep.subr.mxu0 0.0
        %433 = vmatpush1.msra.mxu0 0.0
        %434 = vmatprep.mubr.f32.mxu0 0.0
        %435 = vmatmul.mubr.f32.gmra.mrb[0].mxu0 %v359
        %v436 = vpop.f32.mrb[0].mxu0
        %v437 = vadd.f32 0.0, %v436
        %v438 = vpop.f32.mrb[0].mxu0
        %v439 = vadd.f32 0.0, %v438
        %440 = vmatprep.mubr.f32.mxu0 0.0
        %441 = vmatmul.mubr.f32.gmra.mrb[0].mxu0 %v362
        %v442 = vpop.f32.mrb[0].mxu0
        %v443 = vadd.f32 0.0, %v442
        %v444 = vpop.f32.mrb[0].mxu0
        %v445 = vadd.f32 0.0, %v444
        %446 = vmatprep.mubr.f32.mxu0 0.0
        %447 = vmatmul.mubr.f32.gmra.mrb[0].mxu0 %v365
        %v448 = vpop.f32.mrb[0].mxu0
        %v449 = vadd.f32 0.0, %v448
        %v450 = vpop.f32.mrb[0].mxu0
        %v451 = vadd.f32 0.0, %v450
        %452 = vmatprep.mubr.f32.mxu0 0.0
        %453 = vmatmul.mubr.f32.gmra.mrb[0].mxu0 %v368
        %v454 = vpop.f32.mrb[0].mxu0
        %v455 = vadd.f32 0.0, %v454
        %v456 = vpop.f32.mrb[0].mxu0
        %v457 = vadd.f32 0.0, %v456
        %458 = vdwg.mxu0
        %v459 = vlaneseq
        %v460 = vshrl.u32 %v459, 7
        %v461 = vlaneseq
        %v462 = vand.u32 %v461, 127
        %vm463 = vcmp.le.s32.totalorder %v462, %v460
        %v464 = vsel %vm463, 0.0, -1e+30
        %466 = vrot.lane.b32.xlu0 %v437, 64
        %v467 = vpop.permute.xlu0 %466
        %vm468 = vcmask 130048
        %v469 = vsel %vm468, %v437, 0
        %v471 = vsel %vm468, %v467, 0
        %473 = vmatprep.subr.mxu0 0.0
        %474 = vmatpush1.xpose.msra.mxu0 %v471
        %475 = vmatprep.subr.mxu0 0.0
        %476 = vmatpush1.xpose.msra.mxu0 0.0
        %477 = vmatprep.subr.mxu0 0.0
        %478 = vmatpush1.xpose.msra.mxu0 0.0
        %479 = vmatprep.subr.mxu0 0.0
        %480 = vmatpush1.xpose.msra.mxu0 0.0
        %481 = vmatprep.subr.mxu0 0.0
        %482 = vmatpush1.xpose.msra.mxu0 0.0
        %483 = vmatprep.subr.mxu0 0.0
        %484 = vmatpush1.xpose.msra.mxu0 0.0
        %485 = vmatprep.subr.mxu0 0.0
        %486 = vmatpush1.xpose.msra.mxu0 0.0
        %487 = vmatprep.subr.mxu0 0.0
        %488 = vmatpush1.xpose.msra.mxu0 0.0
        %489 = vmatprep.subr.mxu0 0.0
        %490 = vmatpush1.xpose.msra.mxu0 0.0
        %491 = vmatprep.subr.mxu0 0.0
        %492 = vmatpush1.xpose.msra.mxu0 0.0
        %493 = vmatprep.subr.mxu0 0.0
        %494 = vmatpush1.xpose.msra.mxu0 0.0
        %495 = vmatprep.subr.mxu0 0.0
        %496 = vmatpush1.xpose.msra.mxu0 0.0
        %497 = vmatprep.subr.mxu0 0.0
        %498 = vmatpush1.xpose.msra.mxu0 0.0
        %499 = vmatprep.subr.mxu0 0.0
        %500 = vmatpush1.xpose.msra.mxu0 0.0
        %501 = vmatprep.subr.mxu0 0.0
        %502 = vmatpush1.xpose.msra.mxu0 0.0
        %503 = vmatprep.subr.mxu0 0.0
        %504 = vmatpush1.xpose.msra.mxu0 0.0
        %505 = vmatprep.subr.mxu0 0.0
        %506 = vmatpush1.xpose.msra.mxu0 0.0
        %507 = vmatprep.subr.mxu0 0.0
        %508 = vmatpush1.xpose.msra.mxu0 0.0
        %509 = vmatprep.subr.mxu0 0.0
        %510 = vmatpush1.xpose.msra.mxu0 0.0
        %511 = vmatprep.subr.mxu0 0.0
        %512 = vmatpush1.xpose.msra.mxu0 0.0
        %513 = vmatprep.subr.mxu0 0.0
        %514 = vmatpush1.xpose.msra.mxu0 0.0
        %515 = vmatprep.subr.mxu0 0.0
        %516 = vmatpush1.xpose.msra.mxu0 0.0
        %517 = vmatprep.subr.mxu0 0.0
        %518 = vmatpush1.xpose.msra.mxu0 0.0
        %519 = vmatprep.subr.mxu0 0.0
        %520 = vmatpush1.xpose.msra.mxu0 0.0
        %521 = vmatprep.subr.mxu0 0.0
        %522 = vmatpush1.xpose.msra.mxu0 0.0
        %523 = vmatprep.subr.mxu0 0.0
        %524 = vmatpush1.xpose.msra.mxu0 0.0
        %525 = vmatprep.subr.mxu0 0.0
        %526 = vmatpush1.xpose.msra.mxu0 0.0
        %527 = vmatprep.subr.mxu0 0.0
        %528 = vmatpush1.xpose.msra.mxu0 0.0
        %529 = vmatprep.subr.mxu0 0.0
        %530 = vmatpush1.xpose.msra.mxu0 0.0
        %531 = vmatprep.subr.mxu0 0.0
        %532 = vmatpush1.xpose.msra.mxu0 0.0
        %533 = vmatprep.subr.mxu0 0.0
        %534 = vmatpush1.xpose.msra.mxu0 0.0
        %535 = vmatprep.subr.mxu0 0.0
        %536 = vmatpush1.xpose.msra.mxu0 0.0
        %537 = vmatprep.mubr.f32.mxu0 0.0
        %538 = vmatmul.mubr.f32.gmra.mrb[0].mxu0 %v469
        %v539 = vpop.f32.mrb[0].mxu0
        %v540 = vadd.f32 %v464, %v539
        %v541 = vpop.f32.mrb[0].mxu0
        %542 = vdwg.mxu0
        %544 = vrot.lane.b32.xlu0 %v443, 64
        %v545 = vpop.permute.xlu0 %544
        %v546 = vsel %vm468, %v443, 0
        %v548 = vsel %vm468, %v545, 0
        %550 = vmatprep.subr.mxu0 0.0
        %551 = vmatpush1.xpose.msra.mxu0 %v548
        %552 = vmatprep.subr.mxu0 0.0
        %553 = vmatpush1.xpose.msra.mxu0 0.0
        %554 = vmatprep.subr.mxu0 0.0
        %555 = vmatpush1.xpose.msra.mxu0 0.0
        %556 = vmatprep.subr.mxu0 0.0
        %557 = vmatpush1.xpose.msra.mxu0 0.0
        %558 = vmatprep.subr.mxu0 0.0
        %559 = vmatpush1.xpose.msra.mxu0 0.0
        %560 = vmatprep.subr.mxu0 0.0
        %561 = vmatpush1.xpose.msra.mxu0 0.0
        %562 = vmatprep.subr.mxu0 0.0
        %563 = vmatpush1.xpose.msra.mxu0 0.0
        %564 = vmatprep.subr.mxu0 0.0
        %565 = vmatpush1.xpose.msra.mxu0 0.0
        %566 = vmatprep.subr.mxu0 0.0
        %567 = vmatpush1.xpose.msra.mxu0 0.0
        %568 = vmatprep.subr.mxu0 0.0
        %569 = vmatpush1.xpose.msra.mxu0 0.0
        %570 = vmatprep.subr.mxu0 0.0
        %571 = vmatpush1.xpose.msra.mxu0 0.0
        %572 = vmatprep.subr.mxu0 0.0
        %573 = vmatpush1.xpose.msra.mxu0 0.0
        %574 = vmatprep.subr.mxu0 0.0
        %575 = vmatpush1.xpose.msra.mxu0 0.0
        %576 = vmatprep.subr.mxu0 0.0
        %577 = vmatpush1.xpose.msra.mxu0 0.0
        %578 = vmatprep.subr.mxu0 0.0
        %579 = vmatpush1.xpose.msra.mxu0 0.0
        %580 = vmatprep.subr.mxu0 0.0
        %581 = vmatpush1.xpose.msra.mxu0 0.0
        %582 = vmatprep.subr.mxu0 0.0
        %583 = vmatpush1.xpose.msra.mxu0 0.0
        %584 = vmatprep.subr.mxu0 0.0
        %585 = vmatpush1.xpose.msra.mxu0 0.0
        %586 = vmatprep.subr.mxu0 0.0
        %587 = vmatpush1.xpose.msra.mxu0 0.0
        %588 = vmatprep.subr.mxu0 0.0
        %589 = vmatpush1.xpose.msra.mxu0 0.0
        %590 = vmatprep.subr.mxu0 0.0
        %591 = vmatpush1.xpose.msra.mxu0 0.0
        %592 = vmatprep.subr.mxu0 0.0
        %593 = vmatpush1.xpose.msra.mxu0 0.0
        %594 = vmatprep.subr.mxu0 0.0
        %595 = vmatpush1.xpose.msra.mxu0 0.0
        %596 = vmatprep.subr.mxu0 0.0
        %597 = vmatpush1.xpose.msra.mxu0 0.0
        %598 = vmatprep.subr.mxu0 0.0
        %599 = vmatpush1.xpose.msra.mxu0 0.0
        %600 = vmatprep.subr.mxu0 0.0
        %601 = vmatpush1.xpose.msra.mxu0 0.0
        %602 = vmatprep.subr.mxu0 0.0
        %603 = vmatpush1.xpose.msra.mxu0 0.0
        %604 = vmatprep.subr.mxu0 0.0
        %605 = vmatpush1.xpose.msra.mxu0 0.0
        %606 = vmatprep.subr.mxu0 0.0
        %607 = vmatpush1.xpose.msra.mxu0 0.0
        %608 = vmatprep.subr.mxu0 0.0
        %609 = vmatpush1.xpose.msra.mxu0 0.0
        %610 = vmatprep.subr.mxu0 0.0
        %611 = vmatpush1.xpose.msra.mxu0 0.0
        %612 = vmatprep.subr.mxu0 0.0
        %613 = vmatpush1.xpose.msra.mxu0 0.0
        %614 = vmatprep.mubr.f32.mxu0 0.0
        %615 = vmatmul.mubr.f32.gmra.mrb[0].mxu0 %v546
        %v616 = vpop.f32.mrb[0].mxu0
        %v617 = vadd.f32 %v464, %v616
        %v618 = vpop.f32.mrb[0].mxu0
        %619 = vdwg.mxu0
        %621 = vrot.lane.b32.xlu0 %v449, 64
        %v622 = vpop.permute.xlu0 %621
        %v623 = vsel %vm468, %v449, 0
        %v625 = vsel %vm468, %v622, 0
        %627 = vmatprep.subr.mxu0 0.0
        %628 = vmatpush1.xpose.msra.mxu0 %v625
        %629 = vmatprep.subr.mxu0 0.0
        %630 = vmatpush1.xpose.msra.mxu0 0.0
        %631 = vmatprep.subr.mxu0 0.0
        %632 = vmatpush1.xpose.msra.mxu0 0.0
        %633 = vmatprep.subr.mxu0 0.0
        %634 = vmatpush1.xpose.msra.mxu0 0.0
        %635 = vmatprep.subr.mxu0 0.0
        %636 = vmatpush1.xpose.msra.mxu0 0.0
        %637 = vmatprep.subr.mxu0 0.0
        %638 = vmatpush1.xpose.msra.mxu0 0.0
        %639 = vmatprep.subr.mxu0 0.0
        %640 = vmatpush1.xpose.msra.mxu0 0.0
        %641 = vmatprep.subr.mxu0 0.0
        %642 = vmatpush1.xpose.msra.mxu0 0.0
        %643 = vmatprep.subr.mxu0 0.0
        %644 = vmatpush1.xpose.msra.mxu0 0.0
        %645 = vmatprep.subr.mxu0 0.0
        %646 = vmatpush1.xpose.msra.mxu0 0.0
        %647 = vmatprep.subr.mxu0 0.0
        %648 = vmatpush1.xpose.msra.mxu0 0.0
        %649 = vmatprep.subr.mxu0 0.0
        %650 = vmatpush1.xpose.msra.mxu0 0.0
        %651 = vmatprep.subr.mxu0 0.0
        %652 = vmatpush1.xpose.msra.mxu0 0.0
        %653 = vmatprep.subr.mxu0 0.0
        %654 = vmatpush1.xpose.msra.mxu0 0.0
        %655 = vmatprep.subr.mxu0 0.0
        %656 = vmatpush1.xpose.msra.mxu0 0.0
        %657 = vmatprep.subr.mxu0 0.0
        %658 = vmatpush1.xpose.msra.mxu0 0.0
        %659 = vmatprep.subr.mxu0 0.0
        %660 = vmatpush1.xpose.msra.mxu0 0.0
        %661 = vmatprep.subr.mxu0 0.0
        %662 = vmatpush1.xpose.msra.mxu0 0.0
        %663 = vmatprep.subr.mxu0 0.0
        %664 = vmatpush1.xpose.msra.mxu0 0.0
        %665 = vmatprep.subr.mxu0 0.0
        %666 = vmatpush1.xpose.msra.mxu0 0.0
        %667 = vmatprep.subr.mxu0 0.0
        %668 = vmatpush1.xpose.msra.mxu0 0.0
        %669 = vmatprep.subr.mxu0 0.0
        %670 = vmatpush1.xpose.msra.mxu0 0.0
        %671 = vmatprep.subr.mxu0 0.0
        %672 = vmatpush1.xpose.msra.mxu0 0.0
        %673 = vmatprep.subr.mxu0 0.0
        %674 = vmatpush1.xpose.msra.mxu0 0.0
        %675 = vmatprep.subr.mxu0 0.0
        %676 = vmatpush1.xpose.msra.mxu0 0.0
        %677 = vmatprep.subr.mxu0 0.0
        %678 = vmatpush1.xpose.msra.mxu0 0.0
        %679 = vmatprep.subr.mxu0 0.0
        %680 = vmatpush1.xpose.msra.mxu0 0.0
        %681 = vmatprep.subr.mxu0 0.0
        %682 = vmatpush1.xpose.msra.mxu0 0.0
        %683 = vmatprep.subr.mxu0 0.0
        %684 = vmatpush1.xpose.msra.mxu0 0.0
        %685 = vmatprep.subr.mxu0 0.0
        %686 = vmatpush1.xpose.msra.mxu0 0.0
        %687 = vmatprep.subr.mxu0 0.0
        %688 = vmatpush1.xpose.msra.mxu0 0.0
        %689 = vmatprep.subr.mxu0 0.0
        %690 = vmatpush1.xpose.msra.mxu0 0.0
        %691 = vmatprep.mubr.f32.mxu0 0.0
        %692 = vmatmul.mubr.f32.gmra.mrb[0].mxu0 %v623
        %v693 = vpop.f32.mrb[0].mxu0
        %v694 = vadd.f32 %v464, %v693
        %v695 = vpop.f32.mrb[0].mxu0
        %696 = vdwg.mxu0
        %698 = vrot.lane.b32.xlu0 %v455, 64
        %v699 = vpop.permute.xlu0 %698
        %v700 = vsel %vm468, %v455, 0
        %v702 = vsel %vm468, %v699, 0
        %704 = vmatprep.subr.mxu0 0.0
        %705 = vmatpush1.xpose.msra.mxu0 %v702
        %706 = vmatprep.subr.mxu0 0.0
        %707 = vmatpush1.xpose.msra.mxu0 0.0
        %708 = vmatprep.subr.mxu0 0.0
        %709 = vmatpush1.xpose.msra.mxu0 0.0
        %710 = vmatprep.subr.mxu0 0.0
        %711 = vmatpush1.xpose.msra.mxu0 0.0
        %712 = vmatprep.subr.mxu0 0.0
        %713 = vmatpush1.xpose.msra.mxu0 0.0
        %714 = vmatprep.subr.mxu0 0.0
        %715 = vmatpush1.xpose.msra.mxu0 0.0
        %716 = vmatprep.subr.mxu0 0.0
        %717 = vmatpush1.xpose.msra.mxu0 0.0
        %718 = vmatprep.subr.mxu0 0.0
        %719 = vmatpush1.xpose.msra.mxu0 0.0
        %720 = vmatprep.subr.mxu0 0.0
        %721 = vmatpush1.xpose.msra.mxu0 0.0
        %722 = vmatprep.subr.mxu0 0.0
        %723 = vmatpush1.xpose.msra.mxu0 0.0
        %724 = vmatprep.subr.mxu0 0.0
        %725 = vmatpush1.xpose.msra.mxu0 0.0
        %726 = vmatprep.subr.mxu0 0.0
        %727 = vmatpush1.xpose.msra.mxu0 0.0
        %728 = vmatprep.subr.mxu0 0.0
        %729 = vmatpush1.xpose.msra.mxu0 0.0
        %730 = vmatprep.subr.mxu0 0.0
        %731 = vmatpush1.xpose.msra.mxu0 0.0
        %732 = vmatprep.subr.mxu0 0.0
        %733 = vmatpush1.xpose.msra.mxu0 0.0
        %734 = vmatprep.subr.mxu0 0.0
        %735 = vmatpush1.xpose.msra.mxu0 0.0
        %736 = vmatprep.subr.mxu0 0.0
        %737 = vmatpush1.xpose.msra.mxu0 0.0
        %738 = vmatprep.subr.mxu0 0.0
        %739 = vmatpush1.xpose.msra.mxu0 0.0
        %740 = vmatprep.subr.mxu0 0.0
        %741 = vmatpush1.xpose.msra.mxu0 0.0
        %742 = vmatprep.subr.mxu0 0.0
        %743 = vmatpush1.xpose.msra.mxu0 0.0
        %744 = vmatprep.subr.mxu0 0.0
        %745 = vmatpush1.xpose.msra.mxu0 0.0
        %746 = vmatprep.subr.mxu0 0.0
        %747 = vmatpush1.xpose.msra.mxu0 0.0
        %748 = vmatprep.subr.mxu0 0.0
        %749 = vmatpush1.xpose.msra.mxu0 0.0
        %750 = vmatprep.subr.mxu0 0.0
        %751 = vmatpush1.xpose.msra.mxu0 0.0
        %752 = vmatprep.subr.mxu0 0.0
        %753 = vmatpush1.xpose.msra.mxu0 0.0
        %754 = vmatprep.subr.mxu0 0.0
        %755 = vmatpush1.xpose.msra.mxu0 0.0
        %756 = vmatprep.subr.mxu0 0.0
        %757 = vmatpush1.xpose.msra.mxu0 0.0
        %758 = vmatprep.subr.mxu0 0.0
        %759 = vmatpush1.xpose.msra.mxu0 0.0
        %760 = vmatprep.subr.mxu0 0.0
        %761 = vmatpush1.xpose.msra.mxu0 0.0
        %762 = vmatprep.subr.mxu0 0.0
        %763 = vmatpush1.xpose.msra.mxu0 0.0
        %764 = vmatprep.subr.mxu0 0.0
        %765 = vmatpush1.xpose.msra.mxu0 0.0
        %766 = vmatprep.subr.mxu0 0.0
        %767 = vmatpush1.xpose.msra.mxu0 0.0
        %768 = vmatprep.mubr.f32.mxu0 0.0
        %769 = vmatmul.mubr.f32.gmra.mrb[0].mxu0 %v700
        %v770 = vpop.f32.mrb[0].mxu0
        %v771 = vadd.f32 %v464, %v770
        %v772 = vpop.f32.mrb[0].mxu0
        %773 = vdwg.mxu0
        %vm774 = vcmask 64512
        %v775 = vsel %vm774, %v540, -inf
        %776 = vmax.xlane.f32.xlu0 %v775
        %v777 = vpop.xlane.xlu0 %776
        %v778 = vsel %vm774, %v617, -inf
        %779 = vmax.xlane.f32.xlu0 %v778
        %v780 = vpop.xlane.xlu0 %779
        %v781 = vsel %vm774, %v694, -inf
        %782 = vmax.xlane.f32.xlu0 %v781
        %v783 = vpop.xlane.xlu0 %782
        %v784 = vsel %vm774, %v771, -inf
        %785 = vmax.xlane.f32.xlu0 %v784
        %v786 = vpop.xlane.xlu0 %785
        %v787 = vsub.f32 %v540, %v777
        %v788 = vsub.f32 %v617, %v780
        %v789 = vsub.f32 %v694, %v783
        %v790 = vsub.f32 %v771, %v786
        %v791 = vmul.f32 %v787, 1.442695
        %v792 = vpow.pop %v791
        %v793 = vmul.f32 %v788, 1.442695
        %v794 = vpow.pop %v793
        %v795 = vmul.f32 %v789, 1.442695
        %v796 = vpow.pop %v795
        %v797 = vmul.f32 %v790, 1.442695
        %v798 = vpow.pop %v797
        %v799 = vsel %vm774, %v792, 0.0
        %800 = vadd.xlane.f32.xlu0 %v799
        %v801 = vpop.xlane.xlu0 %800
        %v802 = vsel %vm774, %v794, 0.0
        %803 = vadd.xlane.f32.xlu0 %v802
        %v804 = vpop.xlane.xlu0 %803
        %v805 = vsel %vm774, %v796, 0.0
        %806 = vadd.xlane.f32.xlu0 %v805
        %v807 = vpop.xlane.xlu0 %806
        %v808 = vsel %vm774, %v798, 0.0
        %809 = vadd.xlane.f32.xlu0 %v808
        %v810 = vpop.xlane.xlu0 %809
        %v812 = vsel %vm774, %v792, 0
        %814 = vmatprep.subr.mxu0 0.0
        %815 = vmatpush1.msra.mxu0 %v439
        %816 = vmatprep.subr.mxu0 0.0
        %817 = vmatpush1.msra.mxu0 0.0
        %818 = vmatprep.subr.mxu0 0.0
        %819 = vmatpush1.msra.mxu0 0.0
        %820 = vmatprep.subr.mxu0 0.0
        %821 = vmatpush1.msra.mxu0 0.0
        %822 = vmatprep.subr.mxu0 0.0
        %823 = vmatpush1.msra.mxu0 0.0
        %824 = vmatprep.subr.mxu0 0.0
        %825 = vmatpush1.msra.mxu0 0.0
        %826 = vmatprep.subr.mxu0 0.0
        %827 = vmatpush1.msra.mxu0 0.0
        %828 = vmatprep.subr.mxu0 0.0
        %829 = vmatpush1.msra.mxu0 0.0
        %830 = vmatprep.subr.mxu0 0.0
        %831 = vmatpush1.msra.mxu0 0.0
        %832 = vmatprep.subr.mxu0 0.0
        %833 = vmatpush1.msra.mxu0 0.0
        %834 = vmatprep.subr.mxu0 0.0
        %835 = vmatpush1.msra.mxu0 0.0
        %836 = vmatprep.subr.mxu0 0.0
        %837 = vmatpush1.msra.mxu0 0.0
        %838 = vmatprep.subr.mxu0 0.0
        %839 = vmatpush1.msra.mxu0 0.0
        %840 = vmatprep.subr.mxu0 0.0
        %841 = vmatpush1.msra.mxu0 0.0
        %842 = vmatprep.subr.mxu0 0.0
        %843 = vmatpush1.msra.mxu0 0.0
        %844 = vmatprep.subr.mxu0 0.0
        %845 = vmatpush1.msra.mxu0 0.0
        %846 = vmatprep.subr.mxu0 0.0
        %847 = vmatpush1.msra.mxu0 0.0
        %848 = vmatprep.subr.mxu0 0.0
        %849 = vmatpush1.msra.mxu0 0.0
        %850 = vmatprep.subr.mxu0 0.0
        %851 = vmatpush1.msra.mxu0 0.0
        %852 = vmatprep.subr.mxu0 0.0
        %853 = vmatpush1.msra.mxu0 0.0
        %854 = vmatprep.subr.mxu0 0.0
        %855 = vmatpush1.msra.mxu0 0.0
        %856 = vmatprep.subr.mxu0 0.0
        %857 = vmatpush1.msra.mxu0 0.0
        %858 = vmatprep.subr.mxu0 0.0
        %859 = vmatpush1.msra.mxu0 0.0
        %860 = vmatprep.subr.mxu0 0.0
        %861 = vmatpush1.msra.mxu0 0.0
        %862 = vmatprep.subr.mxu0 0.0
        %863 = vmatpush1.msra.mxu0 0.0
        %864 = vmatprep.subr.mxu0 0.0
        %865 = vmatpush1.msra.mxu0 0.0
        %866 = vmatprep.subr.mxu0 0.0
        %867 = vmatpush1.msra.mxu0 0.0
        %868 = vmatprep.subr.mxu0 0.0
        %869 = vmatpush1.msra.mxu0 0.0
        %870 = vmatprep.subr.mxu0 0.0
        %871 = vmatpush1.msra.mxu0 0.0
        %872 = vmatprep.subr.mxu0 0.0
        %873 = vmatpush1.msra.mxu0 0.0
        %874 = vmatprep.subr.mxu0 0.0
        %875 = vmatpush1.msra.mxu0 0.0
        %876 = vmatprep.subr.mxu0 0.0
        %877 = vmatpush1.msra.mxu0 0.0
        %878 = vmatprep.mubr.f32.mxu0 0.0
        %879 = vmatmul.mubr.f32.gmra.mrb[0].mxu0 %v812
        %v880 = vpop.f32.mrb[0].mxu0
        %v881 = vadd.f32 0.0, %v880
        %v882 = vpop.f32.mrb[0].mxu0
        %883 = vdwg.mxu0
        %v885 = vsel %vm774, %v794, 0
        %887 = vmatprep.subr.mxu0 0.0
        %888 = vmatpush1.msra.mxu0 %v445
        %889 = vmatprep.subr.mxu0 0.0
        %890 = vmatpush1.msra.mxu0 0.0
        %891 = vmatprep.subr.mxu0 0.0
        %892 = vmatpush1.msra.mxu0 0.0
        %893 = vmatprep.subr.mxu0 0.0
        %894 = vmatpush1.msra.mxu0 0.0
        %895 = vmatprep.subr.mxu0 0.0
        %896 = vmatpush1.msra.mxu0 0.0
        %897 = vmatprep.subr.mxu0 0.0
        %898 = vmatpush1.msra.mxu0 0.0
        %899 = vmatprep.subr.mxu0 0.0
        %900 = vmatpush1.msra.mxu0 0.0
        %901 = vmatprep.subr.mxu0 0.0
        %902 = vmatpush1.msra.mxu0 0.0
        %903 = vmatprep.subr.mxu0 0.0
        %904 = vmatpush1.msra.mxu0 0.0
        %905 = vmatprep.subr.mxu0 0.0
        %906 = vmatpush1.msra.mxu0 0.0
        %907 = vmatprep.subr.mxu0 0.0
        %908 = vmatpush1.msra.mxu0 0.0
        %909 = vmatprep.subr.mxu0 0.0
        %910 = vmatpush1.msra.mxu0 0.0
        %911 = vmatprep.subr.mxu0 0.0
        %912 = vmatpush1.msra.mxu0 0.0
        %913 = vmatprep.subr.mxu0 0.0
        %914 = vmatpush1.msra.mxu0 0.0
        %915 = vmatprep.subr.mxu0 0.0
        %916 = vmatpush1.msra.mxu0 0.0
        %917 = vmatprep.subr.mxu0 0.0
        %918 = vmatpush1.msra.mxu0 0.0
        %919 = vmatprep.subr.mxu0 0.0
        %920 = vmatpush1.msra.mxu0 0.0
        %921 = vmatprep.subr.mxu0 0.0
        %922 = vmatpush1.msra.mxu0 0.0
        %923 = vmatprep.subr.mxu0 0.0
        %924 = vmatpush1.msra.mxu0 0.0
        %925 = vmatprep.subr.mxu0 0.0
        %926 = vmatpush1.msra.mxu0 0.0
        %927 = vmatprep.subr.mxu0 0.0
        %928 = vmatpush1.msra.mxu0 0.0
        %929 = vmatprep.subr.mxu0 0.0
        %930 = vmatpush1.msra.mxu0 0.0
        %931 = vmatprep.subr.mxu0 0.0
        %932 = vmatpush1.msra.mxu0 0.0
        %933 = vmatprep.subr.mxu0 0.0
        %934 = vmatpush1.msra.mxu0 0.0
        %935 = vmatprep.subr.mxu0 0.0
        %936 = vmatpush1.msra.mxu0 0.0
        %937 = vmatprep.subr.mxu0 0.0
        %938 = vmatpush1.msra.mxu0 0.0
        %939 = vmatprep.subr.mxu0 0.0
        %940 = vmatpush1.msra.mxu0 0.0
        %941 = vmatprep.subr.mxu0 0.0
        %942 = vmatpush1.msra.mxu0 0.0
        %943 = vmatprep.subr.mxu0 0.0
        %944 = vmatpush1.msra.mxu0 0.0
        %945 = vmatprep.subr.mxu0 0.0
        %946 = vmatpush1.msra.mxu0 0.0
        %947 = vmatprep.subr.mxu0 0.0
        %948 = vmatpush1.msra.mxu0 0.0
        %949 = vmatprep.subr.mxu0 0.0
        %950 = vmatpush1.msra.mxu0 0.0
        %951 = vmatprep.mubr.f32.mxu0 0.0
        %952 = vmatmul.mubr.f32.gmra.mrb[0].mxu0 %v885
        %v953 = vpop.f32.mrb[0].mxu0
        %v954 = vadd.f32 0.0, %v953
        %v955 = vpop.f32.mrb[0].mxu0
        %956 = vdwg.mxu0
        %v958 = vsel %vm774, %v796, 0
        %960 = vmatprep.subr.mxu0 0.0
        %961 = vmatpush1.msra.mxu0 %v451
        %962 = vmatprep.subr.mxu0 0.0
        %963 = vmatpush1.msra.mxu0 0.0
        %964 = vmatprep.subr.mxu0 0.0
        %965 = vmatpush1.msra.mxu0 0.0
        %966 = vmatprep.subr.mxu0 0.0
        %967 = vmatpush1.msra.mxu0 0.0
        %968 = vmatprep.subr.mxu0 0.0
        %969 = vmatpush1.msra.mxu0 0.0
        %970 = vmatprep.subr.mxu0 0.0
        %971 = vmatpush1.msra.mxu0 0.0
        %972 = vmatprep.subr.mxu0 0.0
        %973 = vmatpush1.msra.mxu0 0.0
        %974 = vmatprep.subr.mxu0 0.0
        %975 = vmatpush1.msra.mxu0 0.0
        %976 = vmatprep.subr.mxu0 0.0
        %977 = vmatpush1.msra.mxu0 0.0
        %978 = vmatprep.subr.mxu0 0.0
        %979 = vmatpush1.msra.mxu0 0.0
        %980 = vmatprep.subr.mxu0 0.0
        %981 = vmatpush1.msra.mxu0 0.0
        %982 = vmatprep.subr.mxu0 0.0
        %983 = vmatpush1.msra.mxu0 0.0
        %984 = vmatprep.subr.mxu0 0.0
        %985 = vmatpush1.msra.mxu0 0.0
        %986 = vmatprep.subr.mxu0 0.0
        %987 = vmatpush1.msra.mxu0 0.0
        %988 = vmatprep.subr.mxu0 0.0
        %989 = vmatpush1.msra.mxu0 0.0
        %990 = vmatprep.subr.mxu0 0.0
        %991 = vmatpush1.msra.mxu0 0.0
        %992 = vmatprep.subr.mxu0 0.0
        %993 = vmatpush1.msra.mxu0 0.0
        %994 = vmatprep.subr.mxu0 0.0
        %995 = vmatpush1.msra.mxu0 0.0
        %996 = vmatprep.subr.mxu0 0.0
        %997 = vmatpush1.msra.mxu0 0.0
        %998 = vmatprep.subr.mxu0 0.0
        %999 = vmatpush1.msra.mxu0 0.0
        %1000 = vmatprep.subr.mxu0 0.0
        %1001 = vmatpush1.msra.mxu0 0.0
        %1002 = vmatprep.subr.mxu0 0.0
        %1003 = vmatpush1.msra.mxu0 0.0
        %1004 = vmatprep.subr.mxu0 0.0
        %1005 = vmatpush1.msra.mxu0 0.0
        %1006 = vmatprep.subr.mxu0 0.0
        %1007 = vmatpush1.msra.mxu0 0.0
        %1008 = vmatprep.subr.mxu0 0.0
        %1009 = vmatpush1.msra.mxu0 0.0
        %1010 = vmatprep.subr.mxu0 0.0
        %1011 = vmatpush1.msra.mxu0 0.0
        %1012 = vmatprep.subr.mxu0 0.0
        %1013 = vmatpush1.msra.mxu0 0.0
        %1014 = vmatprep.subr.mxu0 0.0
        %1015 = vmatpush1.msra.mxu0 0.0
        %1016 = vmatprep.subr.mxu0 0.0
        %1017 = vmatpush1.msra.mxu0 0.0
        %1018 = vmatprep.subr.mxu0 0.0
        %1019 = vmatpush1.msra.mxu0 0.0
        %1020 = vmatprep.subr.mxu0 0.0
        %1021 = vmatpush1.msra.mxu0 0.0
        %1022 = vmatprep.subr.mxu0 0.0
        %1023 = vmatpush1.msra.mxu0 0.0
        %1024 = vmatprep.mubr.f32.mxu0 0.0
        %1025 = vmatmul.mubr.f32.gmra.mrb[0].mxu0 %v958
        %v1026 = vpop.f32.mrb[0].mxu0
        %v1027 = vadd.f32 0.0, %v1026
        %v1028 = vpop.f32.mrb[0].mxu0
        %1029 = vdwg.mxu0
        %v1031 = vsel %vm774, %v798, 0
        %1033 = vmatprep.subr.mxu0 0.0
        %1034 = vmatpush1.msra.mxu0 %v457
        %1035 = vmatprep.subr.mxu0 0.0
        %1036 = vmatpush1.msra.mxu0 0.0
        %1037 = vmatprep.subr.mxu0 0.0
        %1038 = vmatpush1.msra.mxu0 0.0
        %1039 = vmatprep.subr.mxu0 0.0
        %1040 = vmatpush1.msra.mxu0 0.0
        %1041 = vmatprep.subr.mxu0 0.0
        %1042 = vmatpush1.msra.mxu0 0.0
        %1043 = vmatprep.subr.mxu0 0.0
        %1044 = vmatpush1.msra.mxu0 0.0
        %1045 = vmatprep.subr.mxu0 0.0
        %1046 = vmatpush1.msra.mxu0 0.0
        %1047 = vmatprep.subr.mxu0 0.0
        %1048 = vmatpush1.msra.mxu0 0.0
        %1049 = vmatprep.subr.mxu0 0.0
        %1050 = vmatpush1.msra.mxu0 0.0
        %1051 = vmatprep.subr.mxu0 0.0
        %1052 = vmatpush1.msra.mxu0 0.0
        %1053 = vmatprep.subr.mxu0 0.0
        %1054 = vmatpush1.msra.mxu0 0.0
        %1055 = vmatprep.subr.mxu0 0.0
        %1056 = vmatpush1.msra.mxu0 0.0
        %1057 = vmatprep.subr.mxu0 0.0
        %1058 = vmatpush1.msra.mxu0 0.0
        %1059 = vmatprep.subr.mxu0 0.0
        %1060 = vmatpush1.msra.mxu0 0.0
        %1061 = vmatprep.subr.mxu0 0.0
        %1062 = vmatpush1.msra.mxu0 0.0
        %1063 = vmatprep.subr.mxu0 0.0
        %1064 = vmatpush1.msra.mxu0 0.0
        %1065 = vmatprep.subr.mxu0 0.0
        %1066 = vmatpush1.msra.mxu0 0.0
        %1067 = vmatprep.subr.mxu0 0.0
        %1068 = vmatpush1.msra.mxu0 0.0
        %1069 = vmatprep.subr.mxu0 0.0
        %1070 = vmatpush1.msra.mxu0 0.0
        %1071 = vmatprep.subr.mxu0 0.0
        %1072 = vmatpush1.msra.mxu0 0.0
        %1073 = vmatprep.subr.mxu0 0.0
        %1074 = vmatpush1.msra.mxu0 0.0
        %1075 = vmatprep.subr.mxu0 0.0
        %1076 = vmatpush1.msra.mxu0 0.0
        %1077 = vmatprep.subr.mxu0 0.0
        %1078 = vmatpush1.msra.mxu0 0.0
        %1079 = vmatprep.subr.mxu0 0.0
        %1080 = vmatpush1.msra.mxu0 0.0
        %1081 = vmatprep.subr.mxu0 0.0
        %1082 = vmatpush1.msra.mxu0 0.0
        %1083 = vmatprep.subr.mxu0 0.0
        %1084 = vmatpush1.msra.mxu0 0.0
        %1085 = vmatprep.subr.mxu0 0.0
        %1086 = vmatpush1.msra.mxu0 0.0
        %1087 = vmatprep.subr.mxu0 0.0
        %1088 = vmatpush1.msra.mxu0 0.0
        %1089 = vmatprep.subr.mxu0 0.0
        %1090 = vmatpush1.msra.mxu0 0.0
        %1091 = vmatprep.subr.mxu0 0.0
        %1092 = vmatpush1.msra.mxu0 0.0
        %1093 = vmatprep.subr.mxu0 0.0
        %1094 = vmatpush1.msra.mxu0 0.0
        %1095 = vmatprep.subr.mxu0 0.0
        %1096 = vmatpush1.msra.mxu0 0.0
        %1097 = vmatprep.mubr.f32.mxu0 0.0
        %1098 = vmatmul.mubr.f32.gmra.mrb[0].mxu0 %v1031
        %v1099 = vpop.f32.mrb[0].mxu0
        %v1100 = vadd.f32 0.0, %v1099
        %v1101 = vpop.f32.mrb[0].mxu0
        %1102 = vdwg.mxu0
        %v1103 = vrcp.pop %v801
        %v1104 = vmul.f32 %v881, %v1103
        %v1105 = vrcp.pop %v804
        %v1106 = vmul.f32 %v954, %v1105
        %v1107 = vrcp.pop %v807
        %v1108 = vmul.f32 %v1027, %v1107
        %v1109 = vrcp.pop %v810
        %v1110 = vmul.f32 %v1100, %v1109
        %1111 = vrot.lane.b32.xlu0 %v437, 112
        %v1112 = vpop.permute.xlu0 %1111
        %1113 = vrot.lane.b32.xlu0 %v437, 48
        %v1114 = vpop.permute.xlu0 %1113
        %v1115 = vsel %vm468, %v1112, 0
        %v1117 = vsel %vm468, %v1114, 0
        %1119 = vmatprep.subr.mxu0 0.0
        %1120 = vmatpush1.xpose.msra.mxu0 %v1117
        %1121 = vmatprep.subr.mxu0 0.0
        %1122 = vmatpush1.xpose.msra.mxu0 0.0
        %1123 = vmatprep.subr.mxu0 0.0
        %1124 = vmatpush1.xpose.msra.mxu0 0.0
        %1125 = vmatprep.subr.mxu0 0.0
        %1126 = vmatpush1.xpose.msra.mxu0 0.0
        %1127 = vmatprep.subr.mxu0 0.0
        %1128 = vmatpush1.xpose.msra.mxu0 0.0
        %1129 = vmatprep.subr.mxu0 0.0
        %1130 = vmatpush1.xpose.msra.mxu0 0.0
        %1131 = vmatprep.subr.mxu0 0.0
        %1132 = vmatpush1.xpose.msra.mxu0 0.0
        %1133 = vmatprep.subr.mxu0 0.0
        %1134 = vmatpush1.xpose.msra.mxu0 0.0
        %1135 = vmatprep.subr.mxu0 0.0
        %1136 = vmatpush1.xpose.msra.mxu0 0.0
        %1137 = vmatprep.subr.mxu0 0.0
        %1138 = vmatpush1.xpose.msra.mxu0 0.0
        %1139 = vmatprep.subr.mxu0 0.0
        %1140 = vmatpush1.xpose.msra.mxu0 0.0
        %1141 = vmatprep.subr.mxu0 0.0
        %1142 = vmatpush1.xpose.msra.mxu0 0.0
        %1143 = vmatprep.subr.mxu0 0.0
        %1144 = vmatpush1.xpose.msra.mxu0 0.0
        %1145 = vmatprep.subr.mxu0 0.0
        %1146 = vmatpush1.xpose.msra.mxu0 0.0
        %1147 = vmatprep.subr.mxu0 0.0
        %1148 = vmatpush1.xpose.msra.mxu0 0.0
        %1149 = vmatprep.subr.mxu0 0.0
        %1150 = vmatpush1.xpose.msra.mxu0 0.0
        %1151 = vmatprep.subr.mxu0 0.0
        %1152 = vmatpush1.xpose.msra.mxu0 0.0
        %1153 = vmatprep.subr.mxu0 0.0
        %1154 = vmatpush1.xpose.msra.mxu0 0.0
        %1155 = vmatprep.subr.mxu0 0.0
        %1156 = vmatpush1.xpose.msra.mxu0 0.0
        %1157 = vmatprep.subr.mxu0 0.0
        %1158 = vmatpush1.xpose.msra.mxu0 0.0
        %1159 = vmatprep.subr.mxu0 0.0
        %1160 = vmatpush1.xpose.msra.mxu0 0.0
        %1161 = vmatprep.subr.mxu0 0.0
        %1162 = vmatpush1.xpose.msra.mxu0 0.0
        %1163 = vmatprep.subr.mxu0 0.0
        %1164 = vmatpush1.xpose.msra.mxu0 0.0
        %1165 = vmatprep.subr.mxu0 0.0
        %1166 = vmatpush1.xpose.msra.mxu0 0.0
        %1167 = vmatprep.subr.mxu0 0.0
        %1168 = vmatpush1.xpose.msra.mxu0 0.0
        %1169 = vmatprep.subr.mxu0 0.0
        %1170 = vmatpush1.xpose.msra.mxu0 0.0
        %1171 = vmatprep.subr.mxu0 0.0
        %1172 = vmatpush1.xpose.msra.mxu0 0.0
        %1173 = vmatprep.subr.mxu0 0.0
        %1174 = vmatpush1.xpose.msra.mxu0 0.0
        %1175 = vmatprep.subr.mxu0 0.0
        %1176 = vmatpush1.xpose.msra.mxu0 0.0
        %1177 = vmatprep.subr.mxu0 0.0
        %1178 = vmatpush1.xpose.msra.mxu0 0.0
        %1179 = vmatprep.subr.mxu0 0.0
        %1180 = vmatpush1.xpose.msra.mxu0 0.0
        %1181 = vmatprep.subr.mxu0 0.0
        %1182 = vmatpush1.xpose.msra.mxu0 0.0
        %1183 = vmatprep.mubr.f32.mxu0 0.0
        %1184 = vmatmul.mubr.f32.gmra.mrb[0].mxu0 %v1115
        %v1185 = vpop.f32.mrb[0].mxu0
        %v1186 = vadd.f32 %v464, %v1185
        %v1187 = vpop.f32.mrb[0].mxu0
        %1188 = vdwg.mxu0
        %1189 = vrot.lane.b32.xlu0 %v443, 112
        %v1190 = vpop.permute.xlu0 %1189
        %1191 = vrot.lane.b32.xlu0 %v443, 48
        %v1192 = vpop.permute.xlu0 %1191
        %v1193 = vsel %vm468, %v1190, 0
        %v1195 = vsel %vm468, %v1192, 0
        %1197 = vmatprep.subr.mxu0 0.0
        %1198 = vmatpush1.xpose.msra.mxu0 %v1195
        %1199 = vmatprep.subr.mxu0 0.0
        %1200 = vmatpush1.xpose.msra.mxu0 0.0
        %1201 = vmatprep.subr.mxu0 0.0
        %1202 = vmatpush1.xpose.msra.mxu0 0.0
        %1203 = vmatprep.subr.mxu0 0.0
        %1204 = vmatpush1.xpose.msra.mxu0 0.0
        %1205 = vmatprep.subr.mxu0 0.0
        %1206 = vmatpush1.xpose.msra.mxu0 0.0
        %1207 = vmatprep.subr.mxu0 0.0
        %1208 = vmatpush1.xpose.msra.mxu0 0.0
        %1209 = vmatprep.subr.mxu0 0.0
        %1210 = vmatpush1.xpose.msra.mxu0 0.0
        %1211 = vmatprep.subr.mxu0 0.0
        %1212 = vmatpush1.xpose.msra.mxu0 0.0
        %1213 = vmatprep.subr.mxu0 0.0
        %1214 = vmatpush1.xpose.msra.mxu0 0.0
        %1215 = vmatprep.subr.mxu0 0.0
        %1216 = vmatpush1.xpose.msra.mxu0 0.0
        %1217 = vmatprep.subr.mxu0 0.0
        %1218 = vmatpush1.xpose.msra.mxu0 0.0
        %1219 = vmatprep.subr.mxu0 0.0
        %1220 = vmatpush1.xpose.msra.mxu0 0.0
        %1221 = vmatprep.subr.mxu0 0.0
        %1222 = vmatpush1.xpose.msra.mxu0 0.0
        %1223 = vmatprep.subr.mxu0 0.0
        %1224 = vmatpush1.xpose.msra.mxu0 0.0
        %1225 = vmatprep.subr.mxu0 0.0
        %1226 = vmatpush1.xpose.msra.mxu0 0.0
        %1227 = vmatprep.subr.mxu0 0.0
        %1228 = vmatpush1.xpose.msra.mxu0 0.0
        %1229 = vmatprep.subr.mxu0 0.0
        %1230 = vmatpush1.xpose.msra.mxu0 0.0
        %1231 = vmatprep.subr.mxu0 0.0
        %1232 = vmatpush1.xpose.msra.mxu0 0.0
        %1233 = vmatprep.subr.mxu0 0.0
        %1234 = vmatpush1.xpose.msra.mxu0 0.0
        %1235 = vmatprep.subr.mxu0 0.0
        %1236 = vmatpush1.xpose.msra.mxu0 0.0
        %1237 = vmatprep.subr.mxu0 0.0
        %1238 = vmatpush1.xpose.msra.mxu0 0.0
        %1239 = vmatprep.subr.mxu0 0.0
        %1240 = vmatpush1.xpose.msra.mxu0 0.0
        %1241 = vmatprep.subr.mxu0 0.0
        %1242 = vmatpush1.xpose.msra.mxu0 0.0
        %1243 = vmatprep.subr.mxu0 0.0
        %1244 = vmatpush1.xpose.msra.mxu0 0.0
        %1245 = vmatprep.subr.mxu0 0.0
        %1246 = vmatpush1.xpose.msra.mxu0 0.0
        %1247 = vmatprep.subr.mxu0 0.0
        %1248 = vmatpush1.xpose.msra.mxu0 0.0
        %1249 = vmatprep.subr.mxu0 0.0
        %1250 = vmatpush1.xpose.msra.mxu0 0.0
        %1251 = vmatprep.subr.mxu0 0.0
        %1252 = vmatpush1.xpose.msra.mxu0 0.0
        %1253 = vmatprep.subr.mxu0 0.0
        %1254 = vmatpush1.xpose.msra.mxu0 0.0
        %1255 = vmatprep.subr.mxu0 0.0
        %1256 = vmatpush1.xpose.msra.mxu0 0.0
        %1257 = vmatprep.subr.mxu0 0.0
        %1258 = vmatpush1.xpose.msra.mxu0 0.0
        %1259 = vmatprep.subr.mxu0 0.0
        %1260 = vmatpush1.xpose.msra.mxu0 0.0
        %1261 = vmatprep.mubr.f32.mxu0 0.0
        %1262 = vmatmul.mubr.f32.gmra.mrb[0].mxu0 %v1193
        %v1263 = vpop.f32.mrb[0].mxu0
        %v1264 = vadd.f32 %v464, %v1263
        %v1265 = vpop.f32.mrb[0].mxu0
        %1266 = vdwg.mxu0
        %1267 = vrot.lane.b32.xlu0 %v449, 112
        %v1268 = vpop.permute.xlu0 %1267
        %1269 = vrot.lane.b32.xlu0 %v449, 48
        %v1270 = vpop.permute.xlu0 %1269
        %v1271 = vsel %vm468, %v1268, 0
        %v1273 = vsel %vm468, %v1270, 0
        %1275 = vmatprep.subr.mxu0 0.0
        %1276 = vmatpush1.xpose.msra.mxu0 %v1273
        %1277 = vmatprep.subr.mxu0 0.0
        %1278 = vmatpush1.xpose.msra.mxu0 0.0
        %1279 = vmatprep.subr.mxu0 0.0
        %1280 = vmatpush1.xpose.msra.mxu0 0.0
        %1281 = vmatprep.subr.mxu0 0.0
        %1282 = vmatpush1.xpose.msra.mxu0 0.0
        %1283 = vmatprep.subr.mxu0 0.0
        %1284 = vmatpush1.xpose.msra.mxu0 0.0
        %1285 = vmatprep.subr.mxu0 0.0
        %1286 = vmatpush1.xpose.msra.mxu0 0.0
        %1287 = vmatprep.subr.mxu0 0.0
        %1288 = vmatpush1.xpose.msra.mxu0 0.0
        %1289 = vmatprep.subr.mxu0 0.0
        %1290 = vmatpush1.xpose.msra.mxu0 0.0
        %1291 = vmatprep.subr.mxu0 0.0
        %1292 = vmatpush1.xpose.msra.mxu0 0.0
        %1293 = vmatprep.subr.mxu0 0.0
        %1294 = vmatpush1.xpose.msra.mxu0 0.0
        %1295 = vmatprep.subr.mxu0 0.0
        %1296 = vmatpush1.xpose.msra.mxu0 0.0
        %1297 = vmatprep.subr.mxu0 0.0
        %1298 = vmatpush1.xpose.msra.mxu0 0.0
        %1299 = vmatprep.subr.mxu0 0.0
        %1300 = vmatpush1.xpose.msra.mxu0 0.0
        %1301 = vmatprep.subr.mxu0 0.0
        %1302 = vmatpush1.xpose.msra.mxu0 0.0
        %1303 = vmatprep.subr.mxu0 0.0
        %1304 = vmatpush1.xpose.msra.mxu0 0.0
        %1305 = vmatprep.subr.mxu0 0.0
        %1306 = vmatpush1.xpose.msra.mxu0 0.0
        %1307 = vmatprep.subr.mxu0 0.0
        %1308 = vmatpush1.xpose.msra.mxu0 0.0
        %1309 = vmatprep.subr.mxu0 0.0
        %1310 = vmatpush1.xpose.msra.mxu0 0.0
        %1311 = vmatprep.subr.mxu0 0.0
        %1312 = vmatpush1.xpose.msra.mxu0 0.0
        %1313 = vmatprep.subr.mxu0 0.0
        %1314 = vmatpush1.xpose.msra.mxu0 0.0
        %1315 = vmatprep.subr.mxu0 0.0
        %1316 = vmatpush1.xpose.msra.mxu0 0.0
        %1317 = vmatprep.subr.mxu0 0.0
        %1318 = vmatpush1.xpose.msra.mxu0 0.0
        %1319 = vmatprep.subr.mxu0 0.0
        %1320 = vmatpush1.xpose.msra.mxu0 0.0
        %1321 = vmatprep.subr.mxu0 0.0
        %1322 = vmatpush1.xpose.msra.mxu0 0.0
        %1323 = vmatprep.subr.mxu0 0.0
        %1324 = vmatpush1.xpose.msra.mxu0 0.0
        %1325 = vmatprep.subr.mxu0 0.0
        %1326 = vmatpush1.xpose.msra.mxu0 0.0
        %1327 = vmatprep.subr.mxu0 0.0
        %1328 = vmatpush1.xpose.msra.mxu0 0.0
        %1329 = vmatprep.subr.mxu0 0.0
        %1330 = vmatpush1.xpose.msra.mxu0 0.0
        %1331 = vmatprep.subr.mxu0 0.0
        %1332 = vmatpush1.xpose.msra.mxu0 0.0
        %1333 = vmatprep.subr.mxu0 0.0
        %1334 = vmatpush1.xpose.msra.mxu0 0.0
        %1335 = vmatprep.subr.mxu0 0.0
        %1336 = vmatpush1.xpose.msra.mxu0 0.0
        %1337 = vmatprep.subr.mxu0 0.0
        %1338 = vmatpush1.xpose.msra.mxu0 0.0
        %1339 = vmatprep.mubr.f32.mxu0 0.0
        %1340 = vmatmul.mubr.f32.gmra.mrb[0].mxu0 %v1271
        %v1341 = vpop.f32.mrb[0].mxu0
        %v1342 = vadd.f32 %v464, %v1341
        %v1343 = vpop.f32.mrb[0].mxu0
        %1344 = vdwg.mxu0
        %1345 = vrot.lane.b32.xlu0 %v455, 112
        %v1346 = vpop.permute.xlu0 %1345
        %1347 = vrot.lane.b32.xlu0 %v455, 48
        %v1348 = vpop.permute.xlu0 %1347
        %v1349 = vsel %vm468, %v1346, 0
        %v1351 = vsel %vm468, %v1348, 0
        %1353 = vmatprep.subr.mxu0 0.0
        %1354 = vmatpush1.xpose.msra.mxu0 %v1351
        %1355 = vmatprep.subr.mxu0 0.0
        %1356 = vmatpush1.xpose.msra.mxu0 0.0
        %1357 = vmatprep.subr.mxu0 0.0
        %1358 = vmatpush1.xpose.msra.mxu0 0.0
        %1359 = vmatprep.subr.mxu0 0.0
        %1360 = vmatpush1.xpose.msra.mxu0 0.0
        %1361 = vmatprep.subr.mxu0 0.0
        %1362 = vmatpush1.xpose.msra.mxu0 0.0
        %1363 = vmatprep.subr.mxu0 0.0
        %1364 = vmatpush1.xpose.msra.mxu0 0.0
        %1365 = vmatprep.subr.mxu0 0.0
        %1366 = vmatpush1.xpose.msra.mxu0 0.0
        %1367 = vmatprep.subr.mxu0 0.0
        %1368 = vmatpush1.xpose.msra.mxu0 0.0
        %1369 = vmatprep.subr.mxu0 0.0
        %1370 = vmatpush1.xpose.msra.mxu0 0.0
        %1371 = vmatprep.subr.mxu0 0.0
        %1372 = vmatpush1.xpose.msra.mxu0 0.0
        %1373 = vmatprep.subr.mxu0 0.0
        %1374 = vmatpush1.xpose.msra.mxu0 0.0
        %1375 = vmatprep.subr.mxu0 0.0
        %1376 = vmatpush1.xpose.msra.mxu0 0.0
        %1377 = vmatprep.subr.mxu0 0.0
        %1378 = vmatpush1.xpose.msra.mxu0 0.0
        %1379 = vmatprep.subr.mxu0 0.0
        %1380 = vmatpush1.xpose.msra.mxu0 0.0
        %1381 = vmatprep.subr.mxu0 0.0
        %1382 = vmatpush1.xpose.msra.mxu0 0.0
        %1383 = vmatprep.subr.mxu0 0.0
        %1384 = vmatpush1.xpose.msra.mxu0 0.0
        %1385 = vmatprep.subr.mxu0 0.0
        %1386 = vmatpush1.xpose.msra.mxu0 0.0
        %1387 = vmatprep.subr.mxu0 0.0
        %1388 = vmatpush1.xpose.msra.mxu0 0.0
        %1389 = vmatprep.subr.mxu0 0.0
        %1390 = vmatpush1.xpose.msra.mxu0 0.0
        %1391 = vmatprep.subr.mxu0 0.0
        %1392 = vmatpush1.xpose.msra.mxu0 0.0
        %1393 = vmatprep.subr.mxu0 0.0
        %1394 = vmatpush1.xpose.msra.mxu0 0.0
        %1395 = vmatprep.subr.mxu0 0.0
        %1396 = vmatpush1.xpose.msra.mxu0 0.0
        %1397 = vmatprep.subr.mxu0 0.0
        %1398 = vmatpush1.xpose.msra.mxu0 0.0
        %1399 = vmatprep.subr.mxu0 0.0
        %1400 = vmatpush1.xpose.msra.mxu0 0.0
        %1401 = vmatprep.subr.mxu0 0.0
        %1402 = vmatpush1.xpose.msra.mxu0 0.0
        %1403 = vmatprep.subr.mxu0 0.0
        %1404 = vmatpush1.xpose.msra.mxu0 0.0
        %1405 = vmatprep.subr.mxu0 0.0
        %1406 = vmatpush1.xpose.msra.mxu0 0.0
        %1407 = vmatprep.subr.mxu0 0.0
        %1408 = vmatpush1.xpose.msra.mxu0 0.0
        %1409 = vmatprep.subr.mxu0 0.0
        %1410 = vmatpush1.xpose.msra.mxu0 0.0
        %1411 = vmatprep.subr.mxu0 0.0
        %1412 = vmatpush1.xpose.msra.mxu0 0.0
        %1413 = vmatprep.subr.mxu0 0.0
        %1414 = vmatpush1.xpose.msra.mxu0 0.0
        %1415 = vmatprep.subr.mxu0 0.0
        %1416 = vmatpush1.xpose.msra.mxu0 0.0
        %1417 = vmatprep.mubr.f32.mxu0 0.0
        %1418 = vmatmul.mubr.f32.gmra.mrb[0].mxu0 %v1349
        %v1419 = vpop.f32.mrb[0].mxu0
        %v1420 = vadd.f32 %v464, %v1419
        %v1421 = vpop.f32.mrb[0].mxu0
        %1422 = vdwg.mxu0
        %v1423 = vsel %vm774, %v1186, -inf
        %1424 = vmax.xlane.f32.xlu0 %v1423
        %v1425 = vpop.xlane.xlu0 %1424
        %v1426 = vsel %vm774, %v1264, -inf
        %1427 = vmax.xlane.f32.xlu0 %v1426
        %v1428 = vpop.xlane.xlu0 %1427
        %v1429 = vsel %vm774, %v1342, -inf
        %1430 = vmax.xlane.f32.xlu0 %v1429
        %v1431 = vpop.xlane.xlu0 %1430
        %v1432 = vsel %vm774, %v1420, -inf
        %1433 = vmax.xlane.f32.xlu0 %v1432
        %v1434 = vpop.xlane.xlu0 %1433
        %v1435 = vsub.f32 %v1186, %v1425
        %v1436 = vsub.f32 %v1264, %v1428
        %v1437 = vsub.f32 %v1342, %v1431
        %v1438 = vsub.f32 %v1420, %v1434
        %v1439 = vmul.f32 %v1435, 1.442695
        %v1440 = vpow.pop %v1439
        %v1441 = vmul.f32 %v1436, 1.442695
        %v1442 = vpow.pop %v1441
        %v1443 = vmul.f32 %v1437, 1.442695
        %v1444 = vpow.pop %v1443
        %v1445 = vmul.f32 %v1438, 1.442695
        %v1446 = vpow.pop %v1445
        %v1447 = vsel %vm774, %v1440, 0.0
        %1448 = vadd.xlane.f32.xlu0 %v1447
        %v1449 = vpop.xlane.xlu0 %1448
        %v1450 = vsel %vm774, %v1442, 0.0
        %1451 = vadd.xlane.f32.xlu0 %v1450
        %v1452 = vpop.xlane.xlu0 %1451
        %v1453 = vsel %vm774, %v1444, 0.0
        %1454 = vadd.xlane.f32.xlu0 %v1453
        %v1455 = vpop.xlane.xlu0 %1454
        %v1456 = vsel %vm774, %v1446, 0.0
        %1457 = vadd.xlane.f32.xlu0 %v1456
        %v1458 = vpop.xlane.xlu0 %1457
        %1460 = vrot.lane.b32.xlu0 %v439, 112
        %v1461 = vpop.permute.xlu0 %1460
        %v1464 = vsel %vm774, %v1440, 0
        %1466 = vmatprep.subr.mxu0 0.0
        %1467 = vmatpush1.msra.mxu0 %v1461
        %1468 = vmatprep.subr.mxu0 0.0
        %1469 = vmatpush1.msra.mxu0 0.0
        %1470 = vmatprep.subr.mxu0 0.0
        %1471 = vmatpush1.msra.mxu0 0.0
        %1472 = vmatprep.subr.mxu0 0.0
        %1473 = vmatpush1.msra.mxu0 0.0
        %1474 = vmatprep.subr.mxu0 0.0
        %1475 = vmatpush1.msra.mxu0 0.0
        %1476 = vmatprep.subr.mxu0 0.0
        %1477 = vmatpush1.msra.mxu0 0.0
        %1478 = vmatprep.subr.mxu0 0.0
        %1479 = vmatpush1.msra.mxu0 0.0
        %1480 = vmatprep.subr.mxu0 0.0
        %1481 = vmatpush1.msra.mxu0 0.0
        %1482 = vmatprep.subr.mxu0 0.0
        %1483 = vmatpush1.msra.mxu0 0.0
        %1484 = vmatprep.subr.mxu0 0.0
        %1485 = vmatpush1.msra.mxu0 0.0
        %1486 = vmatprep.subr.mxu0 0.0
        %1487 = vmatpush1.msra.mxu0 0.0
        %1488 = vmatprep.subr.mxu0 0.0
        %1489 = vmatpush1.msra.mxu0 0.0
        %1490 = vmatprep.subr.mxu0 0.0
        %1491 = vmatpush1.msra.mxu0 0.0
        %1492 = vmatprep.subr.mxu0 0.0
        %1493 = vmatpush1.msra.mxu0 0.0
        %1494 = vmatprep.subr.mxu0 0.0
        %1495 = vmatpush1.msra.mxu0 0.0
        %1496 = vmatprep.subr.mxu0 0.0
        %1497 = vmatpush1.msra.mxu0 0.0
        %1498 = vmatprep.subr.mxu0 0.0
        %1499 = vmatpush1.msra.mxu0 0.0
        %1500 = vmatprep.subr.mxu0 0.0
        %1501 = vmatpush1.msra.mxu0 0.0
        %1502 = vmatprep.subr.mxu0 0.0
        %1503 = vmatpush1.msra.mxu0 0.0
        %1504 = vmatprep.subr.mxu0 0.0
        %1505 = vmatpush1.msra.mxu0 0.0
        %1506 = vmatprep.subr.mxu0 0.0
        %1507 = vmatpush1.msra.mxu0 0.0
        %1508 = vmatprep.subr.mxu0 0.0
        %1509 = vmatpush1.msra.mxu0 0.0
        %1510 = vmatprep.subr.mxu0 0.0
        %1511 = vmatpush1.msra.mxu0 0.0
        %1512 = vmatprep.subr.mxu0 0.0
        %1513 = vmatpush1.msra.mxu0 0.0
        %1514 = vmatprep.subr.mxu0 0.0
        %1515 = vmatpush1.msra.mxu0 0.0
        %1516 = vmatprep.subr.mxu0 0.0
        %1517 = vmatpush1.msra.mxu0 0.0
        %1518 = vmatprep.subr.mxu0 0.0
        %1519 = vmatpush1.msra.mxu0 0.0
        %1520 = vmatprep.subr.mxu0 0.0
        %1521 = vmatpush1.msra.mxu0 0.0
        %1522 = vmatprep.subr.mxu0 0.0
        %1523 = vmatpush1.msra.mxu0 0.0
        %1524 = vmatprep.subr.mxu0 0.0
        %1525 = vmatpush1.msra.mxu0 0.0
        %1526 = vmatprep.subr.mxu0 0.0
        %1527 = vmatpush1.msra.mxu0 0.0
        %1528 = vmatprep.subr.mxu0 0.0
        %1529 = vmatpush1.msra.mxu0 0.0
        %1530 = vmatprep.mubr.f32.mxu0 0.0
        %1531 = vmatmul.mubr.f32.gmra.mrb[0].mxu0 %v1464
        %v1532 = vpop.f32.mrb[0].mxu0
        %v1533 = vadd.f32 0.0, %v1532
        %v1534 = vpop.f32.mrb[0].mxu0
        %1535 = vdwg.mxu0
        %1537 = vrot.lane.b32.xlu0 %v445, 112
        %v1538 = vpop.permute.xlu0 %1537
        %v1541 = vsel %vm774, %v1442, 0
        %1543 = vmatprep.subr.mxu0 0.0
        %1544 = vmatpush1.msra.mxu0 %v1538
        %1545 = vmatprep.subr.mxu0 0.0
        %1546 = vmatpush1.msra.mxu0 0.0
        %1547 = vmatprep.subr.mxu0 0.0
        %1548 = vmatpush1.msra.mxu0 0.0
        %1549 = vmatprep.subr.mxu0 0.0
        %1550 = vmatpush1.msra.mxu0 0.0
        %1551 = vmatprep.subr.mxu0 0.0
        %1552 = vmatpush1.msra.mxu0 0.0
        %1553 = vmatprep.subr.mxu0 0.0
        %1554 = vmatpush1.msra.mxu0 0.0
        %1555 = vmatprep.subr.mxu0 0.0
        %1556 = vmatpush1.msra.mxu0 0.0
        %1557 = vmatprep.subr.mxu0 0.0
        %1558 = vmatpush1.msra.mxu0 0.0
        %1559 = vmatprep.subr.mxu0 0.0
        %1560 = vmatpush1.msra.mxu0 0.0
        %1561 = vmatprep.subr.mxu0 0.0
        %1562 = vmatpush1.msra.mxu0 0.0
        %1563 = vmatprep.subr.mxu0 0.0
        %1564 = vmatpush1.msra.mxu0 0.0
        %1565 = vmatprep.subr.mxu0 0.0
        %1566 = vmatpush1.msra.mxu0 0.0
        %1567 = vmatprep.subr.mxu0 0.0
        %1568 = vmatpush1.msra.mxu0 0.0
        %1569 = vmatprep.subr.mxu0 0.0
        %1570 = vmatpush1.msra.mxu0 0.0
        %1571 = vmatprep.subr.mxu0 0.0
        %1572 = vmatpush1.msra.mxu0 0.0
        %1573 = vmatprep.subr.mxu0 0.0
        %1574 = vmatpush1.msra.mxu0 0.0
        %1575 = vmatprep.subr.mxu0 0.0
        %1576 = vmatpush1.msra.mxu0 0.0
        %1577 = vmatprep.subr.mxu0 0.0
        %1578 = vmatpush1.msra.mxu0 0.0
        %1579 = vmatprep.subr.mxu0 0.0
        %1580 = vmatpush1.msra.mxu0 0.0
        %1581 = vmatprep.subr.mxu0 0.0
        %1582 = vmatpush1.msra.mxu0 0.0
        %1583 = vmatprep.subr.mxu0 0.0
        %1584 = vmatpush1.msra.mxu0 0.0
        %1585 = vmatprep.subr.mxu0 0.0
        %1586 = vmatpush1.msra.mxu0 0.0
        %1587 = vmatprep.subr.mxu0 0.0
        %1588 = vmatpush1.msra.mxu0 0.0
        %1589 = vmatprep.subr.mxu0 0.0
        %1590 = vmatpush1.msra.mxu0 0.0
        %1591 = vmatprep.subr.mxu0 0.0
        %1592 = vmatpush1.msra.mxu0 0.0
        %1593 = vmatprep.subr.mxu0 0.0
        %1594 = vmatpush1.msra.mxu0 0.0
        %1595 = vmatprep.subr.mxu0 0.0
        %1596 = vmatpush1.msra.mxu0 0.0
        %1597 = vmatprep.subr.mxu0 0.0
        %1598 = vmatpush1.msra.mxu0 0.0
        %1599 = vmatprep.subr.mxu0 0.0
        %1600 = vmatpush1.msra.mxu0 0.0
        %1601 = vmatprep.subr.mxu0 0.0
        %1602 = vmatpush1.msra.mxu0 0.0
        %1603 = vmatprep.subr.mxu0 0.0
        %1604 = vmatpush1.msra.mxu0 0.0
        %1605 = vmatprep.subr.mxu0 0.0
        %1606 = vmatpush1.msra.mxu0 0.0
        %1607 = vmatprep.mubr.f32.mxu0 0.0
        %1608 = vmatmul.mubr.f32.gmra.mrb[0].mxu0 %v1541
        %v1609 = vpop.f32.mrb[0].mxu0
        %v1610 = vadd.f32 0.0, %v1609
        %v1611 = vpop.f32.mrb[0].mxu0
        %1612 = vdwg.mxu0
        %1614 = vrot.lane.b32.xlu0 %v451, 112
        %v1615 = vpop.permute.xlu0 %1614
        %v1618 = vsel %vm774, %v1444, 0
        %1620 = vmatprep.subr.mxu0 0.0
        %1621 = vmatpush1.msra.mxu0 %v1615
        %1622 = vmatprep.subr.mxu0 0.0
        %1623 = vmatpush1.msra.mxu0 0.0
        %1624 = vmatprep.subr.mxu0 0.0
        %1625 = vmatpush1.msra.mxu0 0.0
        %1626 = vmatprep.subr.mxu0 0.0
        %1627 = vmatpush1.msra.mxu0 0.0
        %1628 = vmatprep.subr.mxu0 0.0
        %1629 = vmatpush1.msra.mxu0 0.0
        %1630 = vmatprep.subr.mxu0 0.0
        %1631 = vmatpush1.msra.mxu0 0.0
        %1632 = vmatprep.subr.mxu0 0.0
        %1633 = vmatpush1.msra.mxu0 0.0
        %1634 = vmatprep.subr.mxu0 0.0
        %1635 = vmatpush1.msra.mxu0 0.0
        %1636 = vmatprep.subr.mxu0 0.0
        %1637 = vmatpush1.msra.mxu0 0.0
        %1638 = vmatprep.subr.mxu0 0.0
        %1639 = vmatpush1.msra.mxu0 0.0
        %1640 = vmatprep.subr.mxu0 0.0
        %1641 = vmatpush1.msra.mxu0 0.0
        %1642 = vmatprep.subr.mxu0 0.0
        %1643 = vmatpush1.msra.mxu0 0.0
        %1644 = vmatprep.subr.mxu0 0.0
        %1645 = vmatpush1.msra.mxu0 0.0
        %1646 = vmatprep.subr.mxu0 0.0
        %1647 = vmatpush1.msra.mxu0 0.0
        %1648 = vmatprep.subr.mxu0 0.0
        %1649 = vmatpush1.msra.mxu0 0.0
        %1650 = vmatprep.subr.mxu0 0.0
        %1651 = vmatpush1.msra.mxu0 0.0
        %1652 = vmatprep.subr.mxu0 0.0
        %1653 = vmatpush1.msra.mxu0 0.0
        %1654 = vmatprep.subr.mxu0 0.0
        %1655 = vmatpush1.msra.mxu0 0.0
        %1656 = vmatprep.subr.mxu0 0.0
        %1657 = vmatpush1.msra.mxu0 0.0
        %1658 = vmatprep.subr.mxu0 0.0
        %1659 = vmatpush1.msra.mxu0 0.0
        %1660 = vmatprep.subr.mxu0 0.0
        %1661 = vmatpush1.msra.mxu0 0.0
        %1662 = vmatprep.subr.mxu0 0.0
        %1663 = vmatpush1.msra.mxu0 0.0
        %1664 = vmatprep.subr.mxu0 0.0
        %1665 = vmatpush1.msra.mxu0 0.0
        %1666 = vmatprep.subr.mxu0 0.0
        %1667 = vmatpush1.msra.mxu0 0.0
        %1668 = vmatprep.subr.mxu0 0.0
        %1669 = vmatpush1.msra.mxu0 0.0
        %1670 = vmatprep.subr.mxu0 0.0
        %1671 = vmatpush1.msra.mxu0 0.0
        %1672 = vmatprep.subr.mxu0 0.0
        %1673 = vmatpush1.msra.mxu0 0.0
        %1674 = vmatprep.subr.mxu0 0.0
        %1675 = vmatpush1.msra.mxu0 0.0
        %1676 = vmatprep.subr.mxu0 0.0
        %1677 = vmatpush1.msra.mxu0 0.0
        %1678 = vmatprep.subr.mxu0 0.0
        %1679 = vmatpush1.msra.mxu0 0.0
        %1680 = vmatprep.subr.mxu0 0.0
        %1681 = vmatpush1.msra.mxu0 0.0
        %1682 = vmatprep.subr.mxu0 0.0
        %1683 = vmatpush1.msra.mxu0 0.0
        %1684 = vmatprep.mubr.f32.mxu0 0.0
        %1685 = vmatmul.mubr.f32.gmra.mrb[0].mxu0 %v1618
        %v1686 = vpop.f32.mrb[0].mxu0
        %v1687 = vadd.f32 0.0, %v1686
        %v1688 = vpop.f32.mrb[0].mxu0
        %1689 = vdwg.mxu0
        %1691 = vrot.lane.b32.xlu0 %v457, 112
        %v1692 = vpop.permute.xlu0 %1691
        %v1695 = vsel %vm774, %v1446, 0
        %1697 = vmatprep.subr.mxu0 0.0
        %1698 = vmatpush1.msra.mxu0 %v1692
        %1699 = vmatprep.subr.mxu0 0.0
        %1700 = vmatpush1.msra.mxu0 0.0
        %1701 = vmatprep.subr.mxu0 0.0
        %1702 = vmatpush1.msra.mxu0 0.0
        %1703 = vmatprep.subr.mxu0 0.0
        %1704 = vmatpush1.msra.mxu0 0.0
        %1705 = vmatprep.subr.mxu0 0.0
        %1706 = vmatpush1.msra.mxu0 0.0
        %1707 = vmatprep.subr.mxu0 0.0
        %1708 = vmatpush1.msra.mxu0 0.0
        %1709 = vmatprep.subr.mxu0 0.0
        %1710 = vmatpush1.msra.mxu0 0.0
        %1711 = vmatprep.subr.mxu0 0.0
        %1712 = vmatpush1.msra.mxu0 0.0
        %1713 = vmatprep.subr.mxu0 0.0
        %1714 = vmatpush1.msra.mxu0 0.0
        %1715 = vmatprep.subr.mxu0 0.0
        %1716 = vmatpush1.msra.mxu0 0.0
        %1717 = vmatprep.subr.mxu0 0.0
        %1718 = vmatpush1.msra.mxu0 0.0
        %1719 = vmatprep.subr.mxu0 0.0
        %1720 = vmatpush1.msra.mxu0 0.0
        %1721 = vmatprep.subr.mxu0 0.0
        %1722 = vmatpush1.msra.mxu0 0.0
        %1723 = vmatprep.subr.mxu0 0.0
        %1724 = vmatpush1.msra.mxu0 0.0
        %1725 = vmatprep.subr.mxu0 0.0
        %1726 = vmatpush1.msra.mxu0 0.0
        %1727 = vmatprep.subr.mxu0 0.0
        %1728 = vmatpush1.msra.mxu0 0.0
        %1729 = vmatprep.subr.mxu0 0.0
        %1730 = vmatpush1.msra.mxu0 0.0
        %1731 = vmatprep.subr.mxu0 0.0
        %1732 = vmatpush1.msra.mxu0 0.0
        %1733 = vmatprep.subr.mxu0 0.0
        %1734 = vmatpush1.msra.mxu0 0.0
        %1735 = vmatprep.subr.mxu0 0.0
        %1736 = vmatpush1.msra.mxu0 0.0
        %1737 = vmatprep.subr.mxu0 0.0
        %1738 = vmatpush1.msra.mxu0 0.0
        %1739 = vmatprep.subr.mxu0 0.0
        %1740 = vmatpush1.msra.mxu0 0.0
        %1741 = vmatprep.subr.mxu0 0.0
        %1742 = vmatpush1.msra.mxu0 0.0
        %1743 = vmatprep.subr.mxu0 0.0
        %1744 = vmatpush1.msra.mxu0 0.0
        %1745 = vmatprep.subr.mxu0 0.0
        %1746 = vmatpush1.msra.mxu0 0.0
        %1747 = vmatprep.subr.mxu0 0.0
        %1748 = vmatpush1.msra.mxu0 0.0
        %1749 = vmatprep.subr.mxu0 0.0
        %1750 = vmatpush1.msra.mxu0 0.0
        %1751 = vmatprep.subr.mxu0 0.0
        %1752 = vmatpush1.msra.mxu0 0.0
        %1753 = vmatprep.subr.mxu0 0.0
        %1754 = vmatpush1.msra.mxu0 0.0
        %1755 = vmatprep.subr.mxu0 0.0
        %1756 = vmatpush1.msra.mxu0 0.0
        %1757 = vmatprep.subr.mxu0 0.0
        %1758 = vmatpush1.msra.mxu0 0.0
        %1759 = vmatprep.subr.mxu0 0.0
        %1760 = vmatpush1.msra.mxu0 0.0
        %1761 = vmatprep.mubr.f32.mxu0 0.0
        %1762 = vmatmul.mubr.f32.gmra.mrb[0].mxu0 %v1695
        %v1763 = vpop.f32.mrb[0].mxu0
        %v1764 = vadd.f32 0.0, %v1763
        %v1765 = vpop.f32.mrb[0].mxu0
        %1766 = vdwg.mxu0
        %v1767 = vrcp.pop %v1449
        %v1768 = vmul.f32 %v1533, %v1767
        %v1769 = vrcp.pop %v1452
        %v1770 = vmul.f32 %v1610, %v1769
        %v1771 = vrcp.pop %v1455
        %v1772 = vmul.f32 %v1687, %v1771
        %v1773 = vrcp.pop %v1458
        %v1774 = vmul.f32 %v1764, %v1773
        %1775 = vrot.lane.b32.xlu0 %v437, 96
        %v1776 = vpop.permute.xlu0 %1775
        %1777 = vrot.lane.b32.xlu0 %v437, 32
        %v1778 = vpop.permute.xlu0 %1777
        %v1779 = vsel %vm468, %v1776, 0
        %v1781 = vsel %vm468, %v1778, 0
        %1783 = vmatprep.subr.mxu0 0.0
        %1784 = vmatpush1.xpose.msra.mxu0 %v1781
        %1785 = vmatprep.subr.mxu0 0.0
        %1786 = vmatpush1.xpose.msra.mxu0 0.0
        %1787 = vmatprep.subr.mxu0 0.0
        %1788 = vmatpush1.xpose.msra.mxu0 0.0
        %1789 = vmatprep.subr.mxu0 0.0
        %1790 = vmatpush1.xpose.msra.mxu0 0.0
        %1791 = vmatprep.subr.mxu0 0.0
        %1792 = vmatpush1.xpose.msra.mxu0 0.0
        %1793 = vmatprep.subr.mxu0 0.0
        %1794 = vmatpush1.xpose.msra.mxu0 0.0
        %1795 = vmatprep.subr.mxu0 0.0
        %1796 = vmatpush1.xpose.msra.mxu0 0.0
        %1797 = vmatprep.subr.mxu0 0.0
        %1798 = vmatpush1.xpose.msra.mxu0 0.0
        %1799 = vmatprep.subr.mxu0 0.0
        %1800 = vmatpush1.xpose.msra.mxu0 0.0
        %1801 = vmatprep.subr.mxu0 0.0
        %1802 = vmatpush1.xpose.msra.mxu0 0.0
        %1803 = vmatprep.subr.mxu0 0.0
        %1804 = vmatpush1.xpose.msra.mxu0 0.0
        %1805 = vmatprep.subr.mxu0 0.0
        %1806 = vmatpush1.xpose.msra.mxu0 0.0
        %1807 = vmatprep.subr.mxu0 0.0
        %1808 = vmatpush1.xpose.msra.mxu0 0.0
        %1809 = vmatprep.subr.mxu0 0.0
        %1810 = vmatpush1.xpose.msra.mxu0 0.0
        %1811 = vmatprep.subr.mxu0 0.0
        %1812 = vmatpush1.xpose.msra.mxu0 0.0
        %1813 = vmatprep.subr.mxu0 0.0
        %1814 = vmatpush1.xpose.msra.mxu0 0.0
        %1815 = vmatprep.subr.mxu0 0.0
        %1816 = vmatpush1.xpose.msra.mxu0 0.0
        %1817 = vmatprep.subr.mxu0 0.0
        %1818 = vmatpush1.xpose.msra.mxu0 0.0
        %1819 = vmatprep.subr.mxu0 0.0
        %1820 = vmatpush1.xpose.msra.mxu0 0.0
        %1821 = vmatprep.subr.mxu0 0.0
        %1822 = vmatpush1.xpose.msra.mxu0 0.0
        %1823 = vmatprep.subr.mxu0 0.0
        %1824 = vmatpush1.xpose.msra.mxu0 0.0
        %1825 = vmatprep.subr.mxu0 0.0
        %1826 = vmatpush1.xpose.msra.mxu0 0.0
        %1827 = vmatprep.subr.mxu0 0.0
        %1828 = vmatpush1.xpose.msra.mxu0 0.0
        %1829 = vmatprep.subr.mxu0 0.0
        %1830 = vmatpush1.xpose.msra.mxu0 0.0
        %1831 = vmatprep.subr.mxu0 0.0
        %1832 = vmatpush1.xpose.msra.mxu0 0.0
        %1833 = vmatprep.subr.mxu0 0.0
        %1834 = vmatpush1.xpose.msra.mxu0 0.0
        %1835 = vmatprep.subr.mxu0 0.0
        %1836 = vmatpush1.xpose.msra.mxu0 0.0
        %1837 = vmatprep.subr.mxu0 0.0
        %1838 = vmatpush1.xpose.msra.mxu0 0.0
        %1839 = vmatprep.subr.mxu0 0.0
        %1840 = vmatpush1.xpose.msra.mxu0 0.0
        %1841 = vmatprep.subr.mxu0 0.0
        %1842 = vmatpush1.xpose.msra.mxu0 0.0
        %1843 = vmatprep.subr.mxu0 0.0
        %1844 = vmatpush1.xpose.msra.mxu0 0.0
        %1845 = vmatprep.subr.mxu0 0.0
        %1846 = vmatpush1.xpose.msra.mxu0 0.0
        %1847 = vmatprep.mubr.f32.mxu0 0.0
        %1848 = vmatmul.mubr.f32.gmra.mrb[0].mxu0 %v1779
        %v1849 = vpop.f32.mrb[0].mxu0
        %v1850 = vadd.f32 %v464, %v1849
        %v1851 = vpop.f32.mrb[0].mxu0
        %1852 = vdwg.mxu0
        %1853 = vrot.lane.b32.xlu0 %v443, 96
        %v1854 = vpop.permute.xlu0 %1853
        %1855 = vrot.lane.b32.xlu0 %v443, 32
        %v1856 = vpop.permute.xlu0 %1855
        %v1857 = vsel %vm468, %v1854, 0
        %v1859 = vsel %vm468, %v1856, 0
        %1861 = vmatprep.subr.mxu0 0.0
        %1862 = vmatpush1.xpose.msra.mxu0 %v1859
        %1863 = vmatprep.subr.mxu0 0.0
        %1864 = vmatpush1.xpose.msra.mxu0 0.0
        %1865 = vmatprep.subr.mxu0 0.0
        %1866 = vmatpush1.xpose.msra.mxu0 0.0
        %1867 = vmatprep.subr.mxu0 0.0
        %1868 = vmatpush1.xpose.msra.mxu0 0.0
        %1869 = vmatprep.subr.mxu0 0.0
        %1870 = vmatpush1.xpose.msra.mxu0 0.0
        %1871 = vmatprep.subr.mxu0 0.0
        %1872 = vmatpush1.xpose.msra.mxu0 0.0
        %1873 = vmatprep.subr.mxu0 0.0
        %1874 = vmatpush1.xpose.msra.mxu0 0.0
        %1875 = vmatprep.subr.mxu0 0.0
        %1876 = vmatpush1.xpose.msra.mxu0 0.0
        %1877 = vmatprep.subr.mxu0 0.0
        %1878 = vmatpush1.xpose.msra.mxu0 0.0
        %1879 = vmatprep.subr.mxu0 0.0
        %1880 = vmatpush1.xpose.msra.mxu0 0.0
        %1881 = vmatprep.subr.mxu0 0.0
        %1882 = vmatpush1.xpose.msra.mxu0 0.0
        %1883 = vmatprep.subr.mxu0 0.0
        %1884 = vmatpush1.xpose.msra.mxu0 0.0
        %1885 = vmatprep.subr.mxu0 0.0
        %1886 = vmatpush1.xpose.msra.mxu0 0.0
        %1887 = vmatprep.subr.mxu0 0.0
        %1888 = vmatpush1.xpose.msra.mxu0 0.0
        %1889 = vmatprep.subr.mxu0 0.0
        %1890 = vmatpush1.xpose.msra.mxu0 0.0
        %1891 = vmatprep.subr.mxu0 0.0
        %1892 = vmatpush1.xpose.msra.mxu0 0.0
        %1893 = vmatprep.subr.mxu0 0.0
        %1894 = vmatpush1.xpose.msra.mxu0 0.0
        %1895 = vmatprep.subr.mxu0 0.0
        %1896 = vmatpush1.xpose.msra.mxu0 0.0
        %1897 = vmatprep.subr.mxu0 0.0
        %1898 = vmatpush1.xpose.msra.mxu0 0.0
        %1899 = vmatprep.subr.mxu0 0.0
        %1900 = vmatpush1.xpose.msra.mxu0 0.0
        %1901 = vmatprep.subr.mxu0 0.0
        %1902 = vmatpush1.xpose.msra.mxu0 0.0
        %1903 = vmatprep.subr.mxu0 0.0
        %1904 = vmatpush1.xpose.msra.mxu0 0.0
        %1905 = vmatprep.subr.mxu0 0.0
        %1906 = vmatpush1.xpose.msra.mxu0 0.0
        %1907 = vmatprep.subr.mxu0 0.0
        %1908 = vmatpush1.xpose.msra.mxu0 0.0
        %1909 = vmatprep.subr.mxu0 0.0
        %1910 = vmatpush1.xpose.msra.mxu0 0.0
        %1911 = vmatprep.subr.mxu0 0.0
        %1912 = vmatpush1.xpose.msra.mxu0 0.0
        %1913 = vmatprep.subr.mxu0 0.0
        %1914 = vmatpush1.xpose.msra.mxu0 0.0
        %1915 = vmatprep.subr.mxu0 0.0
        %1916 = vmatpush1.xpose.msra.mxu0 0.0
        %1917 = vmatprep.subr.mxu0 0.0
        %1918 = vmatpush1.xpose.msra.mxu0 0.0
        %1919 = vmatprep.subr.mxu0 0.0
        %1920 = vmatpush1.xpose.msra.mxu0 0.0
        %1921 = vmatprep.subr.mxu0 0.0
        %1922 = vmatpush1.xpose.msra.mxu0 0.0
        %1923 = vmatprep.subr.mxu0 0.0
        %1924 = vmatpush1.xpose.msra.mxu0 0.0
        %1925 = vmatprep.mubr.f32.mxu0 0.0
        %1926 = vmatmul.mubr.f32.gmra.mrb[0].mxu0 %v1857
        %v1927 = vpop.f32.mrb[0].mxu0
        %v1928 = vadd.f32 %v464, %v1927
        %v1929 = vpop.f32.mrb[0].mxu0
        %1930 = vdwg.mxu0
        %1931 = vrot.lane.b32.xlu0 %v449, 96
        %v1932 = vpop.permute.xlu0 %1931
        %1933 = vrot.lane.b32.xlu0 %v449, 32
        %v1934 = vpop.permute.xlu0 %1933
        %v1935 = vsel %vm468, %v1932, 0
        %v1937 = vsel %vm468, %v1934, 0
        %1939 = vmatprep.subr.mxu0 0.0
        %1940 = vmatpush1.xpose.msra.mxu0 %v1937
        %1941 = vmatprep.subr.mxu0 0.0
        %1942 = vmatpush1.xpose.msra.mxu0 0.0
        %1943 = vmatprep.subr.mxu0 0.0
        %1944 = vmatpush1.xpose.msra.mxu0 0.0
        %1945 = vmatprep.subr.mxu0 0.0
        %1946 = vmatpush1.xpose.msra.mxu0 0.0
        %1947 = vmatprep.subr.mxu0 0.0
        %1948 = vmatpush1.xpose.msra.mxu0 0.0
        %1949 = vmatprep.subr.mxu0 0.0
        %1950 = vmatpush1.xpose.msra.mxu0 0.0
        %1951 = vmatprep.subr.mxu0 0.0
        %1952 = vmatpush1.xpose.msra.mxu0 0.0
        %1953 = vmatprep.subr.mxu0 0.0
        %1954 = vmatpush1.xpose.msra.mxu0 0.0
        %1955 = vmatprep.subr.mxu0 0.0
        %1956 = vmatpush1.xpose.msra.mxu0 0.0
        %1957 = vmatprep.subr.mxu0 0.0
        %1958 = vmatpush1.xpose.msra.mxu0 0.0
        %1959 = vmatprep.subr.mxu0 0.0
        %1960 = vmatpush1.xpose.msra.mxu0 0.0
        %1961 = vmatprep.subr.mxu0 0.0
        %1962 = vmatpush1.xpose.msra.mxu0 0.0
        %1963 = vmatprep.subr.mxu0 0.0
        %1964 = vmatpush1.xpose.msra.mxu0 0.0
        %1965 = vmatprep.subr.mxu0 0.0
        %1966 = vmatpush1.xpose.msra.mxu0 0.0
        %1967 = vmatprep.subr.mxu0 0.0
        %1968 = vmatpush1.xpose.msra.mxu0 0.0
        %1969 = vmatprep.subr.mxu0 0.0
        %1970 = vmatpush1.xpose.msra.mxu0 0.0
        %1971 = vmatprep.subr.mxu0 0.0
        %1972 = vmatpush1.xpose.msra.mxu0 0.0
        %1973 = vmatprep.subr.mxu0 0.0
        %1974 = vmatpush1.xpose.msra.mxu0 0.0
        %1975 = vmatprep.subr.mxu0 0.0
        %1976 = vmatpush1.xpose.msra.mxu0 0.0
        %1977 = vmatprep.subr.mxu0 0.0
        %1978 = vmatpush1.xpose.msra.mxu0 0.0
        %1979 = vmatprep.subr.mxu0 0.0
        %1980 = vmatpush1.xpose.msra.mxu0 0.0
        %1981 = vmatprep.subr.mxu0 0.0
        %1982 = vmatpush1.xpose.msra.mxu0 0.0
        %1983 = vmatprep.subr.mxu0 0.0
        %1984 = vmatpush1.xpose.msra.mxu0 0.0
        %1985 = vmatprep.subr.mxu0 0.0
        %1986 = vmatpush1.xpose.msra.mxu0 0.0
        %1987 = vmatprep.subr.mxu0 0.0
        %1988 = vmatpush1.xpose.msra.mxu0 0.0
        %1989 = vmatprep.subr.mxu0 0.0
        %1990 = vmatpush1.xpose.msra.mxu0 0.0
        %1991 = vmatprep.subr.mxu0 0.0
        %1992 = vmatpush1.xpose.msra.mxu0 0.0
        %1993 = vmatprep.subr.mxu0 0.0
        %1994 = vmatpush1.xpose.msra.mxu0 0.0
        %1995 = vmatprep.subr.mxu0 0.0
        %1996 = vmatpush1.xpose.msra.mxu0 0.0
        %1997 = vmatprep.subr.mxu0 0.0
        %1998 = vmatpush1.xpose.msra.mxu0 0.0
        %1999 = vmatprep.subr.mxu0 0.0
        %2000 = vmatpush1.xpose.msra.mxu0 0.0
        %2001 = vmatprep.subr.mxu0 0.0
        %2002 = vmatpush1.xpose.msra.mxu0 0.0
        %2003 = vmatprep.mubr.f32.mxu0 0.0
        %2004 = vmatmul.mubr.f32.gmra.mrb[0].mxu0 %v1935
        %v2005 = vpop.f32.mrb[0].mxu0
        %v2006 = vadd.f32 %v464, %v2005
        %v2007 = vpop.f32.mrb[0].mxu0
        %2008 = vdwg.mxu0
        %2009 = vrot.lane.b32.xlu0 %v455, 96
        %v2010 = vpop.permute.xlu0 %2009
        %2011 = vrot.lane.b32.xlu0 %v455, 32
        %v2012 = vpop.permute.xlu0 %2011
        %v2013 = vsel %vm468, %v2010, 0
        %v2015 = vsel %vm468, %v2012, 0
        %2017 = vmatprep.subr.mxu0 0.0
        %2018 = vmatpush1.xpose.msra.mxu0 %v2015
        %2019 = vmatprep.subr.mxu0 0.0
        %2020 = vmatpush1.xpose.msra.mxu0 0.0
        %2021 = vmatprep.subr.mxu0 0.0
        %2022 = vmatpush1.xpose.msra.mxu0 0.0
        %2023 = vmatprep.subr.mxu0 0.0
        %2024 = vmatpush1.xpose.msra.mxu0 0.0
        %2025 = vmatprep.subr.mxu0 0.0
        %2026 = vmatpush1.xpose.msra.mxu0 0.0
        %2027 = vmatprep.subr.mxu0 0.0
        %2028 = vmatpush1.xpose.msra.mxu0 0.0
        %2029 = vmatprep.subr.mxu0 0.0
        %2030 = vmatpush1.xpose.msra.mxu0 0.0
        %2031 = vmatprep.subr.mxu0 0.0
        %2032 = vmatpush1.xpose.msra.mxu0 0.0
        %2033 = vmatprep.subr.mxu0 0.0
        %2034 = vmatpush1.xpose.msra.mxu0 0.0
        %2035 = vmatprep.subr.mxu0 0.0
        %2036 = vmatpush1.xpose.msra.mxu0 0.0
        %2037 = vmatprep.subr.mxu0 0.0
        %2038 = vmatpush1.xpose.msra.mxu0 0.0
        %2039 = vmatprep.subr.mxu0 0.0
        %2040 = vmatpush1.xpose.msra.mxu0 0.0
        %2041 = vmatprep.subr.mxu0 0.0
        %2042 = vmatpush1.xpose.msra.mxu0 0.0
        %2043 = vmatprep.subr.mxu0 0.0
        %2044 = vmatpush1.xpose.msra.mxu0 0.0
        %2045 = vmatprep.subr.mxu0 0.0
        %2046 = vmatpush1.xpose.msra.mxu0 0.0
        %2047 = vmatprep.subr.mxu0 0.0
        %2048 = vmatpush1.xpose.msra.mxu0 0.0
        %2049 = vmatprep.subr.mxu0 0.0
        %2050 = vmatpush1.xpose.msra.mxu0 0.0
        %2051 = vmatprep.subr.mxu0 0.0
        %2052 = vmatpush1.xpose.msra.mxu0 0.0
        %2053 = vmatprep.subr.mxu0 0.0
        %2054 = vmatpush1.xpose.msra.mxu0 0.0
        %2055 = vmatprep.subr.mxu0 0.0
        %2056 = vmatpush1.xpose.msra.mxu0 0.0
        %2057 = vmatprep.subr.mxu0 0.0
        %2058 = vmatpush1.xpose.msra.mxu0 0.0
        %2059 = vmatprep.subr.mxu0 0.0
        %2060 = vmatpush1.xpose.msra.mxu0 0.0
        %2061 = vmatprep.subr.mxu0 0.0
        %2062 = vmatpush1.xpose.msra.mxu0 0.0
        %2063 = vmatprep.subr.mxu0 0.0
        %2064 = vmatpush1.xpose.msra.mxu0 0.0
        %2065 = vmatprep.subr.mxu0 0.0
        %2066 = vmatpush1.xpose.msra.mxu0 0.0
        %2067 = vmatprep.subr.mxu0 0.0
        %2068 = vmatpush1.xpose.msra.mxu0 0.0
        %2069 = vmatprep.subr.mxu0 0.0
        %2070 = vmatpush1.xpose.msra.mxu0 0.0
        %2071 = vmatprep.subr.mxu0 0.0
        %2072 = vmatpush1.xpose.msra.mxu0 0.0
        %2073 = vmatprep.subr.mxu0 0.0
        %2074 = vmatpush1.xpose.msra.mxu0 0.0
        %2075 = vmatprep.subr.mxu0 0.0
        %2076 = vmatpush1.xpose.msra.mxu0 0.0
        %2077 = vmatprep.subr.mxu0 0.0
        %2078 = vmatpush1.xpose.msra.mxu0 0.0
        %2079 = vmatprep.subr.mxu0 0.0
        %2080 = vmatpush1.xpose.msra.mxu0 0.0
        %2081 = vmatprep.mubr.f32.mxu0 0.0
        %2082 = vmatmul.mubr.f32.gmra.mrb[0].mxu0 %v2013
        %v2083 = vpop.f32.mrb[0].mxu0
        %v2084 = vadd.f32 %v464, %v2083
        %v2085 = vpop.f32.mrb[0].mxu0
        %2086 = vdwg.mxu0
        %v2087 = vsel %vm774, %v1850, -inf
        %2088 = vmax.xlane.f32.xlu0 %v2087
        %v2089 = vpop.xlane.xlu0 %2088
        %v2090 = vsel %vm774, %v1928, -inf
        %2091 = vmax.xlane.f32.xlu0 %v2090
        %v2092 = vpop.xlane.xlu0 %2091
        %v2093 = vsel %vm774, %v2006, -inf
        %2094 = vmax.xlane.f32.xlu0 %v2093
        %v2095 = vpop.xlane.xlu0 %2094
        %v2096 = vsel %vm774, %v2084, -inf
        %2097 = vmax.xlane.f32.xlu0 %v2096
        %v2098 = vpop.xlane.xlu0 %2097
        %v2099 = vsub.f32 %v1850, %v2089
        %v2100 = vsub.f32 %v1928, %v2092
        %v2101 = vsub.f32 %v2006, %v2095
        %v2102 = vsub.f32 %v2084, %v2098
        %v2103 = vmul.f32 %v2099, 1.442695
        %v2104 = vpow.pop %v2103
        %v2105 = vmul.f32 %v2100, 1.442695
        %v2106 = vpow.pop %v2105
        %v2107 = vmul.f32 %v2101, 1.442695
        %v2108 = vpow.pop %v2107
        %v2109 = vmul.f32 %v2102, 1.442695
        %v2110 = vpow.pop %v2109
        %v2111 = vsel %vm774, %v2104, 0.0
        %2112 = vadd.xlane.f32.xlu0 %v2111
        %v2113 = vpop.xlane.xlu0 %2112
        %v2114 = vsel %vm774, %v2106, 0.0
        %2115 = vadd.xlane.f32.xlu0 %v2114
        %v2116 = vpop.xlane.xlu0 %2115
        %v2117 = vsel %vm774, %v2108, 0.0
        %2118 = vadd.xlane.f32.xlu0 %v2117
        %v2119 = vpop.xlane.xlu0 %2118
        %v2120 = vsel %vm774, %v2110, 0.0
        %2121 = vadd.xlane.f32.xlu0 %v2120
        %v2122 = vpop.xlane.xlu0 %2121
        %2123 = vrot.lane.b32.xlu0 %v439, 96
        %v2124 = vpop.permute.xlu0 %2123
        %v2127 = vsel %vm774, %v2104, 0
        %2129 = vmatprep.subr.mxu0 0.0
        %2130 = vmatpush1.msra.mxu0 %v2124
        %2131 = vmatprep.subr.mxu0 0.0
        %2132 = vmatpush1.msra.mxu0 0.0
        %2133 = vmatprep.subr.mxu0 0.0
        %2134 = vmatpush1.msra.mxu0 0.0
        %2135 = vmatprep.subr.mxu0 0.0
        %2136 = vmatpush1.msra.mxu0 0.0
        %2137 = vmatprep.subr.mxu0 0.0
        %2138 = vmatpush1.msra.mxu0 0.0
        %2139 = vmatprep.subr.mxu0 0.0
        %2140 = vmatpush1.msra.mxu0 0.0
        %2141 = vmatprep.subr.mxu0 0.0
        %2142 = vmatpush1.msra.mxu0 0.0
        %2143 = vmatprep.subr.mxu0 0.0
        %2144 = vmatpush1.msra.mxu0 0.0
        %2145 = vmatprep.subr.mxu0 0.0
        %2146 = vmatpush1.msra.mxu0 0.0
        %2147 = vmatprep.subr.mxu0 0.0
        %2148 = vmatpush1.msra.mxu0 0.0
        %2149 = vmatprep.subr.mxu0 0.0
        %2150 = vmatpush1.msra.mxu0 0.0
        %2151 = vmatprep.subr.mxu0 0.0
        %2152 = vmatpush1.msra.mxu0 0.0
        %2153 = vmatprep.subr.mxu0 0.0
        %2154 = vmatpush1.msra.mxu0 0.0
        %2155 = vmatprep.subr.mxu0 0.0
        %2156 = vmatpush1.msra.mxu0 0.0
        %2157 = vmatprep.subr.mxu0 0.0
        %2158 = vmatpush1.msra.mxu0 0.0
        %2159 = vmatprep.subr.mxu0 0.0
        %2160 = vmatpush1.msra.mxu0 0.0
        %2161 = vmatprep.subr.mxu0 0.0
        %2162 = vmatpush1.msra.mxu0 0.0
        %2163 = vmatprep.subr.mxu0 0.0
        %2164 = vmatpush1.msra.mxu0 0.0
        %2165 = vmatprep.subr.mxu0 0.0
        %2166 = vmatpush1.msra.mxu0 0.0
        %2167 = vmatprep.subr.mxu0 0.0
        %2168 = vmatpush1.msra.mxu0 0.0
        %2169 = vmatprep.subr.mxu0 0.0
        %2170 = vmatpush1.msra.mxu0 0.0
        %2171 = vmatprep.subr.mxu0 0.0
        %2172 = vmatpush1.msra.mxu0 0.0
        %2173 = vmatprep.subr.mxu0 0.0
        %2174 = vmatpush1.msra.mxu0 0.0
        %2175 = vmatprep.subr.mxu0 0.0
        %2176 = vmatpush1.msra.mxu0 0.0
        %2177 = vmatprep.subr.mxu0 0.0
        %2178 = vmatpush1.msra.mxu0 0.0
        %2179 = vmatprep.subr.mxu0 0.0
        %2180 = vmatpush1.msra.mxu0 0.0
        %2181 = vmatprep.subr.mxu0 0.0
        %2182 = vmatpush1.msra.mxu0 0.0
        %2183 = vmatprep.subr.mxu0 0.0
        %2184 = vmatpush1.msra.mxu0 0.0
        %2185 = vmatprep.subr.mxu0 0.0
        %2186 = vmatpush1.msra.mxu0 0.0
        %2187 = vmatprep.subr.mxu0 0.0
        %2188 = vmatpush1.msra.mxu0 0.0
        %2189 = vmatprep.subr.mxu0 0.0
        %2190 = vmatpush1.msra.mxu0 0.0
        %2191 = vmatprep.subr.mxu0 0.0
        %2192 = vmatpush1.msra.mxu0 0.0
        %2193 = vmatprep.mubr.f32.mxu0 0.0
        %2194 = vmatmul.mubr.f32.gmra.mrb[0].mxu0 %v2127
        %v2195 = vpop.f32.mrb[0].mxu0
        %v2196 = vadd.f32 0.0, %v2195
        %v2197 = vpop.f32.mrb[0].mxu0
        %2198 = vdwg.mxu0
        %2199 = vrot.lane.b32.xlu0 %v445, 96
        %v2200 = vpop.permute.xlu0 %2199
        %v2203 = vsel %vm774, %v2106, 0
        %2205 = vmatprep.subr.mxu0 0.0
        %2206 = vmatpush1.msra.mxu0 %v2200
        %2207 = vmatprep.subr.mxu0 0.0
        %2208 = vmatpush1.msra.mxu0 0.0
        %2209 = vmatprep.subr.mxu0 0.0
        %2210 = vmatpush1.msra.mxu0 0.0
        %2211 = vmatprep.subr.mxu0 0.0
        %2212 = vmatpush1.msra.mxu0 0.0
        %2213 = vmatprep.subr.mxu0 0.0
        %2214 = vmatpush1.msra.mxu0 0.0
        %2215 = vmatprep.subr.mxu0 0.0
        %2216 = vmatpush1.msra.mxu0 0.0
        %2217 = vmatprep.subr.mxu0 0.0
        %2218 = vmatpush1.msra.mxu0 0.0
        %2219 = vmatprep.subr.mxu0 0.0
        %2220 = vmatpush1.msra.mxu0 0.0
        %2221 = vmatprep.subr.mxu0 0.0
        %2222 = vmatpush1.msra.mxu0 0.0
        %2223 = vmatprep.subr.mxu0 0.0
        %2224 = vmatpush1.msra.mxu0 0.0
        %2225 = vmatprep.subr.mxu0 0.0
        %2226 = vmatpush1.msra.mxu0 0.0
        %2227 = vmatprep.subr.mxu0 0.0
        %2228 = vmatpush1.msra.mxu0 0.0
        %2229 = vmatprep.subr.mxu0 0.0
        %2230 = vmatpush1.msra.mxu0 0.0
        %2231 = vmatprep.subr.mxu0 0.0
        %2232 = vmatpush1.msra.mxu0 0.0
        %2233 = vmatprep.subr.mxu0 0.0
        %2234 = vmatpush1.msra.mxu0 0.0
        %2235 = vmatprep.subr.mxu0 0.0
        %2236 = vmatpush1.msra.mxu0 0.0
        %2237 = vmatprep.subr.mxu0 0.0
        %2238 = vmatpush1.msra.mxu0 0.0
        %2239 = vmatprep.subr.mxu0 0.0
        %2240 = vmatpush1.msra.mxu0 0.0
        %2241 = vmatprep.subr.mxu0 0.0
        %2242 = vmatpush1.msra.mxu0 0.0
        %2243 = vmatprep.subr.mxu0 0.0
        %2244 = vmatpush1.msra.mxu0 0.0
        %2245 = vmatprep.subr.mxu0 0.0
        %2246 = vmatpush1.msra.mxu0 0.0
        %2247 = vmatprep.subr.mxu0 0.0
        %2248 = vmatpush1.msra.mxu0 0.0
        %2249 = vmatprep.subr.mxu0 0.0
        %2250 = vmatpush1.msra.mxu0 0.0
        %2251 = vmatprep.subr.mxu0 0.0
        %2252 = vmatpush1.msra.mxu0 0.0
        %2253 = vmatprep.subr.mxu0 0.0
        %2254 = vmatpush1.msra.mxu0 0.0
        %2255 = vmatprep.subr.mxu0 0.0
        %2256 = vmatpush1.msra.mxu0 0.0
        %2257 = vmatprep.subr.mxu0 0.0
        %2258 = vmatpush1.msra.mxu0 0.0
        %2259 = vmatprep.subr.mxu0 0.0
        %2260 = vmatpush1.msra.mxu0 0.0
        %2261 = vmatprep.subr.mxu0 0.0
        %2262 = vmatpush1.msra.mxu0 0.0
        %2263 = vmatprep.subr.mxu0 0.0
        %2264 = vmatpush1.msra.mxu0 0.0
        %2265 = vmatprep.subr.mxu0 0.0
        %2266 = vmatpush1.msra.mxu0 0.0
        %2267 = vmatprep.subr.mxu0 0.0
        %2268 = vmatpush1.msra.mxu0 0.0
        %2269 = vmatprep.mubr.f32.mxu0 0.0
        %2270 = vmatmul.mubr.f32.gmra.mrb[0].mxu0 %v2203
        %v2271 = vpop.f32.mrb[0].mxu0
        %v2272 = vadd.f32 0.0, %v2271
        %v2273 = vpop.f32.mrb[0].mxu0
        %2274 = vdwg.mxu0
        %2275 = vrot.lane.b32.xlu0 %v451, 96
        %v2276 = vpop.permute.xlu0 %2275
        %v2279 = vsel %vm774, %v2108, 0
        %2281 = vmatprep.subr.mxu0 0.0
        %2282 = vmatpush1.msra.mxu0 %v2276
        %2283 = vmatprep.subr.mxu0 0.0
        %2284 = vmatpush1.msra.mxu0 0.0
        %2285 = vmatprep.subr.mxu0 0.0
        %2286 = vmatpush1.msra.mxu0 0.0
        %2287 = vmatprep.subr.mxu0 0.0
        %2288 = vmatpush1.msra.mxu0 0.0
        %2289 = vmatprep.subr.mxu0 0.0
        %2290 = vmatpush1.msra.mxu0 0.0
        %2291 = vmatprep.subr.mxu0 0.0
        %2292 = vmatpush1.msra.mxu0 0.0
        %2293 = vmatprep.subr.mxu0 0.0
        %2294 = vmatpush1.msra.mxu0 0.0
        %2295 = vmatprep.subr.mxu0 0.0
        %2296 = vmatpush1.msra.mxu0 0.0
        %2297 = vmatprep.subr.mxu0 0.0
        %2298 = vmatpush1.msra.mxu0 0.0
        %2299 = vmatprep.subr.mxu0 0.0
        %2300 = vmatpush1.msra.mxu0 0.0
        %2301 = vmatprep.subr.mxu0 0.0
        %2302 = vmatpush1.msra.mxu0 0.0
        %2303 = vmatprep.subr.mxu0 0.0
        %2304 = vmatpush1.msra.mxu0 0.0
        %2305 = vmatprep.subr.mxu0 0.0
        %2306 = vmatpush1.msra.mxu0 0.0
        %2307 = vmatprep.subr.mxu0 0.0
        %2308 = vmatpush1.msra.mxu0 0.0
        %2309 = vmatprep.subr.mxu0 0.0
        %2310 = vmatpush1.msra.mxu0 0.0
        %2311 = vmatprep.subr.mxu0 0.0
        %2312 = vmatpush1.msra.mxu0 0.0
        %2313 = vmatprep.subr.mxu0 0.0
        %2314 = vmatpush1.msra.mxu0 0.0
        %2315 = vmatprep.subr.mxu0 0.0
        %2316 = vmatpush1.msra.mxu0 0.0
        %2317 = vmatprep.subr.mxu0 0.0
        %2318 = vmatpush1.msra.mxu0 0.0
        %2319 = vmatprep.subr.mxu0 0.0
        %2320 = vmatpush1.msra.mxu0 0.0
        %2321 = vmatprep.subr.mxu0 0.0
        %2322 = vmatpush1.msra.mxu0 0.0
        %2323 = vmatprep.subr.mxu0 0.0
        %2324 = vmatpush1.msra.mxu0 0.0
        %2325 = vmatprep.subr.mxu0 0.0
        %2326 = vmatpush1.msra.mxu0 0.0
        %2327 = vmatprep.subr.mxu0 0.0
        %2328 = vmatpush1.msra.mxu0 0.0
        %2329 = vmatprep.subr.mxu0 0.0
        %2330 = vmatpush1.msra.mxu0 0.0
        %2331 = vmatprep.subr.mxu0 0.0
        %2332 = vmatpush1.msra.mxu0 0.0
        %2333 = vmatprep.subr.mxu0 0.0
        %2334 = vmatpush1.msra.mxu0 0.0
        %2335 = vmatprep.subr.mxu0 0.0
        %2336 = vmatpush1.msra.mxu0 0.0
        %2337 = vmatprep.subr.mxu0 0.0
        %2338 = vmatpush1.msra.mxu0 0.0
        %2339 = vmatprep.subr.mxu0 0.0
        %2340 = vmatpush1.msra.mxu0 0.0
        %2341 = vmatprep.subr.mxu0 0.0
        %2342 = vmatpush1.msra.mxu0 0.0
        %2343 = vmatprep.subr.mxu0 0.0
        %2344 = vmatpush1.msra.mxu0 0.0
        %2345 = vmatprep.mubr.f32.mxu0 0.0
        %2346 = vmatmul.mubr.f32.gmra.mrb[0].mxu0 %v2279
        %v2347 = vpop.f32.mrb[0].mxu0
        %v2348 = vadd.f32 0.0, %v2347
        %v2349 = vpop.f32.mrb[0].mxu0
        %2350 = vdwg.mxu0
        %2351 = vrot.lane.b32.xlu0 %v457, 96
        %v2352 = vpop.permute.xlu0 %2351
        %v2355 = vsel %vm774, %v2110, 0
        %2357 = vmatprep.subr.mxu0 0.0
        %2358 = vmatpush1.msra.mxu0 %v2352
        %2359 = vmatprep.subr.mxu0 0.0
        %2360 = vmatpush1.msra.mxu0 0.0
        %2361 = vmatprep.subr.mxu0 0.0
        %2362 = vmatpush1.msra.mxu0 0.0
        %2363 = vmatprep.subr.mxu0 0.0
        %2364 = vmatpush1.msra.mxu0 0.0
        %2365 = vmatprep.subr.mxu0 0.0
        %2366 = vmatpush1.msra.mxu0 0.0
        %2367 = vmatprep.subr.mxu0 0.0
        %2368 = vmatpush1.msra.mxu0 0.0
        %2369 = vmatprep.subr.mxu0 0.0
        %2370 = vmatpush1.msra.mxu0 0.0
        %2371 = vmatprep.subr.mxu0 0.0
        %2372 = vmatpush1.msra.mxu0 0.0
        %2373 = vmatprep.subr.mxu0 0.0
        %2374 = vmatpush1.msra.mxu0 0.0
        %2375 = vmatprep.subr.mxu0 0.0
        %2376 = vmatpush1.msra.mxu0 0.0
        %2377 = vmatprep.subr.mxu0 0.0
        %2378 = vmatpush1.msra.mxu0 0.0
        %2379 = vmatprep.subr.mxu0 0.0
        %2380 = vmatpush1.msra.mxu0 0.0
        %2381 = vmatprep.subr.mxu0 0.0
        %2382 = vmatpush1.msra.mxu0 0.0
        %2383 = vmatprep.subr.mxu0 0.0
        %2384 = vmatpush1.msra.mxu0 0.0
        %2385 = vmatprep.subr.mxu0 0.0
        %2386 = vmatpush1.msra.mxu0 0.0
        %2387 = vmatprep.subr.mxu0 0.0
        %2388 = vmatpush1.msra.mxu0 0.0
        %2389 = vmatprep.subr.mxu0 0.0
        %2390 = vmatpush1.msra.mxu0 0.0
        %2391 = vmatprep.subr.mxu0 0.0
        %2392 = vmatpush1.msra.mxu0 0.0
        %2393 = vmatprep.subr.mxu0 0.0
        %2394 = vmatpush1.msra.mxu0 0.0
        %2395 = vmatprep.subr.mxu0 0.0
        %2396 = vmatpush1.msra.mxu0 0.0
        %2397 = vmatprep.subr.mxu0 0.0
        %2398 = vmatpush1.msra.mxu0 0.0
        %2399 = vmatprep.subr.mxu0 0.0
        %2400 = vmatpush1.msra.mxu0 0.0
        %2401 = vmatprep.subr.mxu0 0.0
        %2402 = vmatpush1.msra.mxu0 0.0
        %2403 = vmatprep.subr.mxu0 0.0
        %2404 = vmatpush1.msra.mxu0 0.0
        %2405 = vmatprep.subr.mxu0 0.0
        %2406 = vmatpush1.msra.mxu0 0.0
        %2407 = vmatprep.subr.mxu0 0.0
        %2408 = vmatpush1.msra.mxu0 0.0
        %2409 = vmatprep.subr.mxu0 0.0
        %2410 = vmatpush1.msra.mxu0 0.0
        %2411 = vmatprep.subr.mxu0 0.0
        %2412 = vmatpush1.msra.mxu0 0.0
        %2413 = vmatprep.subr.mxu0 0.0
        %2414 = vmatpush1.msra.mxu0 0.0
        %2415 = vmatprep.subr.mxu0 0.0
        %2416 = vmatpush1.msra.mxu0 0.0
        %2417 = vmatprep.subr.mxu0 0.0
        %2418 = vmatpush1.msra.mxu0 0.0
        %2419 = vmatprep.subr.mxu0 0.0
        %2420 = vmatpush1.msra.mxu0 0.0
        %2421 = vmatprep.mubr.f32.mxu0 0.0
        %2422 = vmatmul.mubr.f32.gmra.mrb[0].mxu0 %v2355
        %v2423 = vpop.f32.mrb[0].mxu0
        %v2424 = vadd.f32 0.0, %v2423
        %v2425 = vpop.f32.mrb[0].mxu0
        %2426 = vdwg.mxu0
        %v2427 = vrcp.pop %v2113
        %v2428 = vmul.f32 %v2196, %v2427
        %v2429 = vrcp.pop %v2116
        %v2430 = vmul.f32 %v2272, %v2429
        %v2431 = vrcp.pop %v2119
        %v2432 = vmul.f32 %v2348, %v2431
        %v2433 = vrcp.pop %v2122
        %v2434 = vmul.f32 %v2424, %v2433
        %2435 = vrot.lane.b32.xlu0 %v437, 80
        %v2436 = vpop.permute.xlu0 %2435
        %2437 = vrot.lane.b32.xlu0 %v437, 16
        %v2438 = vpop.permute.xlu0 %2437
        %v2439 = vsel %vm468, %v2436, 0
        %v2441 = vsel %vm468, %v2438, 0
        %2443 = vmatprep.subr.mxu0 0.0
        %2444 = vmatpush1.xpose.msra.mxu0 %v2441
        %2445 = vmatprep.subr.mxu0 0.0
        %2446 = vmatpush1.xpose.msra.mxu0 0.0
        %2447 = vmatprep.subr.mxu0 0.0
        %2448 = vmatpush1.xpose.msra.mxu0 0.0
        %2449 = vmatprep.subr.mxu0 0.0
        %2450 = vmatpush1.xpose.msra.mxu0 0.0
        %2451 = vmatprep.subr.mxu0 0.0
        %2452 = vmatpush1.xpose.msra.mxu0 0.0
        %2453 = vmatprep.subr.mxu0 0.0
        %2454 = vmatpush1.xpose.msra.mxu0 0.0
        %2455 = vmatprep.subr.mxu0 0.0
        %2456 = vmatpush1.xpose.msra.mxu0 0.0
        %2457 = vmatprep.subr.mxu0 0.0
        %2458 = vmatpush1.xpose.msra.mxu0 0.0
        %2459 = vmatprep.subr.mxu0 0.0
        %2460 = vmatpush1.xpose.msra.mxu0 0.0
        %2461 = vmatprep.subr.mxu0 0.0
        %2462 = vmatpush1.xpose.msra.mxu0 0.0
        %2463 = vmatprep.subr.mxu0 0.0
        %2464 = vmatpush1.xpose.msra.mxu0 0.0
        %2465 = vmatprep.subr.mxu0 0.0
        %2466 = vmatpush1.xpose.msra.mxu0 0.0
        %2467 = vmatprep.subr.mxu0 0.0
        %2468 = vmatpush1.xpose.msra.mxu0 0.0
        %2469 = vmatprep.subr.mxu0 0.0
        %2470 = vmatpush1.xpose.msra.mxu0 0.0
        %2471 = vmatprep.subr.mxu0 0.0
        %2472 = vmatpush1.xpose.msra.mxu0 0.0
        %2473 = vmatprep.subr.mxu0 0.0
        %2474 = vmatpush1.xpose.msra.mxu0 0.0
        %2475 = vmatprep.subr.mxu0 0.0
        %2476 = vmatpush1.xpose.msra.mxu0 0.0
        %2477 = vmatprep.subr.mxu0 0.0
        %2478 = vmatpush1.xpose.msra.mxu0 0.0
        %2479 = vmatprep.subr.mxu0 0.0
        %2480 = vmatpush1.xpose.msra.mxu0 0.0
        %2481 = vmatprep.subr.mxu0 0.0
        %2482 = vmatpush1.xpose.msra.mxu0 0.0
        %2483 = vmatprep.subr.mxu0 0.0
        %2484 = vmatpush1.xpose.msra.mxu0 0.0
        %2485 = vmatprep.subr.mxu0 0.0
        %2486 = vmatpush1.xpose.msra.mxu0 0.0
        %2487 = vmatprep.subr.mxu0 0.0
        %2488 = vmatpush1.xpose.msra.mxu0 0.0
        %2489 = vmatprep.subr.mxu0 0.0
        %2490 = vmatpush1.xpose.msra.mxu0 0.0
        %2491 = vmatprep.subr.mxu0 0.0
        %2492 = vmatpush1.xpose.msra.mxu0 0.0
        %2493 = vmatprep.subr.mxu0 0.0
        %2494 = vmatpush1.xpose.msra.mxu0 0.0
        %2495 = vmatprep.subr.mxu0 0.0
        %2496 = vmatpush1.xpose.msra.mxu0 0.0
        %2497 = vmatprep.subr.mxu0 0.0
        %2498 = vmatpush1.xpose.msra.mxu0 0.0
        %2499 = vmatprep.subr.mxu0 0.0
        %2500 = vmatpush1.xpose.msra.mxu0 0.0
        %2501 = vmatprep.subr.mxu0 0.0
        %2502 = vmatpush1.xpose.msra.mxu0 0.0
        %2503 = vmatprep.subr.mxu0 0.0
        %2504 = vmatpush1.xpose.msra.mxu0 0.0
        %2505 = vmatprep.subr.mxu0 0.0
        %2506 = vmatpush1.xpose.msra.mxu0 0.0
        %2507 = vmatprep.mubr.f32.mxu0 0.0
        %2508 = vmatmul.mubr.f32.gmra.mrb[0].mxu0 %v2439
        %v2509 = vpop.f32.mrb[0].mxu0
        %v2510 = vadd.f32 %v464, %v2509
        %v2511 = vpop.f32.mrb[0].mxu0
        %2512 = vdwg.mxu0
        %2513 = vrot.lane.b32.xlu0 %v443, 80
        %v2514 = vpop.permute.xlu0 %2513
        %2515 = vrot.lane.b32.xlu0 %v443, 16
        %v2516 = vpop.permute.xlu0 %2515
        %v2517 = vsel %vm468, %v2514, 0
        %v2519 = vsel %vm468, %v2516, 0
        %2521 = vmatprep.subr.mxu0 0.0
        %2522 = vmatpush1.xpose.msra.mxu0 %v2519
        %2523 = vmatprep.subr.mxu0 0.0
        %2524 = vmatpush1.xpose.msra.mxu0 0.0
        %2525 = vmatprep.subr.mxu0 0.0
        %2526 = vmatpush1.xpose.msra.mxu0 0.0
        %2527 = vmatprep.subr.mxu0 0.0
        %2528 = vmatpush1.xpose.msra.mxu0 0.0
        %2529 = vmatprep.subr.mxu0 0.0
        %2530 = vmatpush1.xpose.msra.mxu0 0.0
        %2531 = vmatprep.subr.mxu0 0.0
        %2532 = vmatpush1.xpose.msra.mxu0 0.0
        %2533 = vmatprep.subr.mxu0 0.0
        %2534 = vmatpush1.xpose.msra.mxu0 0.0
        %2535 = vmatprep.subr.mxu0 0.0
        %2536 = vmatpush1.xpose.msra.mxu0 0.0
        %2537 = vmatprep.subr.mxu0 0.0
        %2538 = vmatpush1.xpose.msra.mxu0 0.0
        %2539 = vmatprep.subr.mxu0 0.0
        %2540 = vmatpush1.xpose.msra.mxu0 0.0
        %2541 = vmatprep.subr.mxu0 0.0
        %2542 = vmatpush1.xpose.msra.mxu0 0.0
        %2543 = vmatprep.subr.mxu0 0.0
        %2544 = vmatpush1.xpose.msra.mxu0 0.0
        %2545 = vmatprep.subr.mxu0 0.0
        %2546 = vmatpush1.xpose.msra.mxu0 0.0
        %2547 = vmatprep.subr.mxu0 0.0
        %2548 = vmatpush1.xpose.msra.mxu0 0.0
        %2549 = vmatprep.subr.mxu0 0.0
        %2550 = vmatpush1.xpose.msra.mxu0 0.0
        %2551 = vmatprep.subr.mxu0 0.0
        %2552 = vmatpush1.xpose.msra.mxu0 0.0
        %2553 = vmatprep.subr.mxu0 0.0
        %2554 = vmatpush1.xpose.msra.mxu0 0.0
        %2555 = vmatprep.subr.mxu0 0.0
        %2556 = vmatpush1.xpose.msra.mxu0 0.0
        %2557 = vmatprep.subr.mxu0 0.0
        %2558 = vmatpush1.xpose.msra.mxu0 0.0
        %2559 = vmatprep.subr.mxu0 0.0
        %2560 = vmatpush1.xpose.msra.mxu0 0.0
        %2561 = vmatprep.subr.mxu0 0.0
        %2562 = vmatpush1.xpose.msra.mxu0 0.0
        %2563 = vmatprep.subr.mxu0 0.0
        %2564 = vmatpush1.xpose.msra.mxu0 0.0
        %2565 = vmatprep.subr.mxu0 0.0
        %2566 = vmatpush1.xpose.msra.mxu0 0.0
        %2567 = vmatprep.subr.mxu0 0.0
        %2568 = vmatpush1.xpose.msra.mxu0 0.0
        %2569 = vmatprep.subr.mxu0 0.0
        %2570 = vmatpush1.xpose.msra.mxu0 0.0
        %2571 = vmatprep.subr.mxu0 0.0
        %2572 = vmatpush1.xpose.msra.mxu0 0.0
        %2573 = vmatprep.subr.mxu0 0.0
        %2574 = vmatpush1.xpose.msra.mxu0 0.0
        %2575 = vmatprep.subr.mxu0 0.0
        %2576 = vmatpush1.xpose.msra.mxu0 0.0
        %2577 = vmatprep.subr.mxu0 0.0
        %2578 = vmatpush1.xpose.msra.mxu0 0.0
        %2579 = vmatprep.subr.mxu0 0.0
        %2580 = vmatpush1.xpose.msra.mxu0 0.0
        %2581 = vmatprep.subr.mxu0 0.0
        %2582 = vmatpush1.xpose.msra.mxu0 0.0
        %2583 = vmatprep.subr.mxu0 0.0
        %2584 = vmatpush1.xpose.msra.mxu0 0.0
        %2585 = vmatprep.mubr.f32.mxu0 0.0
        %2586 = vmatmul.mubr.f32.gmra.mrb[0].mxu0 %v2517
        %v2587 = vpop.f32.mrb[0].mxu0
        %v2588 = vadd.f32 %v464, %v2587
        %v2589 = vpop.f32.mrb[0].mxu0
        %2590 = vdwg.mxu0
        %2591 = vrot.lane.b32.xlu0 %v449, 80
        %v2592 = vpop.permute.xlu0 %2591
        %2593 = vrot.lane.b32.xlu0 %v449, 16
        %v2594 = vpop.permute.xlu0 %2593
        %v2595 = vsel %vm468, %v2592, 0
        %v2597 = vsel %vm468, %v2594, 0
        %2599 = vmatprep.subr.mxu0 0.0
        %2600 = vmatpush1.xpose.msra.mxu0 %v2597
        %2601 = vmatprep.subr.mxu0 0.0
        %2602 = vmatpush1.xpose.msra.mxu0 0.0
        %2603 = vmatprep.subr.mxu0 0.0
        %2604 = vmatpush1.xpose.msra.mxu0 0.0
        %2605 = vmatprep.subr.mxu0 0.0
        %2606 = vmatpush1.xpose.msra.mxu0 0.0
        %2607 = vmatprep.subr.mxu0 0.0
        %2608 = vmatpush1.xpose.msra.mxu0 0.0
        %2609 = vmatprep.subr.mxu0 0.0
        %2610 = vmatpush1.xpose.msra.mxu0 0.0
        %2611 = vmatprep.subr.mxu0 0.0
        %2612 = vmatpush1.xpose.msra.mxu0 0.0
        %2613 = vmatprep.subr.mxu0 0.0
        %2614 = vmatpush1.xpose.msra.mxu0 0.0
        %2615 = vmatprep.subr.mxu0 0.0
        %2616 = vmatpush1.xpose.msra.mxu0 0.0
        %2617 = vmatprep.subr.mxu0 0.0
        %2618 = vmatpush1.xpose.msra.mxu0 0.0
        %2619 = vmatprep.subr.mxu0 0.0
        %2620 = vmatpush1.xpose.msra.mxu0 0.0
        %2621 = vmatprep.subr.mxu0 0.0
        %2622 = vmatpush1.xpose.msra.mxu0 0.0
        %2623 = vmatprep.subr.mxu0 0.0
        %2624 = vmatpush1.xpose.msra.mxu0 0.0
        %2625 = vmatprep.subr.mxu0 0.0
        %2626 = vmatpush1.xpose.msra.mxu0 0.0
        %2627 = vmatprep.subr.mxu0 0.0
        %2628 = vmatpush1.xpose.msra.mxu0 0.0
        %2629 = vmatprep.subr.mxu0 0.0
        %2630 = vmatpush1.xpose.msra.mxu0 0.0
        %2631 = vmatprep.subr.mxu0 0.0
        %2632 = vmatpush1.xpose.msra.mxu0 0.0
        %2633 = vmatprep.subr.mxu0 0.0
        %2634 = vmatpush1.xpose.msra.mxu0 0.0
        %2635 = vmatprep.subr.mxu0 0.0
        %2636 = vmatpush1.xpose.msra.mxu0 0.0
        %2637 = vmatprep.subr.mxu0 0.0
        %2638 = vmatpush1.xpose.msra.mxu0 0.0
        %2639 = vmatprep.subr.mxu0 0.0
        %2640 = vmatpush1.xpose.msra.mxu0 0.0
        %2641 = vmatprep.subr.mxu0 0.0
        %2642 = vmatpush1.xpose.msra.mxu0 0.0
        %2643 = vmatprep.subr.mxu0 0.0
        %2644 = vmatpush1.xpose.msra.mxu0 0.0
        %2645 = vmatprep.subr.mxu0 0.0
        %2646 = vmatpush1.xpose.msra.mxu0 0.0
        %2647 = vmatprep.subr.mxu0 0.0
        %2648 = vmatpush1.xpose.msra.mxu0 0.0
        %2649 = vmatprep.subr.mxu0 0.0
        %2650 = vmatpush1.xpose.msra.mxu0 0.0
        %2651 = vmatprep.subr.mxu0 0.0
        %2652 = vmatpush1.xpose.msra.mxu0 0.0
        %2653 = vmatprep.subr.mxu0 0.0
        %2654 = vmatpush1.xpose.msra.mxu0 0.0
        %2655 = vmatprep.subr.mxu0 0.0
        %2656 = vmatpush1.xpose.msra.mxu0 0.0
        %2657 = vmatprep.subr.mxu0 0.0
        %2658 = vmatpush1.xpose.msra.mxu0 0.0
        %2659 = vmatprep.subr.mxu0 0.0
        %2660 = vmatpush1.xpose.msra.mxu0 0.0
        %2661 = vmatprep.subr.mxu0 0.0
        %2662 = vmatpush1.xpose.msra.mxu0 0.0
        %2663 = vmatprep.mubr.f32.mxu0 0.0
        %2664 = vmatmul.mubr.f32.gmra.mrb[0].mxu0 %v2595
        %v2665 = vpop.f32.mrb[0].mxu0
        %v2666 = vadd.f32 %v464, %v2665
        %v2667 = vpop.f32.mrb[0].mxu0
        %2668 = vdwg.mxu0
        %2669 = vrot.lane.b32.xlu0 %v455, 80
        %v2670 = vpop.permute.xlu0 %2669
        %2671 = vrot.lane.b32.xlu0 %v455, 16
        %v2672 = vpop.permute.xlu0 %2671
        %v2673 = vsel %vm468, %v2670, 0
        %v2675 = vsel %vm468, %v2672, 0
        %2677 = vmatprep.subr.mxu0 0.0
        %2678 = vmatpush1.xpose.msra.mxu0 %v2675
        %2679 = vmatprep.subr.mxu0 0.0
        %2680 = vmatpush1.xpose.msra.mxu0 0.0
        %2681 = vmatprep.subr.mxu0 0.0
        %2682 = vmatpush1.xpose.msra.mxu0 0.0
        %2683 = vmatprep.subr.mxu0 0.0
        %2684 = vmatpush1.xpose.msra.mxu0 0.0
        %2685 = vmatprep.subr.mxu0 0.0
        %2686 = vmatpush1.xpose.msra.mxu0 0.0
        %2687 = vmatprep.subr.mxu0 0.0
        %2688 = vmatpush1.xpose.msra.mxu0 0.0
        %2689 = vmatprep.subr.mxu0 0.0
        %2690 = vmatpush1.xpose.msra.mxu0 0.0
        %2691 = vmatprep.subr.mxu0 0.0
        %2692 = vmatpush1.xpose.msra.mxu0 0.0
        %2693 = vmatprep.subr.mxu0 0.0
        %2694 = vmatpush1.xpose.msra.mxu0 0.0
        %2695 = vmatprep.subr.mxu0 0.0
        %2696 = vmatpush1.xpose.msra.mxu0 0.0
        %2697 = vmatprep.subr.mxu0 0.0
        %2698 = vmatpush1.xpose.msra.mxu0 0.0
        %2699 = vmatprep.subr.mxu0 0.0
        %2700 = vmatpush1.xpose.msra.mxu0 0.0
        %2701 = vmatprep.subr.mxu0 0.0
        %2702 = vmatpush1.xpose.msra.mxu0 0.0
        %2703 = vmatprep.subr.mxu0 0.0
        %2704 = vmatpush1.xpose.msra.mxu0 0.0
        %2705 = vmatprep.subr.mxu0 0.0
        %2706 = vmatpush1.xpose.msra.mxu0 0.0
        %2707 = vmatprep.subr.mxu0 0.0
        %2708 = vmatpush1.xpose.msra.mxu0 0.0
        %2709 = vmatprep.subr.mxu0 0.0
        %2710 = vmatpush1.xpose.msra.mxu0 0.0
        %2711 = vmatprep.subr.mxu0 0.0
        %2712 = vmatpush1.xpose.msra.mxu0 0.0
        %2713 = vmatprep.subr.mxu0 0.0
        %2714 = vmatpush1.xpose.msra.mxu0 0.0
        %2715 = vmatprep.subr.mxu0 0.0
        %2716 = vmatpush1.xpose.msra.mxu0 0.0
        %2717 = vmatprep.subr.mxu0 0.0
        %2718 = vmatpush1.xpose.msra.mxu0 0.0
        %2719 = vmatprep.subr.mxu0 0.0
        %2720 = vmatpush1.xpose.msra.mxu0 0.0
        %2721 = vmatprep.subr.mxu0 0.0
        %2722 = vmatpush1.xpose.msra.mxu0 0.0
        %2723 = vmatprep.subr.mxu0 0.0
        %2724 = vmatpush1.xpose.msra.mxu0 0.0
        %2725 = vmatprep.subr.mxu0 0.0
        %2726 = vmatpush1.xpose.msra.mxu0 0.0
        %2727 = vmatprep.subr.mxu0 0.0
        %2728 = vmatpush1.xpose.msra.mxu0 0.0
        %2729 = vmatprep.subr.mxu0 0.0
        %2730 = vmatpush1.xpose.msra.mxu0 0.0
        %2731 = vmatprep.subr.mxu0 0.0
        %2732 = vmatpush1.xpose.msra.mxu0 0.0
        %2733 = vmatprep.subr.mxu0 0.0
        %2734 = vmatpush1.xpose.msra.mxu0 0.0
        %2735 = vmatprep.subr.mxu0 0.0
        %2736 = vmatpush1.xpose.msra.mxu0 0.0
        %2737 = vmatprep.subr.mxu0 0.0
        %2738 = vmatpush1.xpose.msra.mxu0 0.0
        %2739 = vmatprep.subr.mxu0 0.0
        %2740 = vmatpush1.xpose.msra.mxu0 0.0
        %2741 = vmatprep.mubr.f32.mxu0 0.0
        %2742 = vmatmul.mubr.f32.gmra.mrb[0].mxu0 %v2673
        %v2743 = vpop.f32.mrb[0].mxu0
        %v2744 = vadd.f32 %v464, %v2743
        %v2745 = vpop.f32.mrb[0].mxu0
        %2746 = vdwg.mxu0
        %v2747 = vsel %vm774, %v2510, -inf
        %2748 = vmax.xlane.f32.xlu0 %v2747
        %v2749 = vpop.xlane.xlu0 %2748
        %v2750 = vsel %vm774, %v2588, -inf
        %2751 = vmax.xlane.f32.xlu0 %v2750
        %v2752 = vpop.xlane.xlu0 %2751
        %v2753 = vsel %vm774, %v2666, -inf
        %2754 = vmax.xlane.f32.xlu0 %v2753
        %v2755 = vpop.xlane.xlu0 %2754
        %v2756 = vsel %vm774, %v2744, -inf
        %2757 = vmax.xlane.f32.xlu0 %v2756
        %v2758 = vpop.xlane.xlu0 %2757
        %v2759 = vsub.f32 %v2510, %v2749
        %v2760 = vsub.f32 %v2588, %v2752
        %v2761 = vsub.f32 %v2666, %v2755
        %v2762 = vsub.f32 %v2744, %v2758
        %v2763 = vmul.f32 %v2759, 1.442695
        %v2764 = vpow.pop %v2763
        %v2765 = vmul.f32 %v2760, 1.442695
        %v2766 = vpow.pop %v2765
        %v2767 = vmul.f32 %v2761, 1.442695
        %v2768 = vpow.pop %v2767
        %v2769 = vmul.f32 %v2762, 1.442695
        %v2770 = vpow.pop %v2769
        %v2771 = vsel %vm774, %v2764, 0.0
        %2772 = vadd.xlane.f32.xlu0 %v2771
        %v2773 = vpop.xlane.xlu0 %2772
        %v2774 = vsel %vm774, %v2766, 0.0
        %2775 = vadd.xlane.f32.xlu0 %v2774
        %v2776 = vpop.xlane.xlu0 %2775
        %v2777 = vsel %vm774, %v2768, 0.0
        %2778 = vadd.xlane.f32.xlu0 %v2777
        %v2779 = vpop.xlane.xlu0 %2778
        %v2780 = vsel %vm774, %v2770, 0.0
        %2781 = vadd.xlane.f32.xlu0 %v2780
        %v2782 = vpop.xlane.xlu0 %2781
        %2783 = vrot.lane.b32.xlu0 %v439, 80
        %v2784 = vpop.permute.xlu0 %2783
        %v2787 = vsel %vm774, %v2764, 0
        %2789 = vmatprep.subr.mxu0 0.0
        %2790 = vmatpush1.msra.mxu0 %v2784
        %2791 = vmatprep.subr.mxu0 0.0
        %2792 = vmatpush1.msra.mxu0 0.0
        %2793 = vmatprep.subr.mxu0 0.0
        %2794 = vmatpush1.msra.mxu0 0.0
        %2795 = vmatprep.subr.mxu0 0.0
        %2796 = vmatpush1.msra.mxu0 0.0
        %2797 = vmatprep.subr.mxu0 0.0
        %2798 = vmatpush1.msra.mxu0 0.0
        %2799 = vmatprep.subr.mxu0 0.0
        %2800 = vmatpush1.msra.mxu0 0.0
        %2801 = vmatprep.subr.mxu0 0.0
        %2802 = vmatpush1.msra.mxu0 0.0
        %2803 = vmatprep.subr.mxu0 0.0
        %2804 = vmatpush1.msra.mxu0 0.0
        %2805 = vmatprep.subr.mxu0 0.0
        %2806 = vmatpush1.msra.mxu0 0.0
        %2807 = vmatprep.subr.mxu0 0.0
        %2808 = vmatpush1.msra.mxu0 0.0
        %2809 = vmatprep.subr.mxu0 0.0
        %2810 = vmatpush1.msra.mxu0 0.0
        %2811 = vmatprep.subr.mxu0 0.0
        %2812 = vmatpush1.msra.mxu0 0.0
        %2813 = vmatprep.subr.mxu0 0.0
        %2814 = vmatpush1.msra.mxu0 0.0
        %2815 = vmatprep.subr.mxu0 0.0
        %2816 = vmatpush1.msra.mxu0 0.0
        %2817 = vmatprep.subr.mxu0 0.0
        %2818 = vmatpush1.msra.mxu0 0.0
        %2819 = vmatprep.subr.mxu0 0.0
        %2820 = vmatpush1.msra.mxu0 0.0
        %2821 = vmatprep.subr.mxu0 0.0
        %2822 = vmatpush1.msra.mxu0 0.0
        %2823 = vmatprep.subr.mxu0 0.0
        %2824 = vmatpush1.msra.mxu0 0.0
        %2825 = vmatprep.subr.mxu0 0.0
        %2826 = vmatpush1.msra.mxu0 0.0
        %2827 = vmatprep.subr.mxu0 0.0
        %2828 = vmatpush1.msra.mxu0 0.0
        %2829 = vmatprep.subr.mxu0 0.0
        %2830 = vmatpush1.msra.mxu0 0.0
        %2831 = vmatprep.subr.mxu0 0.0
        %2832 = vmatpush1.msra.mxu0 0.0
        %2833 = vmatprep.subr.mxu0 0.0
        %2834 = vmatpush1.msra.mxu0 0.0
        %2835 = vmatprep.subr.mxu0 0.0
        %2836 = vmatpush1.msra.mxu0 0.0
        %2837 = vmatprep.subr.mxu0 0.0
        %2838 = vmatpush1.msra.mxu0 0.0
        %2839 = vmatprep.subr.mxu0 0.0
        %2840 = vmatpush1.msra.mxu0 0.0
        %2841 = vmatprep.subr.mxu0 0.0
        %2842 = vmatpush1.msra.mxu0 0.0
        %2843 = vmatprep.subr.mxu0 0.0
        %2844 = vmatpush1.msra.mxu0 0.0
        %2845 = vmatprep.subr.mxu0 0.0
        %2846 = vmatpush1.msra.mxu0 0.0
        %2847 = vmatprep.subr.mxu0 0.0
        %2848 = vmatpush1.msra.mxu0 0.0
        %2849 = vmatprep.subr.mxu0 0.0
        %2850 = vmatpush1.msra.mxu0 0.0
        %2851 = vmatprep.subr.mxu0 0.0
        %2852 = vmatpush1.msra.mxu0 0.0
        %2853 = vmatprep.mubr.f32.mxu0 0.0
        %2854 = vmatmul.mubr.f32.gmra.mrb[0].mxu0 %v2787
        %v2855 = vpop.f32.mrb[0].mxu0
        %v2856 = vadd.f32 0.0, %v2855
        %v2857 = vpop.f32.mrb[0].mxu0
        %2858 = vdwg.mxu0
        %2859 = vrot.lane.b32.xlu0 %v445, 80
        %v2860 = vpop.permute.xlu0 %2859
        %v2863 = vsel %vm774, %v2766, 0
        %2865 = vmatprep.subr.mxu0 0.0
        %2866 = vmatpush1.msra.mxu0 %v2860
        %2867 = vmatprep.subr.mxu0 0.0
        %2868 = vmatpush1.msra.mxu0 0.0
        %2869 = vmatprep.subr.mxu0 0.0
        %2870 = vmatpush1.msra.mxu0 0.0
        %2871 = vmatprep.subr.mxu0 0.0
        %2872 = vmatpush1.msra.mxu0 0.0
        %2873 = vmatprep.subr.mxu0 0.0
        %2874 = vmatpush1.msra.mxu0 0.0
        %2875 = vmatprep.subr.mxu0 0.0
        %2876 = vmatpush1.msra.mxu0 0.0
        %2877 = vmatprep.subr.mxu0 0.0
        %2878 = vmatpush1.msra.mxu0 0.0
        %2879 = vmatprep.subr.mxu0 0.0
        %2880 = vmatpush1.msra.mxu0 0.0
        %2881 = vmatprep.subr.mxu0 0.0
        %2882 = vmatpush1.msra.mxu0 0.0
        %2883 = vmatprep.subr.mxu0 0.0
        %2884 = vmatpush1.msra.mxu0 0.0
        %2885 = vmatprep.subr.mxu0 0.0
        %2886 = vmatpush1.msra.mxu0 0.0
        %2887 = vmatprep.subr.mxu0 0.0
        %2888 = vmatpush1.msra.mxu0 0.0
        %2889 = vmatprep.subr.mxu0 0.0
        %2890 = vmatpush1.msra.mxu0 0.0
        %2891 = vmatprep.subr.mxu0 0.0
        %2892 = vmatpush1.msra.mxu0 0.0
        %2893 = vmatprep.subr.mxu0 0.0
        %2894 = vmatpush1.msra.mxu0 0.0
        %2895 = vmatprep.subr.mxu0 0.0
        %2896 = vmatpush1.msra.mxu0 0.0
        %2897 = vmatprep.subr.mxu0 0.0
        %2898 = vmatpush1.msra.mxu0 0.0
        %2899 = vmatprep.subr.mxu0 0.0
        %2900 = vmatpush1.msra.mxu0 0.0
        %2901 = vmatprep.subr.mxu0 0.0
        %2902 = vmatpush1.msra.mxu0 0.0
        %2903 = vmatprep.subr.mxu0 0.0
        %2904 = vmatpush1.msra.mxu0 0.0
        %2905 = vmatprep.subr.mxu0 0.0
        %2906 = vmatpush1.msra.mxu0 0.0
        %2907 = vmatprep.subr.mxu0 0.0
        %2908 = vmatpush1.msra.mxu0 0.0
        %2909 = vmatprep.subr.mxu0 0.0
        %2910 = vmatpush1.msra.mxu0 0.0
        %2911 = vmatprep.subr.mxu0 0.0
        %2912 = vmatpush1.msra.mxu0 0.0
        %2913 = vmatprep.subr.mxu0 0.0
        %2914 = vmatpush1.msra.mxu0 0.0
        %2915 = vmatprep.subr.mxu0 0.0
        %2916 = vmatpush1.msra.mxu0 0.0
        %2917 = vmatprep.subr.mxu0 0.0
        %2918 = vmatpush1.msra.mxu0 0.0
        %2919 = vmatprep.subr.mxu0 0.0
        %2920 = vmatpush1.msra.mxu0 0.0
        %2921 = vmatprep.subr.mxu0 0.0
        %2922 = vmatpush1.msra.mxu0 0.0
        %2923 = vmatprep.subr.mxu0 0.0
        %2924 = vmatpush1.msra.mxu0 0.0
        %2925 = vmatprep.subr.mxu0 0.0
        %2926 = vmatpush1.msra.mxu0 0.0
        %2927 = vmatprep.subr.mxu0 0.0
        %2928 = vmatpush1.msra.mxu0 0.0
        %2929 = vmatprep.mubr.f32.mxu0 0.0
        %2930 = vmatmul.mubr.f32.gmra.mrb[0].mxu0 %v2863
        %v2931 = vpop.f32.mrb[0].mxu0
        %v2932 = vadd.f32 0.0, %v2931
        %v2933 = vpop.f32.mrb[0].mxu0
        %2934 = vdwg.mxu0
        %2935 = vrot.lane.b32.xlu0 %v451, 80
        %v2936 = vpop.permute.xlu0 %2935
        %v2939 = vsel %vm774, %v2768, 0
        %2941 = vmatprep.subr.mxu0 0.0
        %2942 = vmatpush1.msra.mxu0 %v2936
        %2943 = vmatprep.subr.mxu0 0.0
        %2944 = vmatpush1.msra.mxu0 0.0
        %2945 = vmatprep.subr.mxu0 0.0
        %2946 = vmatpush1.msra.mxu0 0.0
        %2947 = vmatprep.subr.mxu0 0.0
        %2948 = vmatpush1.msra.mxu0 0.0
        %2949 = vmatprep.subr.mxu0 0.0
        %2950 = vmatpush1.msra.mxu0 0.0
        %2951 = vmatprep.subr.mxu0 0.0
        %2952 = vmatpush1.msra.mxu0 0.0
        %2953 = vmatprep.subr.mxu0 0.0
        %2954 = vmatpush1.msra.mxu0 0.0
        %2955 = vmatprep.subr.mxu0 0.0
        %2956 = vmatpush1.msra.mxu0 0.0
        %2957 = vmatprep.subr.mxu0 0.0
        %2958 = vmatpush1.msra.mxu0 0.0
        %2959 = vmatprep.subr.mxu0 0.0
        %2960 = vmatpush1.msra.mxu0 0.0
        %2961 = vmatprep.subr.mxu0 0.0
        %2962 = vmatpush1.msra.mxu0 0.0
        %2963 = vmatprep.subr.mxu0 0.0
        %2964 = vmatpush1.msra.mxu0 0.0
        %2965 = vmatprep.subr.mxu0 0.0
        %2966 = vmatpush1.msra.mxu0 0.0
        %2967 = vmatprep.subr.mxu0 0.0
        %2968 = vmatpush1.msra.mxu0 0.0
        %2969 = vmatprep.subr.mxu0 0.0
        %2970 = vmatpush1.msra.mxu0 0.0
        %2971 = vmatprep.subr.mxu0 0.0
        %2972 = vmatpush1.msra.mxu0 0.0
        %2973 = vmatprep.subr.mxu0 0.0
        %2974 = vmatpush1.msra.mxu0 0.0
        %2975 = vmatprep.subr.mxu0 0.0
        %2976 = vmatpush1.msra.mxu0 0.0
        %2977 = vmatprep.subr.mxu0 0.0
        %2978 = vmatpush1.msra.mxu0 0.0
        %2979 = vmatprep.subr.mxu0 0.0
        %2980 = vmatpush1.msra.mxu0 0.0
        %2981 = vmatprep.subr.mxu0 0.0
        %2982 = vmatpush1.msra.mxu0 0.0
        %2983 = vmatprep.subr.mxu0 0.0
        %2984 = vmatpush1.msra.mxu0 0.0
        %2985 = vmatprep.subr.mxu0 0.0
        %2986 = vmatpush1.msra.mxu0 0.0
        %2987 = vmatprep.subr.mxu0 0.0
        %2988 = vmatpush1.msra.mxu0 0.0
        %2989 = vmatprep.subr.mxu0 0.0
        %2990 = vmatpush1.msra.mxu0 0.0
        %2991 = vmatprep.subr.mxu0 0.0
        %2992 = vmatpush1.msra.mxu0 0.0
        %2993 = vmatprep.subr.mxu0 0.0
        %2994 = vmatpush1.msra.mxu0 0.0
        %2995 = vmatprep.subr.mxu0 0.0
        %2996 = vmatpush1.msra.mxu0 0.0
        %2997 = vmatprep.subr.mxu0 0.0
        %2998 = vmatpush1.msra.mxu0 0.0
        %2999 = vmatprep.subr.mxu0 0.0
        %3000 = vmatpush1.msra.mxu0 0.0
        %3001 = vmatprep.subr.mxu0 0.0
        %3002 = vmatpush1.msra.mxu0 0.0
        %3003 = vmatprep.subr.mxu0 0.0
        %3004 = vmatpush1.msra.mxu0 0.0
        %3005 = vmatprep.mubr.f32.mxu0 0.0
        %3006 = vmatmul.mubr.f32.gmra.mrb[0].mxu0 %v2939
        %v3007 = vpop.f32.mrb[0].mxu0
        %v3008 = vadd.f32 0.0, %v3007
        %v3009 = vpop.f32.mrb[0].mxu0
        %3010 = vdwg.mxu0
        %3011 = vrot.lane.b32.xlu0 %v457, 80
        %v3012 = vpop.permute.xlu0 %3011
        %v3015 = vsel %vm774, %v2770, 0
        %3017 = vmatprep.subr.mxu0 0.0
        %3018 = vmatpush1.msra.mxu0 %v3012
        %3019 = vmatprep.subr.mxu0 0.0
        %3020 = vmatpush1.msra.mxu0 0.0
        %3021 = vmatprep.subr.mxu0 0.0
        %3022 = vmatpush1.msra.mxu0 0.0
        %3023 = vmatprep.subr.mxu0 0.0
        %3024 = vmatpush1.msra.mxu0 0.0
        %3025 = vmatprep.subr.mxu0 0.0
        %3026 = vmatpush1.msra.mxu0 0.0
        %3027 = vmatprep.subr.mxu0 0.0
        %3028 = vmatpush1.msra.mxu0 0.0
        %3029 = vmatprep.subr.mxu0 0.0
        %3030 = vmatpush1.msra.mxu0 0.0
        %3031 = vmatprep.subr.mxu0 0.0
        %3032 = vmatpush1.msra.mxu0 0.0
        %3033 = vmatprep.subr.mxu0 0.0
        %3034 = vmatpush1.msra.mxu0 0.0
        %3035 = vmatprep.subr.mxu0 0.0
        %3036 = vmatpush1.msra.mxu0 0.0
        %3037 = vmatprep.subr.mxu0 0.0
        %3038 = vmatpush1.msra.mxu0 0.0
        %3039 = vmatprep.subr.mxu0 0.0
        %3040 = vmatpush1.msra.mxu0 0.0
        %3041 = vmatprep.subr.mxu0 0.0
        %3042 = vmatpush1.msra.mxu0 0.0
        %3043 = vmatprep.subr.mxu0 0.0
        %3044 = vmatpush1.msra.mxu0 0.0
        %3045 = vmatprep.subr.mxu0 0.0
        %3046 = vmatpush1.msra.mxu0 0.0
        %3047 = vmatprep.subr.mxu0 0.0
        %3048 = vmatpush1.msra.mxu0 0.0
        %3049 = vmatprep.subr.mxu0 0.0
        %3050 = vmatpush1.msra.mxu0 0.0
        %3051 = vmatprep.subr.mxu0 0.0
        %3052 = vmatpush1.msra.mxu0 0.0
        %3053 = vmatprep.subr.mxu0 0.0
        %3054 = vmatpush1.msra.mxu0 0.0
        %3055 = vmatprep.subr.mxu0 0.0
        %3056 = vmatpush1.msra.mxu0 0.0
        %3057 = vmatprep.subr.mxu0 0.0
        %3058 = vmatpush1.msra.mxu0 0.0
        %3059 = vmatprep.subr.mxu0 0.0
        %3060 = vmatpush1.msra.mxu0 0.0
        %3061 = vmatprep.subr.mxu0 0.0
        %3062 = vmatpush1.msra.mxu0 0.0
        %3063 = vmatprep.subr.mxu0 0.0
        %3064 = vmatpush1.msra.mxu0 0.0
        %3065 = vmatprep.subr.mxu0 0.0
        %3066 = vmatpush1.msra.mxu0 0.0
        %3067 = vmatprep.subr.mxu0 0.0
        %3068 = vmatpush1.msra.mxu0 0.0
        %3069 = vmatprep.subr.mxu0 0.0
        %3070 = vmatpush1.msra.mxu0 0.0
        %3071 = vmatprep.subr.mxu0 0.0
        %3072 = vmatpush1.msra.mxu0 0.0
        %3073 = vmatprep.subr.mxu0 0.0
        %3074 = vmatpush1.msra.mxu0 0.0
        %3075 = vmatprep.subr.mxu0 0.0
        %3076 = vmatpush1.msra.mxu0 0.0
        %3077 = vmatprep.subr.mxu0 0.0
        %3078 = vmatpush1.msra.mxu0 0.0
        %3079 = vmatprep.subr.mxu0 0.0
        %3080 = vmatpush1.msra.mxu0 0.0
        %3081 = vmatprep.mubr.f32.mxu0 0.0
        %3082 = vmatmul.mubr.f32.gmra.mrb[0].mxu0 %v3015
        %v3083 = vpop.f32.mrb[0].mxu0
        %v3084 = vadd.f32 0.0, %v3083
        %v3085 = vpop.f32.mrb[0].mxu0
        %3086 = vdwg.mxu0
        %v3087 = vrcp.pop %v2773
        %v3088 = vmul.f32 %v2856, %v3087
        %v3089 = vrcp.pop %v2776
        %v3090 = vmul.f32 %v2932, %v3089
        %v3091 = vrcp.pop %v2779
        %v3092 = vmul.f32 %v3008, %v3091
        %v3093 = vrcp.pop %v2782
        %v3094 = vmul.f32 %v3084, %v3093
        %3099 = vrot.lane.b32.xlu0 %v1768, 16
        %v3100 = vpop.permute.xlu0 %3099
        %3101 = vrot.lane.b32.xlu0 %v1770, 16
        %v3102 = vpop.permute.xlu0 %3101
        %3103 = vrot.lane.b32.xlu0 %v1772, 16
        %v3104 = vpop.permute.xlu0 %3103
        %3105 = vrot.lane.b32.xlu0 %v1774, 16
        %v3106 = vpop.permute.xlu0 %3105
        %3115 = vrot.lane.b32.xlu0 %v2428, 32
        %v3116 = vpop.permute.xlu0 %3115
        %3117 = vrot.lane.b32.xlu0 %v2430, 32
        %v3118 = vpop.permute.xlu0 %3117
        %3119 = vrot.lane.b32.xlu0 %v2432, 32
        %v3120 = vpop.permute.xlu0 %3119
        %3121 = vrot.lane.b32.xlu0 %v2434, 32
        %v3122 = vpop.permute.xlu0 %3121
        %3131 = vrot.lane.b32.xlu0 %v3088, 48
        %v3132 = vpop.permute.xlu0 %3131
        %3133 = vrot.lane.b32.xlu0 %v3090, 48
        %v3134 = vpop.permute.xlu0 %3133
        %3135 = vrot.lane.b32.xlu0 %v3092, 48
        %v3136 = vpop.permute.xlu0 %3135
        %3137 = vrot.lane.b32.xlu0 %v3094, 48
        %v3138 = vpop.permute.xlu0 %3137
        %v3143 = vsel %vm468, %v1104, %v3100
        %v3144 = vsel %vm468, %v1106, %v3102
        %v3145 = vsel %vm468, %v1108, %v3104
        %v3146 = vsel %vm468, %v1110, %v3106
        %vm3147 = vcmask 261120
        %v3148 = vsel %vm3147, %v3143, %v3116
        %v3149 = vsel %vm3147, %v3144, %v3118
        %v3150 = vsel %vm3147, %v3145, %v3120
        %v3151 = vsel %vm3147, %v3146, %v3122
        %vm3152 = vcmask 392192
        %v3153 = vsel %vm3152, %v3148, %v3132
        %v3154 = vsel %vm3152, %v3149, %v3134
        %v3155 = vsel %vm3152, %v3150, %v3136
        %v3156 = vsel %vm3152, %v3151, %v3138
        %v3157 = vld [vmem:[%s2] sm:$0xff]
        %v3158 = vld [vmem:[%s2 + $0x8] sm:$0xff]
        %v3159 = vld [vmem:[%s2 + $0x10] sm:$0xff]
        %v3160 = vld [vmem:[%s2 + $0x18] sm:$0xff]
        %v3161 = vld [vmem:[%s2 + $0x20] sm:$0xff]
        %v3162 = vld [vmem:[%s2 + $0x28] sm:$0xff]
        %v3163 = vld [vmem:[%s2 + $0x30] sm:$0xff]
        %v3164 = vld [vmem:[%s2 + $0x38] sm:$0xff]
        %v3165 = vlaneseq
        %v3166 = vshrl.u32 %v3165, 7
        %v3167 = vsub.s32 4, %v3166
        %v3168 = vrot.slane %v270, %v3167
        %v3170 = vsel %vm272, %v3153, 0
        %v3173 = vsel %vm272, %v3154, 0
        %v3176 = vsel %vm272, %v3155, 0
        %v3179 = vsel %vm272, %v3156, 0
        %3181 = vmatprep.subr.mxu0 0.0
        %3182 = vmatpush1.msra.mxu0 %v3157
        %3183 = vmatprep.subr.mxu0 0.0
        %3184 = vmatpush1.msra.mxu0 %v3158
        %3185 = vmatprep.subr.mxu0 0.0
        %3186 = vmatpush1.msra.mxu0 %v3159
        %3187 = vmatprep.subr.mxu0 0.0
        %3188 = vmatpush1.msra.mxu0 %v3160
        %3189 = vmatprep.subr.mxu0 0.0
        %3190 = vmatpush1.msra.mxu0 %v3161
        %3191 = vmatprep.subr.mxu0 0.0
        %3192 = vmatpush1.msra.mxu0 %v3162
        %3193 = vmatprep.subr.mxu0 0.0
        %3194 = vmatpush1.msra.mxu0 %v3163
        %3195 = vmatprep.subr.mxu0 0.0
        %3196 = vmatpush1.msra.mxu0 %v3164
        %3197 = vmatprep.subr.mxu0 0.0
        %3198 = vmatpush1.msra.mxu0 0.0
        %3199 = vmatprep.subr.mxu0 0.0
        %3200 = vmatpush1.msra.mxu0 0.0
        %3201 = vmatprep.subr.mxu0 0.0
        %3202 = vmatpush1.msra.mxu0 0.0
        %3203 = vmatprep.subr.mxu0 0.0
        %3204 = vmatpush1.msra.mxu0 0.0
        %3205 = vmatprep.subr.mxu0 0.0
        %3206 = vmatpush1.msra.mxu0 0.0
        %3207 = vmatprep.subr.mxu0 0.0
        %3208 = vmatpush1.msra.mxu0 0.0
        %3209 = vmatprep.subr.mxu0 0.0
        %3210 = vmatpush1.msra.mxu0 0.0
        %3211 = vmatprep.subr.mxu0 0.0
        %3212 = vmatpush1.msra.mxu0 0.0
        %3213 = vmatprep.subr.mxu0 0.0
        %3214 = vmatpush1.msra.mxu0 0.0
        %3215 = vmatprep.subr.mxu0 0.0
        %3216 = vmatpush1.msra.mxu0 0.0
        %3217 = vmatprep.subr.mxu0 0.0
        %3218 = vmatpush1.msra.mxu0 0.0
        %3219 = vmatprep.subr.mxu0 0.0
        %3220 = vmatpush1.msra.mxu0 0.0
        %3221 = vmatprep.subr.mxu0 0.0
        %3222 = vmatpush1.msra.mxu0 0.0
        %3223 = vmatprep.subr.mxu0 0.0
        %3224 = vmatpush1.msra.mxu0 0.0
        %3225 = vmatprep.subr.mxu0 0.0
        %3226 = vmatpush1.msra.mxu0 0.0
        %3227 = vmatprep.subr.mxu0 0.0
        %3228 = vmatpush1.msra.mxu0 0.0
        %3229 = vmatprep.subr.mxu0 0.0
        %3230 = vmatpush1.msra.mxu0 0.0
        %3231 = vmatprep.subr.mxu0 0.0
        %3232 = vmatpush1.msra.mxu0 0.0
        %3233 = vmatprep.subr.mxu0 0.0
        %3234 = vmatpush1.msra.mxu0 0.0
        %3235 = vmatprep.subr.mxu0 0.0
        %3236 = vmatpush1.msra.mxu0 0.0
        %3237 = vmatprep.subr.mxu0 0.0
        %3238 = vmatpush1.msra.mxu0 0.0
        %3239 = vmatprep.subr.mxu0 0.0
        %3240 = vmatpush1.msra.mxu0 0.0
        %3241 = vmatprep.subr.mxu0 0.0
        %3242 = vmatpush1.msra.mxu0 0.0
        %3243 = vmatprep.subr.mxu0 0.0
        %3244 = vmatpush1.msra.mxu0 0.0
        %3245 = vmatprep.mubr.f32.mxu0 0.0
        %3246 = vmatmul.mubr.f32.gmra.mrb[0].mxu0 %v3170
        %v3247 = vpop.f32.mrb[0].mxu0
        %v3248 = vadd.f32 %v3168, %v3247
        %v3249 = vpop.f32.mrb[0].mxu0
        %3250 = vmatprep.mubr.f32.mxu0 0.0
        %3251 = vmatmul.mubr.f32.gmra.mrb[0].mxu0 %v3173
        %v3252 = vpop.f32.mrb[0].mxu0
        %v3253 = vadd.f32 %v3168, %v3252
        %v3254 = vpop.f32.mrb[0].mxu0
        %3255 = vmatprep.mubr.f32.mxu0 0.0
        %3256 = vmatmul.mubr.f32.gmra.mrb[0].mxu0 %v3176
        %v3257 = vpop.f32.mrb[0].mxu0
        %v3258 = vadd.f32 %v3168, %v3257
        %v3259 = vpop.f32.mrb[0].mxu0
        %3260 = vmatprep.mubr.f32.mxu0 0.0
        %3261 = vmatmul.mubr.f32.gmra.mrb[0].mxu0 %v3179
        %v3262 = vpop.f32.mrb[0].mxu0
        %v3263 = vadd.f32 %v3168, %v3262
        %v3264 = vpop.f32.mrb[0].mxu0
        %3265 = vdwg.mxu0
        %v3266 = vadd.f32 %v266, %v3248
        %v3267 = vadd.f32 %v267, %v3253
        %v3268 = vadd.f32 %v268, %v3258
        %v3269 = vadd.f32 %v269, %v3263
        %v3270 = vsel %vm272, %v3266, 0.0
        %3271 = vadd.xlane.f32.xlu0 %v3270
        %v3272 = vpop.xlane.xlu0 %3271
        %v3273 = vsel %vm272, %v3267, 0.0
        %3274 = vadd.xlane.f32.xlu0 %v3273
        %v3275 = vpop.xlane.xlu0 %3274
        %v3276 = vsel %vm272, %v3268, 0.0
        %3277 = vadd.xlane.f32.xlu0 %v3276
        %v3278 = vpop.xlane.xlu0 %3277
        %v3279 = vsel %vm272, %v3269, 0.0
        %3280 = vadd.xlane.f32.xlu0 %v3279
        %v3281 = vpop.xlane.xlu0 %3280
        %v3282 = vmul.f32 %v3272, %v285
        %v3283 = vmul.f32 %v3275, %v285
        %v3284 = vmul.f32 %v3278, %v285
        %v3285 = vmul.f32 %v3281, %v285
        %v3286 = vsub.f32 %v3266, %v3282
        %v3287 = vsub.f32 %v3267, %v3283
        %v3288 = vsub.f32 %v3268, %v3284
        %v3289 = vsub.f32 %v3269, %v3285
        %v3290 = vmul.f32 %v3286, %v3286
        %v3291 = vmul.f32 %v3287, %v3287
        %v3292 = vmul.f32 %v3288, %v3288
        %v3293 = vmul.f32 %v3289, %v3289
        %v3294 = vsel %vm272, %v3290, 0.0
        %3295 = vadd.xlane.f32.xlu0 %v3294
        %v3296 = vpop.xlane.xlu0 %3295
        %v3297 = vsel %vm272, %v3291, 0.0
        %3298 = vadd.xlane.f32.xlu0 %v3297
        %v3299 = vpop.xlane.xlu0 %3298
        %v3300 = vsel %vm272, %v3292, 0.0
        %3301 = vadd.xlane.f32.xlu0 %v3300
        %v3302 = vpop.xlane.xlu0 %3301
        %v3303 = vsel %vm272, %v3293, 0.0
        %3304 = vadd.xlane.f32.xlu0 %v3303
        %v3305 = vpop.xlane.xlu0 %3304
        %v3306 = vmul.f32 %v3296, %v285
        %v3307 = vmul.f32 %v3299, %v285
        %v3308 = vmul.f32 %v3302, %v285
        %v3309 = vmul.f32 %v3305, %v285
        %v3310 = vadd.f32 %v3306, 1e-05
        %v3311 = vadd.f32 %v3307, 1e-05
        %v3312 = vadd.f32 %v3308, 1e-05
        %v3313 = vadd.f32 %v3309, 1e-05
        %v3314 = vrsqrt.pop %v3310
        %v3315 = vrsqrt.pop %v3311
        %v3316 = vrsqrt.pop %v3312
        %v3317 = vrsqrt.pop %v3313
        %v3318 = vmul.f32 %v3286, %v3314
        %v3319 = vmul.f32 %v3287, %v3315
        %v3320 = vmul.f32 %v3288, %v3316
        %v3321 = vmul.f32 %v3289, %v3317
        %v3322 = vlaneseq
        %v3323 = vshrl.u32 %v3322, 7
        %v3324 = vsub.s32 2, %v3323
        %v3325 = vrot.slane %v270, %v3324
        %v3326 = vmul.f32 %v3318, %v3325
        %v3327 = vmul.f32 %v3319, %v3325
        %v3328 = vmul.f32 %v3320, %v3325
        %v3329 = vmul.f32 %v3321, %v3325
        %v3330 = vlaneseq
        %v3331 = vshrl.u32 %v3330, 7
        %v3332 = vsub.s32 3, %v3331
        %v3333 = vrot.slane %v270, %v3332
        %v3334 = vadd.f32 %v3326, %v3333
        %v3335 = vadd.f32 %v3327, %v3333
        %v3336 = vadd.f32 %v3328, %v3333
        %v3337 = vadd.f32 %v3329, %v3333
        %v3338 = vld [vmem:[%s3] sm:$0xff]
        %v3339 = vld [vmem:[%s3 + $0x8] sm:$0xff]
        %v3340 = vld [vmem:[%s3 + $0x10] sm:$0xff]
        %v3341 = vld [vmem:[%s3 + $0x18] sm:$0xff]
        %v3342 = vld [vmem:[%s3 + $0x20] sm:$0xff]
        %v3343 = vld [vmem:[%s3 + $0x28] sm:$0xff]
        %v3344 = vld [vmem:[%s3 + $0x30] sm:$0xff]
        %v3345 = vld [vmem:[%s3 + $0x38] sm:$0xff]
        %v3346 = vld [vmem:[%s3 + $0x40] sm:$0xff]
        %v3347 = vld [vmem:[%s3 + $0x48] sm:$0xff]
        %v3348 = vld [vmem:[%s3 + $0x50] sm:$0xff]
        %v3349 = vld [vmem:[%s3 + $0x58] sm:$0xff]
        %v3350 = vld [vmem:[%s3 + $0x60] sm:$0xff]
        %v3351 = vld [vmem:[%s3 + $0x68] sm:$0xff]
        %v3352 = vld [vmem:[%s3 + $0x70] sm:$0xff]
        %v3353 = vld [vmem:[%s3 + $0x78] sm:$0xff]
        %v3354 = vlaneseq
        %v3355 = vshrl.u32 %v3354, 7
        %v3356 = vsub.s32 6, %v3355
        %v3357 = vrot.slane %v270, %v3356
        %v3358 = vlaneseq
        %v3359 = vshrl.u32 %v3358, 7
        %v3360 = vsub.s32 6, %v3359
        %v3361 = vrot.slane %v271, %v3360
        %v3363 = vsel %vm272, %v3334, 0
        %v3366 = vsel %vm272, %v3335, 0
        %v3369 = vsel %vm272, %v3336, 0
        %v3372 = vsel %vm272, %v3337, 0
        %3374 = vmatprep.subr.mxu0 %v3339
        %3375 = vmatpush1.msra.mxu0 %v3338
        %3376 = vmatprep.subr.mxu0 %v3341
        %3377 = vmatpush1.msra.mxu0 %v3340
        %3378 = vmatprep.subr.mxu0 %v3343
        %3379 = vmatpush1.msra.mxu0 %v3342
        %3380 = vmatprep.subr.mxu0 %v3345
        %3381 = vmatpush1.msra.mxu0 %v3344
        %3382 = vmatprep.subr.mxu0 %v3347
        %3383 = vmatpush1.msra.mxu0 %v3346
        %3384 = vmatprep.subr.mxu0 %v3349
        %3385 = vmatpush1.msra.mxu0 %v3348
        %3386 = vmatprep.subr.mxu0 %v3351
        %3387 = vmatpush1.msra.mxu0 %v3350
        %3388 = vmatprep.subr.mxu0 %v3353
        %3389 = vmatpush1.msra.mxu0 %v3352
        %3390 = vmatprep.subr.mxu0 0.0
        %3391 = vmatpush1.msra.mxu0 0.0
        %3392 = vmatprep.subr.mxu0 0.0
        %3393 = vmatpush1.msra.mxu0 0.0
        %3394 = vmatprep.subr.mxu0 0.0
        %3395 = vmatpush1.msra.mxu0 0.0
        %3396 = vmatprep.subr.mxu0 0.0
        %3397 = vmatpush1.msra.mxu0 0.0
        %3398 = vmatprep.subr.mxu0 0.0
        %3399 = vmatpush1.msra.mxu0 0.0
        %3400 = vmatprep.subr.mxu0 0.0
        %3401 = vmatpush1.msra.mxu0 0.0
        %3402 = vmatprep.subr.mxu0 0.0
        %3403 = vmatpush1.msra.mxu0 0.0
        %3404 = vmatprep.subr.mxu0 0.0
        %3405 = vmatpush1.msra.mxu0 0.0
        %3406 = vmatprep.subr.mxu0 0.0
        %3407 = vmatpush1.msra.mxu0 0.0
        %3408 = vmatprep.subr.mxu0 0.0
        %3409 = vmatpush1.msra.mxu0 0.0
        %3410 = vmatprep.subr.mxu0 0.0
        %3411 = vmatpush1.msra.mxu0 0.0
        %3412 = vmatprep.subr.mxu0 0.0
        %3413 = vmatpush1.msra.mxu0 0.0
        %3414 = vmatprep.subr.mxu0 0.0
        %3415 = vmatpush1.msra.mxu0 0.0
        %3416 = vmatprep.subr.mxu0 0.0
        %3417 = vmatpush1.msra.mxu0 0.0
        %3418 = vmatprep.subr.mxu0 0.0
        %3419 = vmatpush1.msra.mxu0 0.0
        %3420 = vmatprep.subr.mxu0 0.0
        %3421 = vmatpush1.msra.mxu0 0.0
        %3422 = vmatprep.subr.mxu0 0.0
        %3423 = vmatpush1.msra.mxu0 0.0
        %3424 = vmatprep.subr.mxu0 0.0
        %3425 = vmatpush1.msra.mxu0 0.0
        %3426 = vmatprep.subr.mxu0 0.0
        %3427 = vmatpush1.msra.mxu0 0.0
        %3428 = vmatprep.subr.mxu0 0.0
        %3429 = vmatpush1.msra.mxu0 0.0
        %3430 = vmatprep.subr.mxu0 0.0
        %3431 = vmatpush1.msra.mxu0 0.0
        %3432 = vmatprep.subr.mxu0 0.0
        %3433 = vmatpush1.msra.mxu0 0.0
        %3434 = vmatprep.subr.mxu0 0.0
        %3435 = vmatpush1.msra.mxu0 0.0
        %3436 = vmatprep.subr.mxu0 0.0
        %3437 = vmatpush1.msra.mxu0 0.0
        %3438 = vmatprep.mubr.f32.mxu0 0.0
        %3439 = vmatmul.mubr.f32.gmra.mrb[0].mxu0 %v3363
        %v3440 = vpop.f32.mrb[0].mxu0
        %v3441 = vadd.f32 %v3357, %v3440
        %v3442 = vpop.f32.mrb[0].mxu0
        %v3443 = vadd.f32 %v3361, %v3442
        %3444 = vmatprep.mubr.f32.mxu0 0.0
        %3445 = vmatmul.mubr.f32.gmra.mrb[0].mxu0 %v3366
        %v3446 = vpop.f32.mrb[0].mxu0
        %v3447 = vadd.f32 %v3357, %v3446
        %v3448 = vpop.f32.mrb[0].mxu0
        %v3449 = vadd.f32 %v3361, %v3448
        %3450 = vmatprep.mubr.f32.mxu0 0.0
        %3451 = vmatmul.mubr.f32.gmra.mrb[0].mxu0 %v3369
        %v3452 = vpop.f32.mrb[0].mxu0
        %v3453 = vadd.f32 %v3357, %v3452
        %v3454 = vpop.f32.mrb[0].mxu0
        %v3455 = vadd.f32 %v3361, %v3454
        %3456 = vmatprep.mubr.f32.mxu0 0.0
        %3457 = vmatmul.mubr.f32.gmra.mrb[0].mxu0 %v3372
        %v3458 = vpop.f32.mrb[0].mxu0
        %v3459 = vadd.f32 %v3357, %v3458
        %v3460 = vpop.f32.mrb[0].mxu0
        %v3461 = vadd.f32 %v3361, %v3460
        %3462 = vdwg.mxu0
        %v3463 = vmax.f32 %v3441, 0.0
        %v3464 = vmax.f32 %v3443, 0.0
        %v3465 = vmax.f32 %v3447, 0.0
        %v3466 = vmax.f32 %v3449, 0.0
        %v3467 = vmax.f32 %v3453, 0.0
        %v3468 = vmax.f32 %v3455, 0.0
        %v3469 = vmax.f32 %v3459, 0.0
        %v3470 = vmax.f32 %v3461, 0.0
        %v3471 = vld [vmem:[%s4] sm:$0xff]
        %v3472 = vld [vmem:[%s4 + $0x8] sm:$0xff]
        %v3473 = vld [vmem:[%s4 + $0x10] sm:$0xff]
        %v3474 = vld [vmem:[%s4 + $0x18] sm:$0xff]
        %v3475 = vld [vmem:[%s4 + $0x20] sm:$0xff]
        %v3476 = vld [vmem:[%s4 + $0x28] sm:$0xff]
        %v3477 = vld [vmem:[%s4 + $0x30] sm:$0xff]
        %v3478 = vld [vmem:[%s4 + $0x38] sm:$0xff]
        %v3479 = vld [vmem:[%s4 + $0x40] sm:$0xff]
        %v3480 = vld [vmem:[%s4 + $0x48] sm:$0xff]
        %v3481 = vld [vmem:[%s4 + $0x50] sm:$0xff]
        %v3482 = vld [vmem:[%s4 + $0x58] sm:$0xff]
        %v3483 = vld [vmem:[%s4 + $0x60] sm:$0xff]
        %v3484 = vld [vmem:[%s4 + $0x68] sm:$0xff]
        %v3485 = vld [vmem:[%s4 + $0x70] sm:$0xff]
        %v3486 = vld [vmem:[%s4 + $0x78] sm:$0xff]
        %v3487 = vld [vmem:[%s4 + $0x80] sm:$0xff]
        %v3488 = vld [vmem:[%s4 + $0x88] sm:$0xff]
        %v3489 = vld [vmem:[%s4 + $0x90] sm:$0xff]
        %v3490 = vld [vmem:[%s4 + $0x98] sm:$0xff]
        %v3491 = vld [vmem:[%s4 + $0xa0] sm:$0xff]
        %v3492 = vld [vmem:[%s4 + $0xa8] sm:$0xff]
        %v3493 = vld [vmem:[%s4 + $0xb0] sm:$0xff]
        %v3494 = vld [vmem:[%s4 + $0xb8] sm:$0xff]
        %v3495 = vld [vmem:[%s4 + $0xc0] sm:$0xff]
        %v3496 = vld [vmem:[%s4 + $0xc8] sm:$0xff]
        %v3497 = vld [vmem:[%s4 + $0xd0] sm:$0xff]
        %v3498 = vld [vmem:[%s4 + $0xd8] sm:$0xff]
        %v3499 = vld [vmem:[%s4 + $0xe0] sm:$0xff]
        %v3500 = vld [vmem:[%s4 + $0xe8] sm:$0xff]
        %v3501 = vld [vmem:[%s4 + $0xf0] sm:$0xff]
        %v3502 = vld [vmem:[%s4 + $0xf8] sm:$0xff]
        %v3503 = vlaneseq
        %v3504 = vshrl.u32 %v3503, 7
        %v3505 = vsub.s32 5, %v3504
        %v3506 = vrot.slane %v270, %v3505
        %3507 = vmatprep.subr.mxu0 0.0
        %3508 = vmatpush1.msra.mxu0 %v3471
        %3509 = vmatprep.subr.mxu0 0.0
        %3510 = vmatpush1.msra.mxu0 %v3472
        %3511 = vmatprep.subr.mxu0 0.0
        %3512 = vmatpush1.msra.mxu0 %v3473
        %3513 = vmatprep.subr.mxu0 0.0
        %3514 = vmatpush1.msra.mxu0 %v3474
        %3515 = vmatprep.subr.mxu0 0.0
        %3516 = vmatpush1.msra.mxu0 %v3475
        %3517 = vmatprep.subr.mxu0 0.0
        %3518 = vmatpush1.msra.mxu0 %v3476
        %3519 = vmatprep.subr.mxu0 0.0
        %3520 = vmatpush1.msra.mxu0 %v3477
        %3521 = vmatprep.subr.mxu0 0.0
        %3522 = vmatpush1.msra.mxu0 %v3478
        %3523 = vmatprep.subr.mxu0 0.0
        %3524 = vmatpush1.msra.mxu0 %v3479
        %3525 = vmatprep.subr.mxu0 0.0
        %3526 = vmatpush1.msra.mxu0 %v3480
        %3527 = vmatprep.subr.mxu0 0.0
        %3528 = vmatpush1.msra.mxu0 %v3481
        %3529 = vmatprep.subr.mxu0 0.0
        %3530 = vmatpush1.msra.mxu0 %v3482
        %3531 = vmatprep.subr.mxu0 0.0
        %3532 = vmatpush1.msra.mxu0 %v3483
        %3533 = vmatprep.subr.mxu0 0.0
        %3534 = vmatpush1.msra.mxu0 %v3484
        %3535 = vmatprep.subr.mxu0 0.0
        %3536 = vmatpush1.msra.mxu0 %v3485
        %3537 = vmatprep.subr.mxu0 0.0
        %3538 = vmatpush1.msra.mxu0 %v3486
        %3539 = vmatprep.subr.mxu0 0.0
        %3540 = vmatpush1.msra.mxu0 %v3487
        %3541 = vmatprep.subr.mxu0 0.0
        %3542 = vmatpush1.msra.mxu0 %v3488
        %3543 = vmatprep.subr.mxu0 0.0
        %3544 = vmatpush1.msra.mxu0 %v3489
        %3545 = vmatprep.subr.mxu0 0.0
        %3546 = vmatpush1.msra.mxu0 %v3490
        %3547 = vmatprep.subr.mxu0 0.0
        %3548 = vmatpush1.msra.mxu0 %v3491
        %3549 = vmatprep.subr.mxu0 0.0
        %3550 = vmatpush1.msra.mxu0 %v3492
        %3551 = vmatprep.subr.mxu0 0.0
        %3552 = vmatpush1.msra.mxu0 %v3493
        %3553 = vmatprep.subr.mxu0 0.0
        %3554 = vmatpush1.msra.mxu0 %v3494
        %3555 = vmatprep.subr.mxu0 0.0
        %3556 = vmatpush1.msra.mxu0 %v3495
        %3557 = vmatprep.subr.mxu0 0.0
        %3558 = vmatpush1.msra.mxu0 %v3496
        %3559 = vmatprep.subr.mxu0 0.0
        %3560 = vmatpush1.msra.mxu0 %v3497
        %3561 = vmatprep.subr.mxu0 0.0
        %3562 = vmatpush1.msra.mxu0 %v3498
        %3563 = vmatprep.subr.mxu0 0.0
        %3564 = vmatpush1.msra.mxu0 %v3499
        %3565 = vmatprep.subr.mxu0 0.0
        %3566 = vmatpush1.msra.mxu0 %v3500
        %3567 = vmatprep.subr.mxu0 0.0
        %3568 = vmatpush1.msra.mxu0 %v3501
        %3569 = vmatprep.subr.mxu0 0.0
        %3570 = vmatpush1.msra.mxu0 %v3502
        %3571 = vmatprep.mubr.f32.mxu0 %v3464
        %3572 = vmatmul.mubr.f32.gmra.mrb[0].mxu0 %v3463
        %v3573 = vpop.f32.mrb[0].mxu0
        %v3574 = vadd.f32 %v3506, %v3573
        %v3575 = vpop.f32.mrb[0].mxu0
        %3576 = vmatprep.mubr.f32.mxu0 %v3466
        %3577 = vmatmul.mubr.f32.gmra.mrb[0].mxu0 %v3465
        %v3578 = vpop.f32.mrb[0].mxu0
        %v3579 = vadd.f32 %v3506, %v3578
        %v3580 = vpop.f32.mrb[0].mxu0
        %3581 = vmatprep.mubr.f32.mxu0 %v3468
        %3582 = vmatmul.mubr.f32.gmra.mrb[0].mxu0 %v3467
        %v3583 = vpop.f32.mrb[0].mxu0
        %v3584 = vadd.f32 %v3506, %v3583
        %v3585 = vpop.f32.mrb[0].mxu0
        %3586 = vmatprep.mubr.f32.mxu0 %v3470
        %3587 = vmatmul.mubr.f32.gmra.mrb[0].mxu0 %v3469
        %v3588 = vpop.f32.mrb[0].mxu0
        %v3589 = vadd.f32 %v3506, %v3588
        %v3590 = vpop.f32.mrb[0].mxu0
        %3591 = vdwg.mxu0
        %v3592 = vadd.f32 %v3266, %v3574
        %v3593 = vadd.f32 %v3267, %v3579
        %v3594 = vadd.f32 %v3268, %v3584
        %v3595 = vadd.f32 %v3269, %v3589
        %3596 = vst.msk [vmem:[%s258] sm:$0xff] %vm272, %v3592
        %3597 = vst.msk [vmem:[%s258 + $0x8] sm:$0xff] %vm272, %v3593
        %3598 = vst.msk [vmem:[%s258 + $0x10] sm:$0xff] %vm272, %v3594
        %3599 = vst.msk [vmem:[%s258 + $0x18] sm:$0xff] %vm272, %v3595
        %s3600 = sand.u32 %s160, 1
        %s3601 = scalar_lea.sflag [#allocation4], %s3600
        %s3602 = sand.u32 %s160, 1
        %s3603 = smul.addr %s3602, 32
        %s3604 = scalar_lea.vmem [#allocation5], %s3603
        // Predicated region
        $region49: #{tpu_custom_call.1} parent=43 // pred_check
          %p3605 = pneg %p170
        $region50: #{tpu_custom_call.1} parent=43 // pred_check_branch
          %3607 = sbr.rel (%p3605) target = $region52
        $region51: #{tpu_custom_call.1} parent=43 // pred_region
          %s3608 = smul.u32 4, %s21
          %s3610 = ssub.s32 512, 512
          %3611 = vsyncadd %s3601, %s3610
          %s3612 = smul.addr %s3608, 128
          %s3613 = scalar_lea.hbm %s6, %s3612
          %s3614 = sshll.u32 %s3604, 4
          %s3615 = int_to_ptr.vmem [resolvable:$true] %s3614
          %3620 = dma.vmem_to_hbm [thread:$0]  %s3615, 512, %s3613, %s3601, 128, 128, 8
        $region52: #{tpu_custom_call.1} parent=43 // pred_fallthru
          _
      $region44: #{tpu_custom_call.1} parent=5 // pred_fallthru
        _
      %p3621 = scmp.le.s32.totalorder 2, %s16
      // Predicated region
      $region53: #{tpu_custom_call.1} parent=5 // pred_check
        %p3622 = pneg %p3621
      $region54: #{tpu_custom_call.1} parent=5 // pred_check_branch
        %3624 = sbr.rel (%p3622) target = $region56
      $region55: #{tpu_custom_call.1} parent=5 // pred_region
        %s3625 = ssub.s32 %s16, 2
        // Predicated region
        $region57: #{tpu_custom_call.1} parent=55 // pred_check
          %p3626 = pneg %p176
        $region58: #{tpu_custom_call.1} parent=55 // pred_check_branch
          %3628 = sbr.rel (%p3626) target = $region60
        $region59: #{tpu_custom_call.1} parent=55 // pred_region
          %s3629 = sand.u32 %s161, 1
          %s3630 = scalar_lea.sflag [#allocation4], %s3629
          %s3631 = sand.u32 %s161, 1
          %s3632 = smul.addr %s3631, 32
          %s3633 = scalar_lea.vmem [#allocation5], %s3632
          %3634 = dma.done %s3630, 512
        $region60: #{tpu_custom_call.1} parent=55 // pred_fallthru
          _
      $region56: #{tpu_custom_call.1} parent=5 // pred_fallthru
        _
    $region6: #{tpu_custom_call.1} parent=1 // loop_footer
      %s20 = sadd.s32 1, %s16
    $region7: #{tpu_custom_call.1} parent=1 // loop_footer_branch
      %15 = sbr.rel target = $region3
    $region8: #{tpu_custom_call.1} parent=1 // loop_exit
      _
    %3635 = vsyncpa [#allocation3], 1
    %s3636 = scalar_lea.sflag [#allocation3], 1
    %3637 = vsyncpa %s3636, 1
    %3638 = vsyncpa [#allocation4], 1
    %s3639 = scalar_lea.sflag [#allocation4], 1
    %3640 = vsyncpa %s3639, 1

</llo_original>
